<compile_context>
chip_gen: v7x
topology: tpu7x:2x2x1
jax: 0.10.0
libtpu: 0.0.40
codegen_flags: <defaults>
</compile_context>

<pallas_src>
import functools

import jax
import jax.numpy as jnp
from jax import lax
from jax.experimental import pallas as pl
from jax.experimental.pallas import tpu as pltpu

# --- module constants (from the PyTorch source) ---
N_EMBD = 384
BLOCK_SIZE = 64  # max sequence length for the causal mask


def _pick_batch_block(B, T, target_rows=256, max_bblk=32):
    """Smallest divisor of B such that Bblk*T >= target_rows (don't over-grow Bblk);
    falls back to the largest divisor <= max_bblk if the target can't be reached."""
    best = 1
    for d in range(1, min(B, max_bblk) + 1):
        if B % d == 0:
            best = d
            if d * T >= target_rows:
                break
    return best


def _mha_kernel(x_ref, wqkv_ref, wp_ref, bias_ref, o_ref, *, num_heads, head_size):
    """One grid step = one batch block. Projections run on the full (Bblk*T, C) slab;
    attention is batched over the Bblk axis inside a per-head loop."""
    Bblk, T, C = x_ref.shape
    H, D = num_heads, head_size
    HD = H * D
    M = Bblk * T

    # --- fused QKV projection: one wide MXU matmul with M = Bblk*T rows ---
    x2d = x_ref[...].reshape(M, C)                                   # bf16
    qkv = jnp.dot(x2d, wqkv_ref[...],
                  preferred_element_type=jnp.float32)                # (M, 3*H*D) f32
    qkv_bf = qkv.astype(jnp.bfloat16)                                # single bulk cast

    q3 = qkv_bf[:, :HD].reshape(Bblk, T, HD)
    k3 = qkv_bf[:, HD:2 * HD].reshape(Bblk, T, HD)
    v3 = qkv_bf[:, 2 * HD:].reshape(Bblk, T, HD)

    # Additive causal mask (0 / -1e9), built ONCE per grid step.
    row = lax.broadcasted_iota(jnp.int32, (T, T), 0)
    col = lax.broadcasted_iota(jnp.int32, (T, T), 1)
    mask = jnp.where(col <= row, 0.0, -1e9).astype(jnp.float32)      # (T, T)

    head_outs = []
    for h in range(H):
        sl = slice(h * D, (h + 1) * D)
        q = q3[:, :, sl]                                             # (Bblk, T, D) bf16
        k = k3[:, :, sl]
        v = v3[:, :, sl]

        # q @ k^T batched over the Bblk axis (scale already folded into wq).
        s = jnp.einsum("btd,bsd->bts", q, k,
                       preferred_element_type=jnp.float32)           # (Bblk, T, T) f32
        s = s + mask

        # Numerically stable softmax in f32 (vector path stays f32 for v5e).
        m = jnp.max(s, axis=-1, keepdims=True)
        p = jnp.exp(s - m)
        inv = pl.reciprocal(jnp.sum(p, axis=-1, keepdims=True), approx=True)
        wei = (p * inv).astype(jnp.bfloat16)
        # (attention dropout: identity in eval mode)

        head_outs.append(jnp.einsum("bts,bsd->btd", wei, v,
                                    preferred_element_type=jnp.float32))  # (Bblk, T, D) f32

    # Register-level "concat" of heads (no VMEM scratch, no masked 64-lane stores).
    cat = jnp.concatenate(head_outs, axis=-1).reshape(M, HD).astype(jnp.bfloat16)

    # Fused output projection on the full row-slab + bias (f32), then downcast.
    out = jnp.dot(cat, wp_ref[...],
                  preferred_element_type=jnp.float32) + bias_ref[...]    # (M, C) f32
    o_ref[...] = out.reshape(Bblk, T, C).astype(o_ref.dtype)
    # (output dropout: identity in eval mode)


def multi_head_attention(x, wqkv, wp, bias, *, num_heads, head_size, batch_block=None):
    """x: (B, T, C) bf16; wqkv: (C, 3*H*D) bf16 (query slice pre-scaled by 1/sqrt(D));
       wp: (H*D, C) bf16; bias: (1, C) f32. Returns (B, T, C) bf16."""
    B, T, C = x.shape
    HD = num_heads * head_size

    if batch_block is None:
        batch_block = _pick_batch_block(B, T)
    assert B % batch_block == 0
    grid = (B // batch_block,)

    kernel = functools.partial(_mha_kernel, num_heads=num_heads, head_size=head_size)

    return pl.pallas_call(
        kernel,
        out_shape=jax.ShapeDtypeStruct((B, T, C), jnp.bfloat16),
        grid_spec=pltpu.PrefetchScalarGridSpec(
            num_scalar_prefetch=0,
            grid=grid,
            in_specs=[
                pl.BlockSpec((batch_block, T, C), lambda b: (b, 0, 0)),  # x: batch-block tile
                pl.BlockSpec((C, 3 * HD), lambda b: (0, 0)),             # wqkv: resident
                pl.BlockSpec((HD, C), lambda b: (0, 0)),                 # wp:   resident
                pl.BlockSpec((1, C), lambda b: (0, 0)),                  # bias: resident
            ],
            out_specs=pl.BlockSpec((batch_block, T, C), lambda b: (b, 0, 0)),
        ),
        compiler_params=pltpu.CompilerParams(
            dimension_semantics=("parallel",),   # batch-block axis parallel (megacore)
        ),
    )(x, wqkv, wp, bias)


def reference_mha(x, wq, wk, wv, wp, bias):
    """Pure-JAX f32 reference with identical semantics (for verification)."""
    H, C, D = wq.shape
    scale = 1.0 / (float(D) ** 0.5)
    T = x.shape[1]
    q = jnp.einsum("btc,hcd->bhtd", x, wq)
    k = jnp.einsum("btc,hcd->bhtd", x, wk)
    v = jnp.einsum("btc,hcd->bhtd", x, wv)
    scores = jnp.einsum("bhtd,bhsd->bhts", q, k) * scale
    mask = jnp.tril(jnp.ones((T, T), dtype=bool))
    scores = jnp.where(mask, scores, -jnp.inf)
    wei = jax.nn.softmax(scores, axis=-1)
    head_out = jnp.einsum("bhts,bhsd->bhtd", wei, v)               # (B, H, T, D)
    out = jnp.einsum("bhtd,hdc->btc", head_out, wp) + bias[0]      # concat + proj fused
    return out


if __name__ == "__main__":
    # Small but module-consistent shapes: C = n_embd = 384, H = 6 heads of size 64,
    # batch B = 2, sequence T = 8 (<= block_size = 64).
    B, T, C = 2, 8, N_EMBD
    H, D = 6, 64
    assert H * D == C

    key = jax.random.PRNGKey(0)
    kx, kq, kk, kv, kp, kb = jax.random.split(key, 6)

    x = jax.random.normal(kx, (B, T, C), dtype=jnp.float32)

    # nn.Linear(n_embd, head_size, bias=False): weight is (D, C); y = x @ W^T.
    # Store W^T stacked per head: (H, C, D).
    wq = jax.random.normal(kq, (H, C, D), dtype=jnp.float32) * 0.02
    wk = jax.random.normal(kk, (H, C, D), dtype=jnp.float32) * 0.02
    wv = jax.random.normal(kv, (H, C, D), dtype=jnp.float32) * 0.02

    # nn.Linear(head_size*num_heads, n_embd): weight is (C, H*D); y = cat @ W^T + b.
    # Store W^T split into per-head (D, C) slices: (H, D, C).
    wp = jax.random.normal(kp, (H, D, C), dtype=jnp.float32) * 0.02
    bias = (jax.random.normal(kb, (1, C), dtype=jnp.float32) * 0.02).astype(jnp.float32)

    # --- host-side weight packing for the fused kernel ---
    scale = 1.0 / (float(D) ** 0.5)
    wq_scaled = wq * scale                                   # fold 1/sqrt(D) into Wq
    # (H, C, D) -> (C, H*D), column block h = head-h weights.
    pack = lambda w: jnp.transpose(w, (1, 0, 2)).reshape(C, H * D)
    wqkv_packed = jnp.concatenate(
        [pack(wq_scaled), pack(wk), pack(wv)], axis=1).astype(jnp.bfloat16)   # (C, 3*H*D)
    wp_packed = wp.reshape(H * D, C).astype(jnp.bfloat16)                     # (H*D, C)
    x_bf16 = x.astype(jnp.bfloat16)

    out = multi_head_attention(x_bf16, wqkv_packed, wp_packed, bias,
                               num_heads=H, head_size=D)
    out = jax.block_until_ready(out)

    ref = reference_mha(x, wq, wk, wv, wp, bias)
    assert out.shape == (B, T, C)
    # bf16 matmul operands + bf16 output writeback -> relaxed tolerance vs. f32 reference.
    assert jnp.allclose(out.astype(jnp.float32), ref, atol=3e-2, rtol=3e-2), (
        "mismatch vs. reference; max abs err = "
        f"{float(jnp.max(jnp.abs(out.astype(jnp.float32) - ref)))}")

    print("KERNEL_OK")
</pallas_src>

<mosaic_0001>
module attributes {stable_mosaic.version = 11 : i64} {
  func.func @_mha_kernel(%arg0: i32, %arg1: memref<2x8x384xbf16, #tpu.memory_space<vmem>>, %arg2: memref<384x1152xbf16, #tpu.memory_space<vmem>>, %arg3: memref<384x384xbf16, #tpu.memory_space<vmem>>, %arg4: memref<1x384xf32, #tpu.memory_space<vmem>>, %arg5: memref<2x8x384xbf16, #tpu.memory_space<vmem>>) attributes {dimension_semantics = [#tpu.dimension_semantics<parallel>], iteration_bounds = array<i64: 1>, scalar_prefetch = 0 : i64, scratch_operands = 0 : i64, tpu.core_type = #tpu.core_type<tc>, window_params = [{transform_indices = @transform_0, window_bounds = array<i64: 2, 8, 384>}, {pipeline_mode = #tpu.pipeline_mode<synchronous>, transform_indices = @transform_1, window_bounds = array<i64: 384, 1152>}, {pipeline_mode = #tpu.pipeline_mode<synchronous>, transform_indices = @transform_2, window_bounds = array<i64: 384, 384>}, {pipeline_mode = #tpu.pipeline_mode<synchronous>, transform_indices = @transform_3, window_bounds = array<i64: 1, 384>}, {transform_indices = @transform_4, window_bounds = array<i64: 2, 8, 384>}]} {
    %c0 = arith.constant 0 : index
    %c0_0 = arith.constant 0 : index
    %c0_1 = arith.constant 0 : index
    %0 = vector.load %arg1[%c0, %c0_0, %c0_1] : memref<2x8x384xbf16, #tpu.memory_space<vmem>>, vector<2x8x384xbf16>
    %1 = vector.shape_cast %0 : vector<2x8x384xbf16> to vector<16x384xbf16>
    %c0_2 = arith.constant 0 : index
    %c0_3 = arith.constant 0 : index
    %2 = vector.load %arg2[%c0_2, %c0_3] : memref<384x1152xbf16, #tpu.memory_space<vmem>>, vector<384x1152xbf16>
    %cst = arith.constant dense<0.000000e+00> : vector<16x1152xf32>
    %3 = tpu.matmul %1, %2, %cst {dimension_numbers = #tpu.dot_dimension_numbers<[1], [0], [0], [1], [0, 0, 1, 1], [], []>} : vector<16x384xbf16>, vector<384x1152xbf16>, vector<16x1152xf32> -> vector<16x1152xf32>
    %4 = arith.truncf %3 : vector<16x1152xf32> to vector<16x1152xbf16>
    %5 = vector.extract_strided_slice %4 {offsets = [0, 0], sizes = [16, 384], strides = [1, 1]} : vector<16x1152xbf16> to vector<16x384xbf16>
    %6 = vector.shape_cast %5 : vector<16x384xbf16> to vector<2x8x384xbf16>
    %7 = vector.extract_strided_slice %4 {offsets = [0, 384], sizes = [16, 384], strides = [1, 1]} : vector<16x1152xbf16> to vector<16x384xbf16>
    %8 = vector.shape_cast %7 : vector<16x384xbf16> to vector<2x8x384xbf16>
    %9 = vector.extract_strided_slice %4 {offsets = [0, 768], sizes = [16, 384], strides = [1, 1]} : vector<16x1152xbf16> to vector<16x384xbf16>
    %10 = vector.shape_cast %9 : vector<16x384xbf16> to vector<2x8x384xbf16>
    %11 = tpu.iota {dimensions = array<i32: 0>} : vector<8x8xi32>
    %12 = tpu.iota {dimensions = array<i32: 1>} : vector<8x8xi32>
    %13 = arith.cmpi sle, %12, %11 : vector<8x8xi32>
    %cst_4 = arith.constant 0.000000e+00 : f32
    %cst_5 = arith.constant -1.000000e+09 : f32
    %14 = vector.broadcast %cst_4 : f32 to vector<8x8xf32>
    %15 = vector.broadcast %cst_5 : f32 to vector<8x8xf32>
    %16 = arith.select %13, %14, %15 : vector<8x8xi1>, vector<8x8xf32>
    %17 = vector.extract_strided_slice %6 {offsets = [0, 0, 0], sizes = [2, 8, 64], strides = [1, 1, 1]} : vector<2x8x384xbf16> to vector<2x8x64xbf16>
    %18 = vector.extract_strided_slice %8 {offsets = [0, 0, 0], sizes = [2, 8, 64], strides = [1, 1, 1]} : vector<2x8x384xbf16> to vector<2x8x64xbf16>
    %19 = vector.extract_strided_slice %10 {offsets = [0, 0, 0], sizes = [2, 8, 64], strides = [1, 1, 1]} : vector<2x8x384xbf16> to vector<2x8x64xbf16>
    "tpu.trace_start"() <{level = 10 : i32, message = "btd,bsd->bts"}> : () -> ()
    %cst_6 = arith.constant dense<0.000000e+00> : vector<2x8x8xf32>
    %20 = tpu.matmul %17, %18, %cst_6 {dimension_numbers = #tpu.dot_dimension_numbers<[2], [2], [1], [1], [0, 0, 0, 1, 1, 1], [0], [0]>} : vector<2x8x64xbf16>, vector<2x8x64xbf16>, vector<2x8x8xf32> -> vector<2x8x8xf32>
    "tpu.trace_stop"() : () -> ()
    %21 = vector.shape_cast %16 : vector<8x8xf32> to vector<1x8x8xf32>
    %22 = vector.broadcast %21 : vector<1x8x8xf32> to vector<2x8x8xf32>
    %23 = arith.addf %20, %22 : vector<2x8x8xf32>
    %cst_7 = arith.constant dense<0xFF800000> : vector<2x8xf32>
    %24 = vector.multi_reduction <maximumf>, %23, %cst_7 [2] : vector<2x8x8xf32> to vector<2x8xf32>
    %25 = vector.shape_cast %24 : vector<2x8xf32> to vector<2x8x1xf32>
    %26 = vector.broadcast %25 : vector<2x8x1xf32> to vector<2x8x8xf32>
    %27 = arith.subf %23, %26 : vector<2x8x8xf32>
    %28 = math.exp %27 : vector<2x8x8xf32>
    %cst_8 = arith.constant dense<0.000000e+00> : vector<2x8xf32>
    %29 = vector.multi_reduction <add>, %28, %cst_8 [2] : vector<2x8x8xf32> to vector<2x8xf32>
    %30 = vector.shape_cast %29 : vector<2x8xf32> to vector<2x8x1xf32>
    %31 = tpu.reciprocal %30 {approx = true} : vector<2x8x1xf32> -> vector<2x8x1xf32>
    %32 = vector.broadcast %31 : vector<2x8x1xf32> to vector<2x8x8xf32>
    %33 = arith.mulf %28, %32 : vector<2x8x8xf32>
    %34 = arith.truncf %33 : vector<2x8x8xf32> to vector<2x8x8xbf16>
    "tpu.trace_start"() <{level = 10 : i32, message = "bts,bsd->btd"}> : () -> ()
    %cst_9 = arith.constant dense<0.000000e+00> : vector<2x8x64xf32>
    %35 = tpu.matmul %34, %19, %cst_9 {dimension_numbers = #tpu.dot_dimension_numbers<[2], [1], [1], [2], [0, 0, 0, 1, 1, 2], [0], [0]>} : vector<2x8x8xbf16>, vector<2x8x64xbf16>, vector<2x8x64xf32> -> vector<2x8x64xf32>
    "tpu.trace_stop"() : () -> ()
    %36 = vector.extract_strided_slice %6 {offsets = [0, 0, 64], sizes = [2, 8, 64], strides = [1, 1, 1]} : vector<2x8x384xbf16> to vector<2x8x64xbf16>
    %37 = vector.extract_strided_slice %8 {offsets = [0, 0, 64], sizes = [2, 8, 64], strides = [1, 1, 1]} : vector<2x8x384xbf16> to vector<2x8x64xbf16>
    %38 = vector.extract_strided_slice %10 {offsets = [0, 0, 64], sizes = [2, 8, 64], strides = [1, 1, 1]} : vector<2x8x384xbf16> to vector<2x8x64xbf16>
    "tpu.trace_start"() <{level = 10 : i32, message = "btd,bsd->bts"}> : () -> ()
    %cst_10 = arith.constant dense<0.000000e+00> : vector<2x8x8xf32>
    %39 = tpu.matmul %36, %37, %cst_10 {dimension_numbers = #tpu.dot_dimension_numbers<[2], [2], [1], [1], [0, 0, 0, 1, 1, 1], [0], [0]>} : vector<2x8x64xbf16>, vector<2x8x64xbf16>, vector<2x8x8xf32> -> vector<2x8x8xf32>
    "tpu.trace_stop"() : () -> ()
    %40 = vector.shape_cast %16 : vector<8x8xf32> to vector<1x8x8xf32>
    %41 = vector.broadcast %40 : vector<1x8x8xf32> to vector<2x8x8xf32>
    %42 = arith.addf %39, %41 : vector<2x8x8xf32>
    %cst_11 = arith.constant dense<0xFF800000> : vector<2x8xf32>
    %43 = vector.multi_reduction <maximumf>, %42, %cst_11 [2] : vector<2x8x8xf32> to vector<2x8xf32>
    %44 = vector.shape_cast %43 : vector<2x8xf32> to vector<2x8x1xf32>
    %45 = vector.broadcast %44 : vector<2x8x1xf32> to vector<2x8x8xf32>
    %46 = arith.subf %42, %45 : vector<2x8x8xf32>
    %47 = math.exp %46 : vector<2x8x8xf32>
    %cst_12 = arith.constant dense<0.000000e+00> : vector<2x8xf32>
    %48 = vector.multi_reduction <add>, %47, %cst_12 [2] : vector<2x8x8xf32> to vector<2x8xf32>
    %49 = vector.shape_cast %48 : vector<2x8xf32> to vector<2x8x1xf32>
    %50 = tpu.reciprocal %49 {approx = true} : vector<2x8x1xf32> -> vector<2x8x1xf32>
    %51 = vector.broadcast %50 : vector<2x8x1xf32> to vector<2x8x8xf32>
    %52 = arith.mulf %47, %51 : vector<2x8x8xf32>
    %53 = arith.truncf %52 : vector<2x8x8xf32> to vector<2x8x8xbf16>
    "tpu.trace_start"() <{level = 10 : i32, message = "bts,bsd->btd"}> : () -> ()
    %cst_13 = arith.constant dense<0.000000e+00> : vector<2x8x64xf32>
    %54 = tpu.matmul %53, %38, %cst_13 {dimension_numbers = #tpu.dot_dimension_numbers<[2], [1], [1], [2], [0, 0, 0, 1, 1, 2], [0], [0]>} : vector<2x8x8xbf16>, vector<2x8x64xbf16>, vector<2x8x64xf32> -> vector<2x8x64xf32>
    "tpu.trace_stop"() : () -> ()
    %55 = vector.extract_strided_slice %6 {offsets = [0, 0, 128], sizes = [2, 8, 64], strides = [1, 1, 1]} : vector<2x8x384xbf16> to vector<2x8x64xbf16>
    %56 = vector.extract_strided_slice %8 {offsets = [0, 0, 128], sizes = [2, 8, 64], strides = [1, 1, 1]} : vector<2x8x384xbf16> to vector<2x8x64xbf16>
    %57 = vector.extract_strided_slice %10 {offsets = [0, 0, 128], sizes = [2, 8, 64], strides = [1, 1, 1]} : vector<2x8x384xbf16> to vector<2x8x64xbf16>
    "tpu.trace_start"() <{level = 10 : i32, message = "btd,bsd->bts"}> : () -> ()
    %cst_14 = arith.constant dense<0.000000e+00> : vector<2x8x8xf32>
    %58 = tpu.matmul %55, %56, %cst_14 {dimension_numbers = #tpu.dot_dimension_numbers<[2], [2], [1], [1], [0, 0, 0, 1, 1, 1], [0], [0]>} : vector<2x8x64xbf16>, vector<2x8x64xbf16>, vector<2x8x8xf32> -> vector<2x8x8xf32>
    "tpu.trace_stop"() : () -> ()
    %59 = vector.shape_cast %16 : vector<8x8xf32> to vector<1x8x8xf32>
    %60 = vector.broadcast %59 : vector<1x8x8xf32> to vector<2x8x8xf32>
    %61 = arith.addf %58, %60 : vector<2x8x8xf32>
    %cst_15 = arith.constant dense<0xFF800000> : vector<2x8xf32>
    %62 = vector.multi_reduction <maximumf>, %61, %cst_15 [2] : vector<2x8x8xf32> to vector<2x8xf32>
    %63 = vector.shape_cast %62 : vector<2x8xf32> to vector<2x8x1xf32>
    %64 = vector.broadcast %63 : vector<2x8x1xf32> to vector<2x8x8xf32>
    %65 = arith.subf %61, %64 : vector<2x8x8xf32>
    %66 = math.exp %65 : vector<2x8x8xf32>
    %cst_16 = arith.constant dense<0.000000e+00> : vector<2x8xf32>
    %67 = vector.multi_reduction <add>, %66, %cst_16 [2] : vector<2x8x8xf32> to vector<2x8xf32>
    %68 = vector.shape_cast %67 : vector<2x8xf32> to vector<2x8x1xf32>
    %69 = tpu.reciprocal %68 {approx = true} : vector<2x8x1xf32> -> vector<2x8x1xf32>
    %70 = vector.broadcast %69 : vector<2x8x1xf32> to vector<2x8x8xf32>
    %71 = arith.mulf %66, %70 : vector<2x8x8xf32>
    %72 = arith.truncf %71 : vector<2x8x8xf32> to vector<2x8x8xbf16>
    "tpu.trace_start"() <{level = 10 : i32, message = "bts,bsd->btd"}> : () -> ()
    %cst_17 = arith.constant dense<0.000000e+00> : vector<2x8x64xf32>
    %73 = tpu.matmul %72, %57, %cst_17 {dimension_numbers = #tpu.dot_dimension_numbers<[2], [1], [1], [2], [0, 0, 0, 1, 1, 2], [0], [0]>} : vector<2x8x8xbf16>, vector<2x8x64xbf16>, vector<2x8x64xf32> -> vector<2x8x64xf32>
    "tpu.trace_stop"() : () -> ()
    %74 = vector.extract_strided_slice %6 {offsets = [0, 0, 192], sizes = [2, 8, 64], strides = [1, 1, 1]} : vector<2x8x384xbf16> to vector<2x8x64xbf16>
    %75 = vector.extract_strided_slice %8 {offsets = [0, 0, 192], sizes = [2, 8, 64], strides = [1, 1, 1]} : vector<2x8x384xbf16> to vector<2x8x64xbf16>
    %76 = vector.extract_strided_slice %10 {offsets = [0, 0, 192], sizes = [2, 8, 64], strides = [1, 1, 1]} : vector<2x8x384xbf16> to vector<2x8x64xbf16>
    "tpu.trace_start"() <{level = 10 : i32, message = "btd,bsd->bts"}> : () -> ()
    %cst_18 = arith.constant dense<0.000000e+00> : vector<2x8x8xf32>
    %77 = tpu.matmul %74, %75, %cst_18 {dimension_numbers = #tpu.dot_dimension_numbers<[2], [2], [1], [1], [0, 0, 0, 1, 1, 1], [0], [0]>} : vector<2x8x64xbf16>, vector<2x8x64xbf16>, vector<2x8x8xf32> -> vector<2x8x8xf32>
    "tpu.trace_stop"() : () -> ()
    %78 = vector.shape_cast %16 : vector<8x8xf32> to vector<1x8x8xf32>
    %79 = vector.broadcast %78 : vector<1x8x8xf32> to vector<2x8x8xf32>
    %80 = arith.addf %77, %79 : vector<2x8x8xf32>
    %cst_19 = arith.constant dense<0xFF800000> : vector<2x8xf32>
    %81 = vector.multi_reduction <maximumf>, %80, %cst_19 [2] : vector<2x8x8xf32> to vector<2x8xf32>
    %82 = vector.shape_cast %81 : vector<2x8xf32> to vector<2x8x1xf32>
    %83 = vector.broadcast %82 : vector<2x8x1xf32> to vector<2x8x8xf32>
    %84 = arith.subf %80, %83 : vector<2x8x8xf32>
    %85 = math.exp %84 : vector<2x8x8xf32>
    %cst_20 = arith.constant dense<0.000000e+00> : vector<2x8xf32>
    %86 = vector.multi_reduction <add>, %85, %cst_20 [2] : vector<2x8x8xf32> to vector<2x8xf32>
    %87 = vector.shape_cast %86 : vector<2x8xf32> to vector<2x8x1xf32>
    %88 = tpu.reciprocal %87 {approx = true} : vector<2x8x1xf32> -> vector<2x8x1xf32>
    %89 = vector.broadcast %88 : vector<2x8x1xf32> to vector<2x8x8xf32>
    %90 = arith.mulf %85, %89 : vector<2x8x8xf32>
    %91 = arith.truncf %90 : vector<2x8x8xf32> to vector<2x8x8xbf16>
    "tpu.trace_start"() <{level = 10 : i32, message = "bts,bsd->btd"}> : () -> ()
    %cst_21 = arith.constant dense<0.000000e+00> : vector<2x8x64xf32>
    %92 = tpu.matmul %91, %76, %cst_21 {dimension_numbers = #tpu.dot_dimension_numbers<[2], [1], [1], [2], [0, 0, 0, 1, 1, 2], [0], [0]>} : vector<2x8x8xbf16>, vector<2x8x64xbf16>, vector<2x8x64xf32> -> vector<2x8x64xf32>
    "tpu.trace_stop"() : () -> ()
    %93 = vector.extract_strided_slice %6 {offsets = [0, 0, 256], sizes = [2, 8, 64], strides = [1, 1, 1]} : vector<2x8x384xbf16> to vector<2x8x64xbf16>
    %94 = vector.extract_strided_slice %8 {offsets = [0, 0, 256], sizes = [2, 8, 64], strides = [1, 1, 1]} : vector<2x8x384xbf16> to vector<2x8x64xbf16>
    %95 = vector.extract_strided_slice %10 {offsets = [0, 0, 256], sizes = [2, 8, 64], strides = [1, 1, 1]} : vector<2x8x384xbf16> to vector<2x8x64xbf16>
    "tpu.trace_start"() <{level = 10 : i32, message = "btd,bsd->bts"}> : () -> ()
    %cst_22 = arith.constant dense<0.000000e+00> : vector<2x8x8xf32>
    %96 = tpu.matmul %93, %94, %cst_22 {dimension_numbers = #tpu.dot_dimension_numbers<[2], [2], [1], [1], [0, 0, 0, 1, 1, 1], [0], [0]>} : vector<2x8x64xbf16>, vector<2x8x64xbf16>, vector<2x8x8xf32> -> vector<2x8x8xf32>
    "tpu.trace_stop"() : () -> ()
    %97 = vector.shape_cast %16 : vector<8x8xf32> to vector<1x8x8xf32>
    %98 = vector.broadcast %97 : vector<1x8x8xf32> to vector<2x8x8xf32>
    %99 = arith.addf %96, %98 : vector<2x8x8xf32>
    %cst_23 = arith.constant dense<0xFF800000> : vector<2x8xf32>
    %100 = vector.multi_reduction <maximumf>, %99, %cst_23 [2] : vector<2x8x8xf32> to vector<2x8xf32>
    %101 = vector.shape_cast %100 : vector<2x8xf32> to vector<2x8x1xf32>
    %102 = vector.broadcast %101 : vector<2x8x1xf32> to vector<2x8x8xf32>
    %103 = arith.subf %99, %102 : vector<2x8x8xf32>
    %104 = math.exp %103 : vector<2x8x8xf32>
    %cst_24 = arith.constant dense<0.000000e+00> : vector<2x8xf32>
    %105 = vector.multi_reduction <add>, %104, %cst_24 [2] : vector<2x8x8xf32> to vector<2x8xf32>
    %106 = vector.shape_cast %105 : vector<2x8xf32> to vector<2x8x1xf32>
    %107 = tpu.reciprocal %106 {approx = true} : vector<2x8x1xf32> -> vector<2x8x1xf32>
    %108 = vector.broadcast %107 : vector<2x8x1xf32> to vector<2x8x8xf32>
    %109 = arith.mulf %104, %108 : vector<2x8x8xf32>
    %110 = arith.truncf %109 : vector<2x8x8xf32> to vector<2x8x8xbf16>
    "tpu.trace_start"() <{level = 10 : i32, message = "bts,bsd->btd"}> : () -> ()
    %cst_25 = arith.constant dense<0.000000e+00> : vector<2x8x64xf32>
    %111 = tpu.matmul %110, %95, %cst_25 {dimension_numbers = #tpu.dot_dimension_numbers<[2], [1], [1], [2], [0, 0, 0, 1, 1, 2], [0], [0]>} : vector<2x8x8xbf16>, vector<2x8x64xbf16>, vector<2x8x64xf32> -> vector<2x8x64xf32>
    "tpu.trace_stop"() : () -> ()
    %112 = vector.extract_strided_slice %6 {offsets = [0, 0, 320], sizes = [2, 8, 64], strides = [1, 1, 1]} : vector<2x8x384xbf16> to vector<2x8x64xbf16>
    %113 = vector.extract_strided_slice %8 {offsets = [0, 0, 320], sizes = [2, 8, 64], strides = [1, 1, 1]} : vector<2x8x384xbf16> to vector<2x8x64xbf16>
    %114 = vector.extract_strided_slice %10 {offsets = [0, 0, 320], sizes = [2, 8, 64], strides = [1, 1, 1]} : vector<2x8x384xbf16> to vector<2x8x64xbf16>
    "tpu.trace_start"() <{level = 10 : i32, message = "btd,bsd->bts"}> : () -> ()
    %cst_26 = arith.constant dense<0.000000e+00> : vector<2x8x8xf32>
    %115 = tpu.matmul %112, %113, %cst_26 {dimension_numbers = #tpu.dot_dimension_numbers<[2], [2], [1], [1], [0, 0, 0, 1, 1, 1], [0], [0]>} : vector<2x8x64xbf16>, vector<2x8x64xbf16>, vector<2x8x8xf32> -> vector<2x8x8xf32>
    "tpu.trace_stop"() : () -> ()
    %116 = vector.shape_cast %16 : vector<8x8xf32> to vector<1x8x8xf32>
    %117 = vector.broadcast %116 : vector<1x8x8xf32> to vector<2x8x8xf32>
    %118 = arith.addf %115, %117 : vector<2x8x8xf32>
    %cst_27 = arith.constant dense<0xFF800000> : vector<2x8xf32>
    %119 = vector.multi_reduction <maximumf>, %118, %cst_27 [2] : vector<2x8x8xf32> to vector<2x8xf32>
    %120 = vector.shape_cast %119 : vector<2x8xf32> to vector<2x8x1xf32>
    %121 = vector.broadcast %120 : vector<2x8x1xf32> to vector<2x8x8xf32>
    %122 = arith.subf %118, %121 : vector<2x8x8xf32>
    %123 = math.exp %122 : vector<2x8x8xf32>
    %cst_28 = arith.constant dense<0.000000e+00> : vector<2x8xf32>
    %124 = vector.multi_reduction <add>, %123, %cst_28 [2] : vector<2x8x8xf32> to vector<2x8xf32>
    %125 = vector.shape_cast %124 : vector<2x8xf32> to vector<2x8x1xf32>
    %126 = tpu.reciprocal %125 {approx = true} : vector<2x8x1xf32> -> vector<2x8x1xf32>
    %127 = vector.broadcast %126 : vector<2x8x1xf32> to vector<2x8x8xf32>
    %128 = arith.mulf %123, %127 : vector<2x8x8xf32>
    %129 = arith.truncf %128 : vector<2x8x8xf32> to vector<2x8x8xbf16>
    "tpu.trace_start"() <{level = 10 : i32, message = "bts,bsd->btd"}> : () -> ()
    %cst_29 = arith.constant dense<0.000000e+00> : vector<2x8x64xf32>
    %130 = tpu.matmul %129, %114, %cst_29 {dimension_numbers = #tpu.dot_dimension_numbers<[2], [1], [1], [2], [0, 0, 0, 1, 1, 2], [0], [0]>} : vector<2x8x8xbf16>, vector<2x8x64xbf16>, vector<2x8x64xf32> -> vector<2x8x64xf32>
    "tpu.trace_stop"() : () -> ()
    %131 = tpu.concatenate %35, %54, %73, %92, %111, %130 in 2 : vector<2x8x64xf32>, vector<2x8x64xf32>, vector<2x8x64xf32>, vector<2x8x64xf32>, vector<2x8x64xf32>, vector<2x8x64xf32> -> vector<2x8x384xf32>
    %132 = vector.shape_cast %131 : vector<2x8x384xf32> to vector<16x384xf32>
    %133 = arith.truncf %132 : vector<16x384xf32> to vector<16x384xbf16>
    %c0_30 = arith.constant 0 : index
    %c0_31 = arith.constant 0 : index
    %134 = vector.load %arg3[%c0_30, %c0_31] : memref<384x384xbf16, #tpu.memory_space<vmem>>, vector<384x384xbf16>
    %cst_32 = arith.constant dense<0.000000e+00> : vector<16x384xf32>
    %135 = tpu.matmul %133, %134, %cst_32 {dimension_numbers = #tpu.dot_dimension_numbers<[1], [0], [0], [1], [0, 0, 1, 1], [], []>} : vector<16x384xbf16>, vector<384x384xbf16>, vector<16x384xf32> -> vector<16x384xf32>
    %c0_33 = arith.constant 0 : index
    %c0_34 = arith.constant 0 : index
    %136 = vector.load %arg4[%c0_33, %c0_34] : memref<1x384xf32, #tpu.memory_space<vmem>>, vector<1x384xf32>
    %137 = vector.broadcast %136 : vector<1x384xf32> to vector<16x384xf32>
    %138 = arith.addf %135, %137 : vector<16x384xf32>
    %139 = vector.shape_cast %138 : vector<16x384xf32> to vector<2x8x384xf32>
    %140 = arith.truncf %139 : vector<2x8x384xf32> to vector<2x8x384xbf16>
    %c0_35 = arith.constant 0 : index
    %c0_36 = arith.constant 0 : index
    %c0_37 = arith.constant 0 : index
    %141 = vector.load %arg5[%c0_35, %c0_36, %c0_37] : memref<2x8x384xbf16, #tpu.memory_space<vmem>>, vector<2x8x384xbf16>
    tpu.vector_store %arg5[%c0_35, %c0_36, %c0_37], %140 {strides = array<i32>} : memref<2x8x384xbf16, #tpu.memory_space<vmem>>, vector<2x8x384xbf16>,
    return
  }
  func.func @transform_0(%arg0: i32) -> (i32, i32, i32) {
    %c0_i32 = arith.constant 0 : i32
    %c0_i32_0 = arith.constant 0 : i32
    %c0_i32_1 = arith.constant 0 : i32
    return %arg0, %c0_i32, %c0_i32_0 : i32, i32, i32
  }
  func.func @transform_1(%arg0: i32) -> (i32, i32) {
    %c0_i32 = arith.constant 0 : i32
    %c0_i32_0 = arith.constant 0 : i32
    %c0_i32_1 = arith.constant 0 : i32
    return %c0_i32, %c0_i32_0 : i32, i32
  }
  func.func @transform_2(%arg0: i32) -> (i32, i32) {
    %c0_i32 = arith.constant 0 : i32
    %c0_i32_0 = arith.constant 0 : i32
    %c0_i32_1 = arith.constant 0 : i32
    return %c0_i32, %c0_i32_0 : i32, i32
  }
  func.func @transform_3(%arg0: i32) -> (i32, i32) {
    %c0_i32 = arith.constant 0 : i32
    %c0_i32_0 = arith.constant 0 : i32
    %c0_i32_1 = arith.constant 0 : i32
    return %c0_i32, %c0_i32_0 : i32, i32
  }
  func.func @transform_4(%arg0: i32) -> (i32, i32, i32) {
    %c0_i32 = arith.constant 0 : i32
    %c0_i32_0 = arith.constant 0 : i32
    %c0_i32_1 = arith.constant 0 : i32
    return %arg0, %c0_i32, %c0_i32_0 : i32, i32, i32
  }
}

</mosaic_0001>

<llo_original>
// kernel: tpu_custom_call.1
$region0: #{tpu_custom_call.1}
  #allocation0 [shape = 'u32[]', space=smem, size = 0x4, offset = 0x4, fixed_abs, tag = 'smem constant byte address 0x4 - core index']
  #allocation1 [shape = 'u32[144,128]{1,0:T(1,128)}', space=vmem, size = 0x12000, scoped, tag = 'internal scratch']
  %s0 = inlined_call_operand.hbm [shape: bf16[2,8,384], index: 0, kind: input, shape index: {}]
  %s1 = inlined_call_operand.hbm [shape: bf16[384,1152], index: 1, kind: input, shape index: {}]
  %s2 = inlined_call_operand.hbm [shape: bf16[384,384], index: 2, kind: input, shape index: {}]
  %s3 = inlined_call_operand.vmem [shape: f32[1,384], index: 3, kind: input, shape index: {}]
  %s4 = inlined_call_operand.hbm [shape: bf16[2,8,384], index: 4, kind: output, shape index: {}]
  %s5 = sld [smem:[#allocation0]]
  $region38: #{tpu_custom_call.1} parent=0
    _
  %s7 = ssub.s32 1, %s5
  %s8 = scalar_select 0, %s7, %s5
  $region1: #{tpu_custom_call.1} parent=0
    #allocation2 [shape = 'u8[12288]{0}', space=vmem, size = 0x3000, scoped, tag = 'input window, operand 0, single buffered']
    #allocation3 [shape = 's32[1]{0}', space=sflag, size = 0x4, scoped, tag = 'scoped memory for tpu_custom_call.1']
    #allocation4 [shape = 's32[1]{0}', space=sflag, size = 0x4, scoped, tag = 'scoped memory for tpu_custom_call.1']
    #allocation5 [shape = 'u8[884736]{0}', space=vmem, size = 0xd8000, scoped, tag = 'input window, operand 1, single buffered']
    #allocation6 [shape = 's32[1]{0}', space=sflag, size = 0x4, scoped, tag = 'scoped memory for tpu_custom_call.1']
    #allocation7 [shape = 'u8[294912]{0}', space=vmem, size = 0x48000, scoped, tag = 'input window, operand 2, single buffered']
    #allocation8 [shape = 'u8[12288]{0}', space=vmem, size = 0x3000, scoped, tag = 'output window, operand 0, single buffered']
    %9 = vsyncpa [#allocation3], 0
    %10 = vsyncpa [#allocation6], 0
    %11 = vsyncpa [#allocation4], 0
    // Predicated region
    $region2: #{tpu_custom_call.1} parent=1 // pred_check
      _
    $region3: #{tpu_custom_call.1} parent=1 // pred_check_branch
      %13 = sbr.rel (0) target = $region5
    $region4: #{tpu_custom_call.1} parent=1 // pred_region
      %s15 = ssub.s32 384, 384
      %16 = vsyncadd [#allocation3], %s15
      %s17 = sshll.u32 [#allocation2], 4
      %s18 = int_to_ptr.vmem [resolvable:$true] %s17
      %23 = dma.hbm_to_vmem [thread:$0]  %s0, 384, %s18, [#allocation3], 192, 192, 12
    $region5: #{tpu_custom_call.1} parent=1 // pred_fallthru
      _
    // Predicated region
    $region6: #{tpu_custom_call.1} parent=1 // pred_check
      _
    $region7: #{tpu_custom_call.1} parent=1 // pred_check_branch
      %25 = sbr.rel (0) target = $region9
    $region8: #{tpu_custom_call.1} parent=1 // pred_region
      %s27 = ssub.s32 27648, 27648
      %28 = vsyncadd [#allocation6], %s27
      %s29 = sshll.u32 [#allocation5], 4
      %s30 = int_to_ptr.vmem [resolvable:$true] %s29
      %35 = dma.hbm_to_vmem [thread:$0]  %s1, 27648, %s30, [#allocation6], 576, 576, 36
    $region9: #{tpu_custom_call.1} parent=1 // pred_fallthru
      _
    // Predicated region
    $region10: #{tpu_custom_call.1} parent=1 // pred_check
      _
    $region11: #{tpu_custom_call.1} parent=1 // pred_check_branch
      %37 = sbr.rel (0) target = $region13
    $region12: #{tpu_custom_call.1} parent=1 // pred_region
      %s39 = ssub.s32 9216, 9216
      %40 = vsyncadd [#allocation6], %s39
      %s41 = sshll.u32 [#allocation7], 4
      %s42 = int_to_ptr.vmem [resolvable:$true] %s41
      %47 = dma.hbm_to_vmem [thread:$0]  %s2, 9216, %s42, [#allocation6], 192, 192, 12
    $region13: #{tpu_custom_call.1} parent=1 // pred_fallthru
      _
    // Predicated region
    $region14: #{tpu_custom_call.1} parent=1 // pred_check
      _
    $region15: #{tpu_custom_call.1} parent=1 // pred_check_branch
      %49 = sbr.rel (0) target = $region17
    $region16: #{tpu_custom_call.1} parent=1 // pred_region
      _
    $region17: #{tpu_custom_call.1} parent=1 // pred_fallthru
      _
    // Predicated region
    $region18: #{tpu_custom_call.1} parent=1 // pred_check
      _
    $region19: #{tpu_custom_call.1} parent=1 // pred_check_branch
      %51 = sbr.rel (0) target = $region21
    $region20: #{tpu_custom_call.1} parent=1 // pred_region
      %52 = dma.done [#allocation3], 384
    $region21: #{tpu_custom_call.1} parent=1 // pred_fallthru
      _
    // Predicated region
    $region22: #{tpu_custom_call.1} parent=1 // pred_check
      _
    $region23: #{tpu_custom_call.1} parent=1 // pred_check_branch
      %54 = sbr.rel (0) target = $region25
    $region24: #{tpu_custom_call.1} parent=1 // pred_region
      %55 = dma.done [#allocation6], 27648
    $region25: #{tpu_custom_call.1} parent=1 // pred_fallthru
      _
    // Predicated region
    $region26: #{tpu_custom_call.1} parent=1 // pred_check
      _
    $region27: #{tpu_custom_call.1} parent=1 // pred_check_branch
      %57 = sbr.rel (0) target = $region29
    $region28: #{tpu_custom_call.1} parent=1 // pred_region
      %58 = dma.done [#allocation6], 9216
    $region29: #{tpu_custom_call.1} parent=1 // pred_fallthru
      _
    %v60 = vld [vmem:[#allocation2] sm:$0xff]
    %v61 = vld [vmem:[#allocation2 + $0x8] sm:$0xf]
    %v62 = vld [vmem:[#allocation2 + $0xc] sm:$0xff]
    %v63 = vld [vmem:[#allocation2 + $0x14] sm:$0xf]
    %v64 = vld [vmem:[#allocation5] sm:$0xff]
    %v65 = vld [vmem:[#allocation5 + $0x8] sm:$0xff]
    %v66 = vld [vmem:[#allocation5 + $0x10] sm:$0xff]
    %v67 = vld [vmem:[#allocation5 + $0x18] sm:$0xff]
    %v68 = vld [vmem:[#allocation5 + $0x20] sm:$0xf]
    %v69 = vld [vmem:[#allocation5 + $0x24] sm:$0xff]
    %v70 = vld [vmem:[#allocation5 + $0x2c] sm:$0xff]
    %v71 = vld [vmem:[#allocation5 + $0x34] sm:$0xff]
    %v72 = vld [vmem:[#allocation5 + $0x3c] sm:$0xff]
    %v73 = vld [vmem:[#allocation5 + $0x44] sm:$0xf]
    %v74 = vld [vmem:[#allocation5 + $0x48] sm:$0xff]
    %v75 = vld [vmem:[#allocation5 + $0x50] sm:$0xff]
    %v76 = vld [vmem:[#allocation5 + $0x58] sm:$0xff]
    %v77 = vld [vmem:[#allocation5 + $0x60] sm:$0xff]
    %v78 = vld [vmem:[#allocation5 + $0x68] sm:$0xf]
    %v79 = vld [vmem:[#allocation5 + $0x6c] sm:$0xff]
    %v80 = vld [vmem:[#allocation5 + $0x74] sm:$0xff]
    %v81 = vld [vmem:[#allocation5 + $0x7c] sm:$0xff]
    %v82 = vld [vmem:[#allocation5 + $0x84] sm:$0xff]
    %v83 = vld [vmem:[#allocation5 + $0x8c] sm:$0xf]
    %v84 = vld [vmem:[#allocation5 + $0x90] sm:$0xff]
    %v85 = vld [vmem:[#allocation5 + $0x98] sm:$0xff]
    %v86 = vld [vmem:[#allocation5 + $0xa0] sm:$0xff]
    %v87 = vld [vmem:[#allocation5 + $0xa8] sm:$0xff]
    %v88 = vld [vmem:[#allocation5 + $0xb0] sm:$0xf]
    %v89 = vld [vmem:[#allocation5 + $0xb4] sm:$0xff]
    %v90 = vld [vmem:[#allocation5 + $0xbc] sm:$0xff]
    %v91 = vld [vmem:[#allocation5 + $0xc4] sm:$0xff]
    %v92 = vld [vmem:[#allocation5 + $0xcc] sm:$0xff]
    %v93 = vld [vmem:[#allocation5 + $0xd4] sm:$0xf]
    %v94 = vld [vmem:[#allocation5 + $0xd8] sm:$0xff]
    %v95 = vld [vmem:[#allocation5 + $0xe0] sm:$0xff]
    %v96 = vld [vmem:[#allocation5 + $0xe8] sm:$0xff]
    %v97 = vld [vmem:[#allocation5 + $0xf0] sm:$0xff]
    %v98 = vld [vmem:[#allocation5 + $0xf8] sm:$0xf]
    %v99 = vld [vmem:[#allocation5 + $0xfc] sm:$0xff]
    %v100 = vld [vmem:[#allocation5 + $0x104] sm:$0xff]
    %v101 = vld [vmem:[#allocation5 + $0x10c] sm:$0xff]
    %v102 = vld [vmem:[#allocation5 + $0x114] sm:$0xff]
    %v103 = vld [vmem:[#allocation5 + $0x11c] sm:$0xf]
    %v104 = vld [vmem:[#allocation5 + $0x120] sm:$0xff]
    %v105 = vld [vmem:[#allocation5 + $0x128] sm:$0xff]
    %v106 = vld [vmem:[#allocation5 + $0x130] sm:$0xff]
    %v107 = vld [vmem:[#allocation5 + $0x138] sm:$0xff]
    %v108 = vld [vmem:[#allocation5 + $0x140] sm:$0xf]
    %v109 = vld [vmem:[#allocation5 + $0x144] sm:$0xff]
    %v110 = vld [vmem:[#allocation5 + $0x14c] sm:$0xff]
    %v111 = vld [vmem:[#allocation5 + $0x154] sm:$0xff]
    %v112 = vld [vmem:[#allocation5 + $0x15c] sm:$0xff]
    %v113 = vld [vmem:[#allocation5 + $0x164] sm:$0xf]
    %v114 = vld [vmem:[#allocation5 + $0x168] sm:$0xff]
    %v115 = vld [vmem:[#allocation5 + $0x170] sm:$0xff]
    %v116 = vld [vmem:[#allocation5 + $0x178] sm:$0xff]
    %v117 = vld [vmem:[#allocation5 + $0x180] sm:$0xff]
    %v118 = vld [vmem:[#allocation5 + $0x188] sm:$0xf]
    %v119 = vld [vmem:[#allocation5 + $0x18c] sm:$0xff]
    %v120 = vld [vmem:[#allocation5 + $0x194] sm:$0xff]
    %v121 = vld [vmem:[#allocation5 + $0x19c] sm:$0xff]
    %v122 = vld [vmem:[#allocation5 + $0x1a4] sm:$0xff]
    %v123 = vld [vmem:[#allocation5 + $0x1ac] sm:$0xf]
    %v124 = vld [vmem:[#allocation5 + $0x1b0] sm:$0xff]
    %v125 = vld [vmem:[#allocation5 + $0x1b8] sm:$0xff]
    %v126 = vld [vmem:[#allocation5 + $0x1c0] sm:$0xff]
    %v127 = vld [vmem:[#allocation5 + $0x1c8] sm:$0xff]
    %v128 = vld [vmem:[#allocation5 + $0x1d0] sm:$0xf]
    %v129 = vld [vmem:[#allocation5 + $0x1d4] sm:$0xff]
    %v130 = vld [vmem:[#allocation5 + $0x1dc] sm:$0xff]
    %v131 = vld [vmem:[#allocation5 + $0x1e4] sm:$0xff]
    %v132 = vld [vmem:[#allocation5 + $0x1ec] sm:$0xff]
    %v133 = vld [vmem:[#allocation5 + $0x1f4] sm:$0xf]
    %v134 = vld [vmem:[#allocation5 + $0x1f8] sm:$0xff]
    %v135 = vld [vmem:[#allocation5 + $0x200] sm:$0xff]
    %v136 = vld [vmem:[#allocation5 + $0x208] sm:$0xff]
    %v137 = vld [vmem:[#allocation5 + $0x210] sm:$0xff]
    %v138 = vld [vmem:[#allocation5 + $0x218] sm:$0xf]
    %v139 = vld [vmem:[#allocation5 + $0x21c] sm:$0xff]
    %v140 = vld [vmem:[#allocation5 + $0x224] sm:$0xff]
    %v141 = vld [vmem:[#allocation5 + $0x22c] sm:$0xff]
    %v142 = vld [vmem:[#allocation5 + $0x234] sm:$0xff]
    %v143 = vld [vmem:[#allocation5 + $0x23c] sm:$0xf]
    %v144 = vld [vmem:[#allocation5 + $0x240] sm:$0xff]
    %v145 = vld [vmem:[#allocation5 + $0x248] sm:$0xff]
    %v146 = vld [vmem:[#allocation5 + $0x250] sm:$0xff]
    %v147 = vld [vmem:[#allocation5 + $0x258] sm:$0xff]
    %v148 = vld [vmem:[#allocation5 + $0x260] sm:$0xf]
    %v149 = vld [vmem:[#allocation5 + $0x264] sm:$0xff]
    %v150 = vld [vmem:[#allocation5 + $0x26c] sm:$0xff]
    %v151 = vld [vmem:[#allocation5 + $0x274] sm:$0xff]
    %v152 = vld [vmem:[#allocation5 + $0x27c] sm:$0xff]
    %v153 = vld [vmem:[#allocation5 + $0x284] sm:$0xf]
    %v154 = vld [vmem:[#allocation5 + $0x288] sm:$0xff]
    %v155 = vld [vmem:[#allocation5 + $0x290] sm:$0xff]
    %v156 = vld [vmem:[#allocation5 + $0x298] sm:$0xff]
    %v157 = vld [vmem:[#allocation5 + $0x2a0] sm:$0xff]
    %v158 = vld [vmem:[#allocation5 + $0x2a8] sm:$0xf]
    %v159 = vld [vmem:[#allocation5 + $0x2ac] sm:$0xff]
    %v160 = vld [vmem:[#allocation5 + $0x2b4] sm:$0xff]
    %v161 = vld [vmem:[#allocation5 + $0x2bc] sm:$0xff]
    %v162 = vld [vmem:[#allocation5 + $0x2c4] sm:$0xff]
    %v163 = vld [vmem:[#allocation5 + $0x2cc] sm:$0xf]
    %v164 = vld [vmem:[#allocation5 + $0x2d0] sm:$0xff]
    %v165 = vld [vmem:[#allocation5 + $0x2d8] sm:$0xff]
    %v166 = vld [vmem:[#allocation5 + $0x2e0] sm:$0xff]
    %v167 = vld [vmem:[#allocation5 + $0x2e8] sm:$0xff]
    %v168 = vld [vmem:[#allocation5 + $0x2f0] sm:$0xf]
    %v169 = vld [vmem:[#allocation5 + $0x2f4] sm:$0xff]
    %v170 = vld [vmem:[#allocation5 + $0x2fc] sm:$0xff]
    %v171 = vld [vmem:[#allocation5 + $0x304] sm:$0xff]
    %v172 = vld [vmem:[#allocation5 + $0x30c] sm:$0xff]
    %v173 = vld [vmem:[#allocation5 + $0x314] sm:$0xf]
    %v174 = vld [vmem:[#allocation5 + $0x318] sm:$0xff]
    %v175 = vld [vmem:[#allocation5 + $0x320] sm:$0xff]
    %v176 = vld [vmem:[#allocation5 + $0x328] sm:$0xff]
    %v177 = vld [vmem:[#allocation5 + $0x330] sm:$0xff]
    %v178 = vld [vmem:[#allocation5 + $0x338] sm:$0xf]
    %v179 = vld [vmem:[#allocation5 + $0x33c] sm:$0xff]
    %v180 = vld [vmem:[#allocation5 + $0x344] sm:$0xff]
    %v181 = vld [vmem:[#allocation5 + $0x34c] sm:$0xff]
    %v182 = vld [vmem:[#allocation5 + $0x354] sm:$0xff]
    %v183 = vld [vmem:[#allocation5 + $0x35c] sm:$0xf]
    %v184 = vld [vmem:[#allocation5 + $0x360] sm:$0xff]
    %v185 = vld [vmem:[#allocation5 + $0x368] sm:$0xff]
    %v186 = vld [vmem:[#allocation5 + $0x370] sm:$0xff]
    %v187 = vld [vmem:[#allocation5 + $0x378] sm:$0xff]
    %v188 = vld [vmem:[#allocation5 + $0x380] sm:$0xf]
    %v189 = vld [vmem:[#allocation5 + $0x384] sm:$0xff]
    %v190 = vld [vmem:[#allocation5 + $0x38c] sm:$0xff]
    %v191 = vld [vmem:[#allocation5 + $0x394] sm:$0xff]
    %v192 = vld [vmem:[#allocation5 + $0x39c] sm:$0xff]
    %v193 = vld [vmem:[#allocation5 + $0x3a4] sm:$0xf]
    %v194 = vld [vmem:[#allocation5 + $0x3a8] sm:$0xff]
    %v195 = vld [vmem:[#allocation5 + $0x3b0] sm:$0xff]
    %v196 = vld [vmem:[#allocation5 + $0x3b8] sm:$0xff]
    %v197 = vld [vmem:[#allocation5 + $0x3c0] sm:$0xff]
    %v198 = vld [vmem:[#allocation5 + $0x3c8] sm:$0xf]
    %v199 = vld [vmem:[#allocation5 + $0x3cc] sm:$0xff]
    %v200 = vld [vmem:[#allocation5 + $0x3d4] sm:$0xff]
    %v201 = vld [vmem:[#allocation5 + $0x3dc] sm:$0xff]
    %v202 = vld [vmem:[#allocation5 + $0x3e4] sm:$0xff]
    %v203 = vld [vmem:[#allocation5 + $0x3ec] sm:$0xf]
    %v204 = vld [vmem:[#allocation5 + $0x3f0] sm:$0xff]
    %v205 = vld [vmem:[#allocation5 + $0x3f8] sm:$0xff]
    %v206 = vld [vmem:[#allocation5 + $0x400] sm:$0xff]
    %v207 = vld [vmem:[#allocation5 + $0x408] sm:$0xff]
    %v208 = vld [vmem:[#allocation5 + $0x410] sm:$0xf]
    %v209 = vld [vmem:[#allocation5 + $0x414] sm:$0xff]
    %v210 = vld [vmem:[#allocation5 + $0x41c] sm:$0xff]
    %v211 = vld [vmem:[#allocation5 + $0x424] sm:$0xff]
    %v212 = vld [vmem:[#allocation5 + $0x42c] sm:$0xff]
    %v213 = vld [vmem:[#allocation5 + $0x434] sm:$0xf]
    %v214 = vld [vmem:[#allocation5 + $0x438] sm:$0xff]
    %v215 = vld [vmem:[#allocation5 + $0x440] sm:$0xff]
    %v216 = vld [vmem:[#allocation5 + $0x448] sm:$0xff]
    %v217 = vld [vmem:[#allocation5 + $0x450] sm:$0xff]
    %v218 = vld [vmem:[#allocation5 + $0x458] sm:$0xf]
    %v219 = vld [vmem:[#allocation5 + $0x45c] sm:$0xff]
    %v220 = vld [vmem:[#allocation5 + $0x464] sm:$0xff]
    %v221 = vld [vmem:[#allocation5 + $0x46c] sm:$0xff]
    %v222 = vld [vmem:[#allocation5 + $0x474] sm:$0xff]
    %v223 = vld [vmem:[#allocation5 + $0x47c] sm:$0xf]
    %v224 = vld [vmem:[#allocation5 + $0x480] sm:$0xff]
    %v225 = vld [vmem:[#allocation5 + $0x488] sm:$0xff]
    %v226 = vld [vmem:[#allocation5 + $0x490] sm:$0xff]
    %v227 = vld [vmem:[#allocation5 + $0x498] sm:$0xff]
    %v228 = vld [vmem:[#allocation5 + $0x4a0] sm:$0xf]
    %v229 = vld [vmem:[#allocation5 + $0x4a4] sm:$0xff]
    %v230 = vld [vmem:[#allocation5 + $0x4ac] sm:$0xff]
    %v231 = vld [vmem:[#allocation5 + $0x4b4] sm:$0xff]
    %v232 = vld [vmem:[#allocation5 + $0x4bc] sm:$0xff]
    %v233 = vld [vmem:[#allocation5 + $0x4c4] sm:$0xf]
    %v234 = vld [vmem:[#allocation5 + $0x4c8] sm:$0xff]
    %v235 = vld [vmem:[#allocation5 + $0x4d0] sm:$0xff]
    %v236 = vld [vmem:[#allocation5 + $0x4d8] sm:$0xff]
    %v237 = vld [vmem:[#allocation5 + $0x4e0] sm:$0xff]
    %v238 = vld [vmem:[#allocation5 + $0x4e8] sm:$0xf]
    %v239 = vld [vmem:[#allocation5 + $0x4ec] sm:$0xff]
    %v240 = vld [vmem:[#allocation5 + $0x4f4] sm:$0xff]
    %v241 = vld [vmem:[#allocation5 + $0x4fc] sm:$0xff]
    %v242 = vld [vmem:[#allocation5 + $0x504] sm:$0xff]
    %v243 = vld [vmem:[#allocation5 + $0x50c] sm:$0xf]
    %v244 = vld [vmem:[#allocation5 + $0x510] sm:$0xff]
    %v245 = vld [vmem:[#allocation5 + $0x518] sm:$0xff]
    %v246 = vld [vmem:[#allocation5 + $0x520] sm:$0xff]
    %v247 = vld [vmem:[#allocation5 + $0x528] sm:$0xff]
    %v248 = vld [vmem:[#allocation5 + $0x530] sm:$0xf]
    %v249 = vld [vmem:[#allocation5 + $0x534] sm:$0xff]
    %v250 = vld [vmem:[#allocation5 + $0x53c] sm:$0xff]
    %v251 = vld [vmem:[#allocation5 + $0x544] sm:$0xff]
    %v252 = vld [vmem:[#allocation5 + $0x54c] sm:$0xff]
    %v253 = vld [vmem:[#allocation5 + $0x554] sm:$0xf]
    %v254 = vld [vmem:[#allocation5 + $0x558] sm:$0xff]
    %v255 = vld [vmem:[#allocation5 + $0x560] sm:$0xff]
    %v256 = vld [vmem:[#allocation5 + $0x568] sm:$0xff]
    %v257 = vld [vmem:[#allocation5 + $0x570] sm:$0xff]
    %v258 = vld [vmem:[#allocation5 + $0x578] sm:$0xf]
    %v259 = vld [vmem:[#allocation5 + $0x57c] sm:$0xff]
    %v260 = vld [vmem:[#allocation5 + $0x584] sm:$0xff]
    %v261 = vld [vmem:[#allocation5 + $0x58c] sm:$0xff]
    %v262 = vld [vmem:[#allocation5 + $0x594] sm:$0xff]
    %v263 = vld [vmem:[#allocation5 + $0x59c] sm:$0xf]
    %v264 = vld [vmem:[#allocation5 + $0x5a0] sm:$0xff]
    %v265 = vld [vmem:[#allocation5 + $0x5a8] sm:$0xff]
    %v266 = vld [vmem:[#allocation5 + $0x5b0] sm:$0xff]
    %v267 = vld [vmem:[#allocation5 + $0x5b8] sm:$0xff]
    %v268 = vld [vmem:[#allocation5 + $0x5c0] sm:$0xf]
    %v269 = vld [vmem:[#allocation5 + $0x5c4] sm:$0xff]
    %v270 = vld [vmem:[#allocation5 + $0x5cc] sm:$0xff]
    %v271 = vld [vmem:[#allocation5 + $0x5d4] sm:$0xff]
    %v272 = vld [vmem:[#allocation5 + $0x5dc] sm:$0xff]
    %v273 = vld [vmem:[#allocation5 + $0x5e4] sm:$0xf]
    %v274 = vld [vmem:[#allocation5 + $0x5e8] sm:$0xff]
    %v275 = vld [vmem:[#allocation5 + $0x5f0] sm:$0xff]
    %v276 = vld [vmem:[#allocation5 + $0x5f8] sm:$0xff]
    %v277 = vld [vmem:[#allocation5 + $0x600] sm:$0xff]
    %v278 = vld [vmem:[#allocation5 + $0x608] sm:$0xf]
    %v279 = vld [vmem:[#allocation5 + $0x60c] sm:$0xff]
    %v280 = vld [vmem:[#allocation5 + $0x614] sm:$0xff]
    %v281 = vld [vmem:[#allocation5 + $0x61c] sm:$0xff]
    %v282 = vld [vmem:[#allocation5 + $0x624] sm:$0xff]
    %v283 = vld [vmem:[#allocation5 + $0x62c] sm:$0xf]
    %v284 = vld [vmem:[#allocation5 + $0x630] sm:$0xff]
    %v285 = vld [vmem:[#allocation5 + $0x638] sm:$0xff]
    %v286 = vld [vmem:[#allocation5 + $0x640] sm:$0xff]
    %v287 = vld [vmem:[#allocation5 + $0x648] sm:$0xff]
    %v288 = vld [vmem:[#allocation5 + $0x650] sm:$0xf]
    %v289 = vld [vmem:[#allocation5 + $0x654] sm:$0xff]
    %v290 = vld [vmem:[#allocation5 + $0x65c] sm:$0xff]
    %v291 = vld [vmem:[#allocation5 + $0x664] sm:$0xff]
    %v292 = vld [vmem:[#allocation5 + $0x66c] sm:$0xff]
    %v293 = vld [vmem:[#allocation5 + $0x674] sm:$0xf]
    %v294 = vld [vmem:[#allocation5 + $0x678] sm:$0xff]
    %v295 = vld [vmem:[#allocation5 + $0x680] sm:$0xff]
    %v296 = vld [vmem:[#allocation5 + $0x688] sm:$0xff]
    %v297 = vld [vmem:[#allocation5 + $0x690] sm:$0xff]
    %v298 = vld [vmem:[#allocation5 + $0x698] sm:$0xf]
    %v299 = vld [vmem:[#allocation5 + $0x69c] sm:$0xff]
    %v300 = vld [vmem:[#allocation5 + $0x6a4] sm:$0xff]
    %v301 = vld [vmem:[#allocation5 + $0x6ac] sm:$0xff]
    %v302 = vld [vmem:[#allocation5 + $0x6b4] sm:$0xff]
    %v303 = vld [vmem:[#allocation5 + $0x6bc] sm:$0xf]
    %v308 = vunpack.c.l.b16 %v60
    %v309 = vunpack.c.h.b16 %v60
    %v310 = vunpack.c.l.b16 %v61
    %v311 = vunpack.c.l.b16 %v62
    %v312 = vunpack.c.h.b16 %v62
    %v313 = vunpack.c.l.b16 %v63
    %v314 = vpack.c.b16 %v311, %v308
    %v315 = vpack.c.b16 %v312, %v309
    %v316 = vpack.c.b16 %v313, %v310
    %v560 = vunpack.c.l.b16 %v64
    %v561 = vunpack.c.h.b16 %v64
    %v562 = vunpack.c.l.b16 %v65
    %v563 = vunpack.c.h.b16 %v65
    %v564 = vunpack.c.l.b16 %v66
    %v565 = vunpack.c.h.b16 %v66
    %v566 = vunpack.c.l.b16 %v67
    %v567 = vunpack.c.h.b16 %v67
    %v568 = vunpack.c.l.b16 %v68
    %v569 = vunpack.c.l.b16 %v69
    %v570 = vunpack.c.h.b16 %v69
    %v571 = vunpack.c.l.b16 %v70
    %v572 = vunpack.c.h.b16 %v70
    %v573 = vunpack.c.l.b16 %v71
    %v574 = vunpack.c.h.b16 %v71
    %v575 = vunpack.c.l.b16 %v72
    %v576 = vunpack.c.h.b16 %v72
    %v577 = vunpack.c.l.b16 %v73
    %v578 = vunpack.c.l.b16 %v74
    %v579 = vunpack.c.h.b16 %v74
    %v580 = vunpack.c.l.b16 %v75
    %v581 = vunpack.c.h.b16 %v75
    %v582 = vunpack.c.l.b16 %v76
    %v583 = vunpack.c.h.b16 %v76
    %v584 = vunpack.c.l.b16 %v77
    %v585 = vunpack.c.h.b16 %v77
    %v586 = vunpack.c.l.b16 %v78
    %v587 = vunpack.c.l.b16 %v79
    %v588 = vunpack.c.h.b16 %v79
    %v589 = vunpack.c.l.b16 %v80
    %v590 = vunpack.c.h.b16 %v80
    %v591 = vunpack.c.l.b16 %v81
    %v592 = vunpack.c.h.b16 %v81
    %v593 = vunpack.c.l.b16 %v82
    %v594 = vunpack.c.h.b16 %v82
    %v595 = vunpack.c.l.b16 %v83
    %v596 = vunpack.c.l.b16 %v84
    %v597 = vunpack.c.h.b16 %v84
    %v598 = vunpack.c.l.b16 %v85
    %v599 = vunpack.c.h.b16 %v85
    %v600 = vunpack.c.l.b16 %v86
    %v601 = vunpack.c.h.b16 %v86
    %v602 = vunpack.c.l.b16 %v87
    %v603 = vunpack.c.h.b16 %v87
    %v604 = vunpack.c.l.b16 %v88
    %v605 = vunpack.c.l.b16 %v89
    %v606 = vunpack.c.h.b16 %v89
    %v607 = vunpack.c.l.b16 %v90
    %v608 = vunpack.c.h.b16 %v90
    %v609 = vunpack.c.l.b16 %v91
    %v610 = vunpack.c.h.b16 %v91
    %v611 = vunpack.c.l.b16 %v92
    %v612 = vunpack.c.h.b16 %v92
    %v613 = vunpack.c.l.b16 %v93
    %v614 = vunpack.c.l.b16 %v94
    %v615 = vunpack.c.h.b16 %v94
    %v616 = vunpack.c.l.b16 %v95
    %v617 = vunpack.c.h.b16 %v95
    %v618 = vunpack.c.l.b16 %v96
    %v619 = vunpack.c.h.b16 %v96
    %v620 = vunpack.c.l.b16 %v97
    %v621 = vunpack.c.h.b16 %v97
    %v622 = vunpack.c.l.b16 %v98
    %v623 = vunpack.c.l.b16 %v99
    %v624 = vunpack.c.h.b16 %v99
    %v625 = vunpack.c.l.b16 %v100
    %v626 = vunpack.c.h.b16 %v100
    %v627 = vunpack.c.l.b16 %v101
    %v628 = vunpack.c.h.b16 %v101
    %v629 = vunpack.c.l.b16 %v102
    %v630 = vunpack.c.h.b16 %v102
    %v631 = vunpack.c.l.b16 %v103
    %v632 = vunpack.c.l.b16 %v104
    %v633 = vunpack.c.h.b16 %v104
    %v634 = vunpack.c.l.b16 %v105
    %v635 = vunpack.c.h.b16 %v105
    %v636 = vunpack.c.l.b16 %v106
    %v637 = vunpack.c.h.b16 %v106
    %v638 = vunpack.c.l.b16 %v107
    %v639 = vunpack.c.h.b16 %v107
    %v640 = vunpack.c.l.b16 %v108
    %v641 = vunpack.c.l.b16 %v109
    %v642 = vunpack.c.h.b16 %v109
    %v643 = vunpack.c.l.b16 %v110
    %v644 = vunpack.c.h.b16 %v110
    %v645 = vunpack.c.l.b16 %v111
    %v646 = vunpack.c.h.b16 %v111
    %v647 = vunpack.c.l.b16 %v112
    %v648 = vunpack.c.h.b16 %v112
    %v649 = vunpack.c.l.b16 %v113
    %v650 = vunpack.c.l.b16 %v114
    %v651 = vunpack.c.h.b16 %v114
    %v652 = vunpack.c.l.b16 %v115
    %v653 = vunpack.c.h.b16 %v115
    %v654 = vunpack.c.l.b16 %v116
    %v655 = vunpack.c.h.b16 %v116
    %v656 = vunpack.c.l.b16 %v117
    %v657 = vunpack.c.h.b16 %v117
    %v658 = vunpack.c.l.b16 %v118
    %v659 = vunpack.c.l.b16 %v119
    %v660 = vunpack.c.h.b16 %v119
    %v661 = vunpack.c.l.b16 %v120
    %v662 = vunpack.c.h.b16 %v120
    %v663 = vunpack.c.l.b16 %v121
    %v664 = vunpack.c.h.b16 %v121
    %v665 = vunpack.c.l.b16 %v122
    %v666 = vunpack.c.h.b16 %v122
    %v667 = vunpack.c.l.b16 %v123
    %v668 = vunpack.c.l.b16 %v124
    %v669 = vunpack.c.h.b16 %v124
    %v670 = vunpack.c.l.b16 %v125
    %v671 = vunpack.c.h.b16 %v125
    %v672 = vunpack.c.l.b16 %v126
    %v673 = vunpack.c.h.b16 %v126
    %v674 = vunpack.c.l.b16 %v127
    %v675 = vunpack.c.h.b16 %v127
    %v676 = vunpack.c.l.b16 %v128
    %v677 = vunpack.c.l.b16 %v129
    %v678 = vunpack.c.h.b16 %v129
    %v679 = vunpack.c.l.b16 %v130
    %v680 = vunpack.c.h.b16 %v130
    %v681 = vunpack.c.l.b16 %v131
    %v682 = vunpack.c.h.b16 %v131
    %v683 = vunpack.c.l.b16 %v132
    %v684 = vunpack.c.h.b16 %v132
    %v685 = vunpack.c.l.b16 %v133
    %v686 = vunpack.c.l.b16 %v134
    %v687 = vunpack.c.h.b16 %v134
    %v688 = vunpack.c.l.b16 %v135
    %v689 = vunpack.c.h.b16 %v135
    %v690 = vunpack.c.l.b16 %v136
    %v691 = vunpack.c.h.b16 %v136
    %v692 = vunpack.c.l.b16 %v137
    %v693 = vunpack.c.h.b16 %v137
    %v694 = vunpack.c.l.b16 %v138
    %v695 = vunpack.c.l.b16 %v139
    %v696 = vunpack.c.h.b16 %v139
    %v697 = vunpack.c.l.b16 %v140
    %v698 = vunpack.c.h.b16 %v140
    %v699 = vunpack.c.l.b16 %v141
    %v700 = vunpack.c.h.b16 %v141
    %v701 = vunpack.c.l.b16 %v142
    %v702 = vunpack.c.h.b16 %v142
    %v703 = vunpack.c.l.b16 %v143
    %v704 = vunpack.c.l.b16 %v144
    %v705 = vunpack.c.h.b16 %v144
    %v706 = vunpack.c.l.b16 %v145
    %v707 = vunpack.c.h.b16 %v145
    %v708 = vunpack.c.l.b16 %v146
    %v709 = vunpack.c.h.b16 %v146
    %v710 = vunpack.c.l.b16 %v147
    %v711 = vunpack.c.h.b16 %v147
    %v712 = vunpack.c.l.b16 %v148
    %v713 = vunpack.c.l.b16 %v149
    %v714 = vunpack.c.h.b16 %v149
    %v715 = vunpack.c.l.b16 %v150
    %v716 = vunpack.c.h.b16 %v150
    %v717 = vunpack.c.l.b16 %v151
    %v718 = vunpack.c.h.b16 %v151
    %v719 = vunpack.c.l.b16 %v152
    %v720 = vunpack.c.h.b16 %v152
    %v721 = vunpack.c.l.b16 %v153
    %v722 = vunpack.c.l.b16 %v154
    %v723 = vunpack.c.h.b16 %v154
    %v724 = vunpack.c.l.b16 %v155
    %v725 = vunpack.c.h.b16 %v155
    %v726 = vunpack.c.l.b16 %v156
    %v727 = vunpack.c.h.b16 %v156
    %v728 = vunpack.c.l.b16 %v157
    %v729 = vunpack.c.h.b16 %v157
    %v730 = vunpack.c.l.b16 %v158
    %v731 = vunpack.c.l.b16 %v159
    %v732 = vunpack.c.h.b16 %v159
    %v733 = vunpack.c.l.b16 %v160
    %v734 = vunpack.c.h.b16 %v160
    %v735 = vunpack.c.l.b16 %v161
    %v736 = vunpack.c.h.b16 %v161
    %v737 = vunpack.c.l.b16 %v162
    %v738 = vunpack.c.h.b16 %v162
    %v739 = vunpack.c.l.b16 %v163
    %v740 = vunpack.c.l.b16 %v164
    %v741 = vunpack.c.h.b16 %v164
    %v742 = vunpack.c.l.b16 %v165
    %v743 = vunpack.c.h.b16 %v165
    %v744 = vunpack.c.l.b16 %v166
    %v745 = vunpack.c.h.b16 %v166
    %v746 = vunpack.c.l.b16 %v167
    %v747 = vunpack.c.h.b16 %v167
    %v748 = vunpack.c.l.b16 %v168
    %v749 = vunpack.c.l.b16 %v169
    %v750 = vunpack.c.h.b16 %v169
    %v751 = vunpack.c.l.b16 %v170
    %v752 = vunpack.c.h.b16 %v170
    %v753 = vunpack.c.l.b16 %v171
    %v754 = vunpack.c.h.b16 %v171
    %v755 = vunpack.c.l.b16 %v172
    %v756 = vunpack.c.h.b16 %v172
    %v757 = vunpack.c.l.b16 %v173
    %v758 = vunpack.c.l.b16 %v174
    %v759 = vunpack.c.h.b16 %v174
    %v760 = vunpack.c.l.b16 %v175
    %v761 = vunpack.c.h.b16 %v175
    %v762 = vunpack.c.l.b16 %v176
    %v763 = vunpack.c.h.b16 %v176
    %v764 = vunpack.c.l.b16 %v177
    %v765 = vunpack.c.h.b16 %v177
    %v766 = vunpack.c.l.b16 %v178
    %v767 = vunpack.c.l.b16 %v179
    %v768 = vunpack.c.h.b16 %v179
    %v769 = vunpack.c.l.b16 %v180
    %v770 = vunpack.c.h.b16 %v180
    %v771 = vunpack.c.l.b16 %v181
    %v772 = vunpack.c.h.b16 %v181
    %v773 = vunpack.c.l.b16 %v182
    %v774 = vunpack.c.h.b16 %v182
    %v775 = vunpack.c.l.b16 %v183
    %v776 = vunpack.c.l.b16 %v184
    %v777 = vunpack.c.h.b16 %v184
    %v778 = vunpack.c.l.b16 %v185
    %v779 = vunpack.c.h.b16 %v185
    %v780 = vunpack.c.l.b16 %v186
    %v781 = vunpack.c.h.b16 %v186
    %v782 = vunpack.c.l.b16 %v187
    %v783 = vunpack.c.h.b16 %v187
    %v784 = vunpack.c.l.b16 %v188
    %v785 = vunpack.c.l.b16 %v189
    %v786 = vunpack.c.h.b16 %v189
    %v787 = vunpack.c.l.b16 %v190
    %v788 = vunpack.c.h.b16 %v190
    %v789 = vunpack.c.l.b16 %v191
    %v790 = vunpack.c.h.b16 %v191
    %v791 = vunpack.c.l.b16 %v192
    %v792 = vunpack.c.h.b16 %v192
    %v793 = vunpack.c.l.b16 %v193
    %v794 = vunpack.c.l.b16 %v194
    %v795 = vunpack.c.h.b16 %v194
    %v796 = vunpack.c.l.b16 %v195
    %v797 = vunpack.c.h.b16 %v195
    %v798 = vunpack.c.l.b16 %v196
    %v799 = vunpack.c.h.b16 %v196
    %v800 = vunpack.c.l.b16 %v197
    %v801 = vunpack.c.h.b16 %v197
    %v802 = vunpack.c.l.b16 %v198
    %v803 = vunpack.c.l.b16 %v199
    %v804 = vunpack.c.h.b16 %v199
    %v805 = vunpack.c.l.b16 %v200
    %v806 = vunpack.c.h.b16 %v200
    %v807 = vunpack.c.l.b16 %v201
    %v808 = vunpack.c.h.b16 %v201
    %v809 = vunpack.c.l.b16 %v202
    %v810 = vunpack.c.h.b16 %v202
    %v811 = vunpack.c.l.b16 %v203
    %v812 = vunpack.c.l.b16 %v204
    %v813 = vunpack.c.h.b16 %v204
    %v814 = vunpack.c.l.b16 %v205
    %v815 = vunpack.c.h.b16 %v205
    %v816 = vunpack.c.l.b16 %v206
    %v817 = vunpack.c.h.b16 %v206
    %v818 = vunpack.c.l.b16 %v207
    %v819 = vunpack.c.h.b16 %v207
    %v820 = vunpack.c.l.b16 %v208
    %v821 = vunpack.c.l.b16 %v209
    %v822 = vunpack.c.h.b16 %v209
    %v823 = vunpack.c.l.b16 %v210
    %v824 = vunpack.c.h.b16 %v210
    %v825 = vunpack.c.l.b16 %v211
    %v826 = vunpack.c.h.b16 %v211
    %v827 = vunpack.c.l.b16 %v212
    %v828 = vunpack.c.h.b16 %v212
    %v829 = vunpack.c.l.b16 %v213
    %v830 = vunpack.c.l.b16 %v214
    %v831 = vunpack.c.h.b16 %v214
    %v832 = vunpack.c.l.b16 %v215
    %v833 = vunpack.c.h.b16 %v215
    %v834 = vunpack.c.l.b16 %v216
    %v835 = vunpack.c.h.b16 %v216
    %v836 = vunpack.c.l.b16 %v217
    %v837 = vunpack.c.h.b16 %v217
    %v838 = vunpack.c.l.b16 %v218
    %v839 = vunpack.c.l.b16 %v219
    %v840 = vunpack.c.h.b16 %v219
    %v841 = vunpack.c.l.b16 %v220
    %v842 = vunpack.c.h.b16 %v220
    %v843 = vunpack.c.l.b16 %v221
    %v844 = vunpack.c.h.b16 %v221
    %v845 = vunpack.c.l.b16 %v222
    %v846 = vunpack.c.h.b16 %v222
    %v847 = vunpack.c.l.b16 %v223
    %v848 = vunpack.c.l.b16 %v224
    %v849 = vunpack.c.h.b16 %v224
    %v850 = vunpack.c.l.b16 %v225
    %v851 = vunpack.c.h.b16 %v225
    %v852 = vunpack.c.l.b16 %v226
    %v853 = vunpack.c.h.b16 %v226
    %v854 = vunpack.c.l.b16 %v227
    %v855 = vunpack.c.h.b16 %v227
    %v856 = vunpack.c.l.b16 %v228
    %v857 = vunpack.c.l.b16 %v229
    %v858 = vunpack.c.h.b16 %v229
    %v859 = vunpack.c.l.b16 %v230
    %v860 = vunpack.c.h.b16 %v230
    %v861 = vunpack.c.l.b16 %v231
    %v862 = vunpack.c.h.b16 %v231
    %v863 = vunpack.c.l.b16 %v232
    %v864 = vunpack.c.h.b16 %v232
    %v865 = vunpack.c.l.b16 %v233
    %v866 = vunpack.c.l.b16 %v234
    %v867 = vunpack.c.h.b16 %v234
    %v868 = vunpack.c.l.b16 %v235
    %v869 = vunpack.c.h.b16 %v235
    %v870 = vunpack.c.l.b16 %v236
    %v871 = vunpack.c.h.b16 %v236
    %v872 = vunpack.c.l.b16 %v237
    %v873 = vunpack.c.h.b16 %v237
    %v874 = vunpack.c.l.b16 %v238
    %v875 = vunpack.c.l.b16 %v239
    %v876 = vunpack.c.h.b16 %v239
    %v877 = vunpack.c.l.b16 %v240
    %v878 = vunpack.c.h.b16 %v240
    %v879 = vunpack.c.l.b16 %v241
    %v880 = vunpack.c.h.b16 %v241
    %v881 = vunpack.c.l.b16 %v242
    %v882 = vunpack.c.h.b16 %v242
    %v883 = vunpack.c.l.b16 %v243
    %v884 = vunpack.c.l.b16 %v244
    %v885 = vunpack.c.h.b16 %v244
    %v886 = vunpack.c.l.b16 %v245
    %v887 = vunpack.c.h.b16 %v245
    %v888 = vunpack.c.l.b16 %v246
    %v889 = vunpack.c.h.b16 %v246
    %v890 = vunpack.c.l.b16 %v247
    %v891 = vunpack.c.h.b16 %v247
    %v892 = vunpack.c.l.b16 %v248
    %v893 = vunpack.c.l.b16 %v249
    %v894 = vunpack.c.h.b16 %v249
    %v895 = vunpack.c.l.b16 %v250
    %v896 = vunpack.c.h.b16 %v250
    %v897 = vunpack.c.l.b16 %v251
    %v898 = vunpack.c.h.b16 %v251
    %v899 = vunpack.c.l.b16 %v252
    %v900 = vunpack.c.h.b16 %v252
    %v901 = vunpack.c.l.b16 %v253
    %v902 = vunpack.c.l.b16 %v254
    %v903 = vunpack.c.h.b16 %v254
    %v904 = vunpack.c.l.b16 %v255
    %v905 = vunpack.c.h.b16 %v255
    %v906 = vunpack.c.l.b16 %v256
    %v907 = vunpack.c.h.b16 %v256
    %v908 = vunpack.c.l.b16 %v257
    %v909 = vunpack.c.h.b16 %v257
    %v910 = vunpack.c.l.b16 %v258
    %v911 = vunpack.c.l.b16 %v259
    %v912 = vunpack.c.h.b16 %v259
    %v913 = vunpack.c.l.b16 %v260
    %v914 = vunpack.c.h.b16 %v260
    %v915 = vunpack.c.l.b16 %v261
    %v916 = vunpack.c.h.b16 %v261
    %v917 = vunpack.c.l.b16 %v262
    %v918 = vunpack.c.h.b16 %v262
    %v919 = vunpack.c.l.b16 %v263
    %v920 = vunpack.c.l.b16 %v264
    %v921 = vunpack.c.h.b16 %v264
    %v922 = vunpack.c.l.b16 %v265
    %v923 = vunpack.c.h.b16 %v265
    %v924 = vunpack.c.l.b16 %v266
    %v925 = vunpack.c.h.b16 %v266
    %v926 = vunpack.c.l.b16 %v267
    %v927 = vunpack.c.h.b16 %v267
    %v928 = vunpack.c.l.b16 %v268
    %v929 = vunpack.c.l.b16 %v269
    %v930 = vunpack.c.h.b16 %v269
    %v931 = vunpack.c.l.b16 %v270
    %v932 = vunpack.c.h.b16 %v270
    %v933 = vunpack.c.l.b16 %v271
    %v934 = vunpack.c.h.b16 %v271
    %v935 = vunpack.c.l.b16 %v272
    %v936 = vunpack.c.h.b16 %v272
    %v937 = vunpack.c.l.b16 %v273
    %v938 = vunpack.c.l.b16 %v274
    %v939 = vunpack.c.h.b16 %v274
    %v940 = vunpack.c.l.b16 %v275
    %v941 = vunpack.c.h.b16 %v275
    %v942 = vunpack.c.l.b16 %v276
    %v943 = vunpack.c.h.b16 %v276
    %v944 = vunpack.c.l.b16 %v277
    %v945 = vunpack.c.h.b16 %v277
    %v946 = vunpack.c.l.b16 %v278
    %v947 = vunpack.c.l.b16 %v279
    %v948 = vunpack.c.h.b16 %v279
    %v949 = vunpack.c.l.b16 %v280
    %v950 = vunpack.c.h.b16 %v280
    %v951 = vunpack.c.l.b16 %v281
    %v952 = vunpack.c.h.b16 %v281
    %v953 = vunpack.c.l.b16 %v282
    %v954 = vunpack.c.h.b16 %v282
    %v955 = vunpack.c.l.b16 %v283
    %v956 = vunpack.c.l.b16 %v284
    %v957 = vunpack.c.h.b16 %v284
    %v958 = vunpack.c.l.b16 %v285
    %v959 = vunpack.c.h.b16 %v285
    %v960 = vunpack.c.l.b16 %v286
    %v961 = vunpack.c.h.b16 %v286
    %v962 = vunpack.c.l.b16 %v287
    %v963 = vunpack.c.h.b16 %v287
    %v964 = vunpack.c.l.b16 %v288
    %v965 = vunpack.c.l.b16 %v289
    %v966 = vunpack.c.h.b16 %v289
    %v967 = vunpack.c.l.b16 %v290
    %v968 = vunpack.c.h.b16 %v290
    %v969 = vunpack.c.l.b16 %v291
    %v970 = vunpack.c.h.b16 %v291
    %v971 = vunpack.c.l.b16 %v292
    %v972 = vunpack.c.h.b16 %v292
    %v973 = vunpack.c.l.b16 %v293
    %v974 = vunpack.c.l.b16 %v294
    %v975 = vunpack.c.h.b16 %v294
    %v976 = vunpack.c.l.b16 %v295
    %v977 = vunpack.c.h.b16 %v295
    %v978 = vunpack.c.l.b16 %v296
    %v979 = vunpack.c.h.b16 %v296
    %v980 = vunpack.c.l.b16 %v297
    %v981 = vunpack.c.h.b16 %v297
    %v982 = vunpack.c.l.b16 %v298
    %v983 = vunpack.c.l.b16 %v299
    %v984 = vunpack.c.h.b16 %v299
    %v985 = vunpack.c.l.b16 %v300
    %v986 = vunpack.c.h.b16 %v300
    %v987 = vunpack.c.l.b16 %v301
    %v988 = vunpack.c.h.b16 %v301
    %v989 = vunpack.c.l.b16 %v302
    %v990 = vunpack.c.h.b16 %v302
    %v991 = vunpack.c.l.b16 %v303
    %v992 = vpack.c.b16 %v569, %v560
    %v993 = vpack.c.b16 %v570, %v561
    %v994 = vpack.c.b16 %v571, %v562
    %v995 = vpack.c.b16 %v572, %v563
    %v996 = vpack.c.b16 %v573, %v564
    %v997 = vpack.c.b16 %v574, %v565
    %v998 = vpack.c.b16 %v575, %v566
    %v999 = vpack.c.b16 %v576, %v567
    %v1000 = vpack.c.b16 %v577, %v568
    %v1001 = vpack.c.b16 %v587, %v578
    %v1002 = vpack.c.b16 %v588, %v579
    %v1003 = vpack.c.b16 %v589, %v580
    %v1004 = vpack.c.b16 %v590, %v581
    %v1005 = vpack.c.b16 %v591, %v582
    %v1006 = vpack.c.b16 %v592, %v583
    %v1007 = vpack.c.b16 %v593, %v584
    %v1008 = vpack.c.b16 %v594, %v585
    %v1009 = vpack.c.b16 %v595, %v586
    %v1010 = vpack.c.b16 %v605, %v596
    %v1011 = vpack.c.b16 %v606, %v597
    %v1012 = vpack.c.b16 %v607, %v598
    %v1013 = vpack.c.b16 %v608, %v599
    %v1014 = vpack.c.b16 %v609, %v600
    %v1015 = vpack.c.b16 %v610, %v601
    %v1016 = vpack.c.b16 %v611, %v602
    %v1017 = vpack.c.b16 %v612, %v603
    %v1018 = vpack.c.b16 %v613, %v604
    %v1019 = vpack.c.b16 %v623, %v614
    %v1020 = vpack.c.b16 %v624, %v615
    %v1021 = vpack.c.b16 %v625, %v616
    %v1022 = vpack.c.b16 %v626, %v617
    %v1023 = vpack.c.b16 %v627, %v618
    %v1024 = vpack.c.b16 %v628, %v619
    %v1025 = vpack.c.b16 %v629, %v620
    %v1026 = vpack.c.b16 %v630, %v621
    %v1027 = vpack.c.b16 %v631, %v622
    %v1028 = vpack.c.b16 %v641, %v632
    %v1029 = vpack.c.b16 %v642, %v633
    %v1030 = vpack.c.b16 %v643, %v634
    %v1031 = vpack.c.b16 %v644, %v635
    %v1032 = vpack.c.b16 %v645, %v636
    %v1033 = vpack.c.b16 %v646, %v637
    %v1034 = vpack.c.b16 %v647, %v638
    %v1035 = vpack.c.b16 %v648, %v639
    %v1036 = vpack.c.b16 %v649, %v640
    %v1037 = vpack.c.b16 %v659, %v650
    %v1038 = vpack.c.b16 %v660, %v651
    %v1039 = vpack.c.b16 %v661, %v652
    %v1040 = vpack.c.b16 %v662, %v653
    %v1041 = vpack.c.b16 %v663, %v654
    %v1042 = vpack.c.b16 %v664, %v655
    %v1043 = vpack.c.b16 %v665, %v656
    %v1044 = vpack.c.b16 %v666, %v657
    %v1045 = vpack.c.b16 %v667, %v658
    %v1046 = vpack.c.b16 %v677, %v668
    %v1047 = vpack.c.b16 %v678, %v669
    %v1048 = vpack.c.b16 %v679, %v670
    %v1049 = vpack.c.b16 %v680, %v671
    %v1050 = vpack.c.b16 %v681, %v672
    %v1051 = vpack.c.b16 %v682, %v673
    %v1052 = vpack.c.b16 %v683, %v674
    %v1053 = vpack.c.b16 %v684, %v675
    %v1054 = vpack.c.b16 %v685, %v676
    %v1055 = vpack.c.b16 %v695, %v686
    %v1056 = vpack.c.b16 %v696, %v687
    %v1057 = vpack.c.b16 %v697, %v688
    %v1058 = vpack.c.b16 %v698, %v689
    %v1059 = vpack.c.b16 %v699, %v690
    %v1060 = vpack.c.b16 %v700, %v691
    %v1061 = vpack.c.b16 %v701, %v692
    %v1062 = vpack.c.b16 %v702, %v693
    %v1063 = vpack.c.b16 %v703, %v694
    %v1064 = vpack.c.b16 %v713, %v704
    %v1065 = vpack.c.b16 %v714, %v705
    %v1066 = vpack.c.b16 %v715, %v706
    %v1067 = vpack.c.b16 %v716, %v707
    %v1068 = vpack.c.b16 %v717, %v708
    %v1069 = vpack.c.b16 %v718, %v709
    %v1070 = vpack.c.b16 %v719, %v710
    %v1071 = vpack.c.b16 %v720, %v711
    %v1072 = vpack.c.b16 %v721, %v712
    %v1073 = vpack.c.b16 %v731, %v722
    %v1074 = vpack.c.b16 %v732, %v723
    %v1075 = vpack.c.b16 %v733, %v724
    %v1076 = vpack.c.b16 %v734, %v725
    %v1077 = vpack.c.b16 %v735, %v726
    %v1078 = vpack.c.b16 %v736, %v727
    %v1079 = vpack.c.b16 %v737, %v728
    %v1080 = vpack.c.b16 %v738, %v729
    %v1081 = vpack.c.b16 %v739, %v730
    %v1082 = vpack.c.b16 %v749, %v740
    %v1083 = vpack.c.b16 %v750, %v741
    %v1084 = vpack.c.b16 %v751, %v742
    %v1085 = vpack.c.b16 %v752, %v743
    %v1086 = vpack.c.b16 %v753, %v744
    %v1087 = vpack.c.b16 %v754, %v745
    %v1088 = vpack.c.b16 %v755, %v746
    %v1089 = vpack.c.b16 %v756, %v747
    %v1090 = vpack.c.b16 %v757, %v748
    %v1091 = vpack.c.b16 %v767, %v758
    %v1092 = vpack.c.b16 %v768, %v759
    %v1093 = vpack.c.b16 %v769, %v760
    %v1094 = vpack.c.b16 %v770, %v761
    %v1095 = vpack.c.b16 %v771, %v762
    %v1096 = vpack.c.b16 %v772, %v763
    %v1097 = vpack.c.b16 %v773, %v764
    %v1098 = vpack.c.b16 %v774, %v765
    %v1099 = vpack.c.b16 %v775, %v766
    %v1100 = vpack.c.b16 %v785, %v776
    %v1101 = vpack.c.b16 %v786, %v777
    %v1102 = vpack.c.b16 %v787, %v778
    %v1103 = vpack.c.b16 %v788, %v779
    %v1104 = vpack.c.b16 %v789, %v780
    %v1105 = vpack.c.b16 %v790, %v781
    %v1106 = vpack.c.b16 %v791, %v782
    %v1107 = vpack.c.b16 %v792, %v783
    %v1108 = vpack.c.b16 %v793, %v784
    %v1109 = vpack.c.b16 %v803, %v794
    %v1110 = vpack.c.b16 %v804, %v795
    %v1111 = vpack.c.b16 %v805, %v796
    %v1112 = vpack.c.b16 %v806, %v797
    %v1113 = vpack.c.b16 %v807, %v798
    %v1114 = vpack.c.b16 %v808, %v799
    %v1115 = vpack.c.b16 %v809, %v800
    %v1116 = vpack.c.b16 %v810, %v801
    %v1117 = vpack.c.b16 %v811, %v802
    %v1118 = vpack.c.b16 %v821, %v812
    %v1119 = vpack.c.b16 %v822, %v813
    %v1120 = vpack.c.b16 %v823, %v814
    %v1121 = vpack.c.b16 %v824, %v815
    %v1122 = vpack.c.b16 %v825, %v816
    %v1123 = vpack.c.b16 %v826, %v817
    %v1124 = vpack.c.b16 %v827, %v818
    %v1125 = vpack.c.b16 %v828, %v819
    %v1126 = vpack.c.b16 %v829, %v820
    %v1127 = vpack.c.b16 %v839, %v830
    %v1128 = vpack.c.b16 %v840, %v831
    %v1129 = vpack.c.b16 %v841, %v832
    %v1130 = vpack.c.b16 %v842, %v833
    %v1131 = vpack.c.b16 %v843, %v834
    %v1132 = vpack.c.b16 %v844, %v835
    %v1133 = vpack.c.b16 %v845, %v836
    %v1134 = vpack.c.b16 %v846, %v837
    %v1135 = vpack.c.b16 %v847, %v838
    %v1136 = vpack.c.b16 %v857, %v848
    %v1137 = vpack.c.b16 %v858, %v849
    %v1138 = vpack.c.b16 %v859, %v850
    %v1139 = vpack.c.b16 %v860, %v851
    %v1140 = vpack.c.b16 %v861, %v852
    %v1141 = vpack.c.b16 %v862, %v853
    %v1142 = vpack.c.b16 %v863, %v854
    %v1143 = vpack.c.b16 %v864, %v855
    %v1144 = vpack.c.b16 %v865, %v856
    %v1145 = vpack.c.b16 %v875, %v866
    %v1146 = vpack.c.b16 %v876, %v867
    %v1147 = vpack.c.b16 %v877, %v868
    %v1148 = vpack.c.b16 %v878, %v869
    %v1149 = vpack.c.b16 %v879, %v870
    %v1150 = vpack.c.b16 %v880, %v871
    %v1151 = vpack.c.b16 %v881, %v872
    %v1152 = vpack.c.b16 %v882, %v873
    %v1153 = vpack.c.b16 %v883, %v874
    %v1154 = vpack.c.b16 %v893, %v884
    %v1155 = vpack.c.b16 %v894, %v885
    %v1156 = vpack.c.b16 %v895, %v886
    %v1157 = vpack.c.b16 %v896, %v887
    %v1158 = vpack.c.b16 %v897, %v888
    %v1159 = vpack.c.b16 %v898, %v889
    %v1160 = vpack.c.b16 %v899, %v890
    %v1161 = vpack.c.b16 %v900, %v891
    %v1162 = vpack.c.b16 %v901, %v892
    %v1163 = vpack.c.b16 %v911, %v902
    %v1164 = vpack.c.b16 %v912, %v903
    %v1165 = vpack.c.b16 %v913, %v904
    %v1166 = vpack.c.b16 %v914, %v905
    %v1167 = vpack.c.b16 %v915, %v906
    %v1168 = vpack.c.b16 %v916, %v907
    %v1169 = vpack.c.b16 %v917, %v908
    %v1170 = vpack.c.b16 %v918, %v909
    %v1171 = vpack.c.b16 %v919, %v910
    %v1172 = vpack.c.b16 %v929, %v920
    %v1173 = vpack.c.b16 %v930, %v921
    %v1174 = vpack.c.b16 %v931, %v922
    %v1175 = vpack.c.b16 %v932, %v923
    %v1176 = vpack.c.b16 %v933, %v924
    %v1177 = vpack.c.b16 %v934, %v925
    %v1178 = vpack.c.b16 %v935, %v926
    %v1179 = vpack.c.b16 %v936, %v927
    %v1180 = vpack.c.b16 %v937, %v928
    %v1181 = vpack.c.b16 %v947, %v938
    %v1182 = vpack.c.b16 %v948, %v939
    %v1183 = vpack.c.b16 %v949, %v940
    %v1184 = vpack.c.b16 %v950, %v941
    %v1185 = vpack.c.b16 %v951, %v942
    %v1186 = vpack.c.b16 %v952, %v943
    %v1187 = vpack.c.b16 %v953, %v944
    %v1188 = vpack.c.b16 %v954, %v945
    %v1189 = vpack.c.b16 %v955, %v946
    %v1190 = vpack.c.b16 %v965, %v956
    %v1191 = vpack.c.b16 %v966, %v957
    %v1192 = vpack.c.b16 %v967, %v958
    %v1193 = vpack.c.b16 %v968, %v959
    %v1194 = vpack.c.b16 %v969, %v960
    %v1195 = vpack.c.b16 %v970, %v961
    %v1196 = vpack.c.b16 %v971, %v962
    %v1197 = vpack.c.b16 %v972, %v963
    %v1198 = vpack.c.b16 %v973, %v964
    %v1199 = vpack.c.b16 %v983, %v974
    %v1200 = vpack.c.b16 %v984, %v975
    %v1201 = vpack.c.b16 %v985, %v976
    %v1202 = vpack.c.b16 %v986, %v977
    %v1203 = vpack.c.b16 %v987, %v978
    %v1204 = vpack.c.b16 %v988, %v979
    %v1205 = vpack.c.b16 %v989, %v980
    %v1206 = vpack.c.b16 %v990, %v981
    %v1207 = vpack.c.b16 %v991, %v982
    %1424 = vmatprep.subr.bf16.mxu0 %v993
    %1425 = vmatpush1.bf16.msra.mxu0 %v992
    %1426 = vmatprep.subr.bf16.mxu0 %v1002
    %1427 = vmatpush1.bf16.msra.mxu0 %v1001
    %1428 = vmatprep.subr.bf16.mxu0 %v1011
    %1429 = vmatpush1.bf16.msra.mxu0 %v1010
    %1430 = vmatprep.subr.bf16.mxu0 %v1020
    %1431 = vmatpush1.bf16.msra.mxu0 %v1019
    %1432 = vmatprep.subr.bf16.mxu0 %v1029
    %1433 = vmatpush1.bf16.msra.mxu0 %v1028
    %1434 = vmatprep.subr.bf16.mxu0 %v1038
    %1435 = vmatpush1.bf16.msra.mxu0 %v1037
    %1436 = vmatprep.subr.bf16.mxu0 %v1047
    %1437 = vmatpush1.bf16.msra.mxu0 %v1046
    %1438 = vmatprep.subr.bf16.mxu0 %v1056
    %1439 = vmatpush1.bf16.msra.mxu0 %v1055
    %1440 = vmatprep.subr.bf16.mxu0 %v1065
    %1441 = vmatpush1.bf16.msra.mxu0 %v1064
    %1442 = vmatprep.subr.bf16.mxu0 %v1074
    %1443 = vmatpush1.bf16.msra.mxu0 %v1073
    %1444 = vmatprep.subr.bf16.mxu0 %v1083
    %1445 = vmatpush1.bf16.msra.mxu0 %v1082
    %1446 = vmatprep.subr.bf16.mxu0 %v1092
    %1447 = vmatpush1.bf16.msra.mxu0 %v1091
    %1448 = vmatprep.subr.bf16.mxu0 %v1101
    %1449 = vmatpush1.bf16.msra.mxu0 %v1100
    %1450 = vmatprep.subr.bf16.mxu0 %v1110
    %1451 = vmatpush1.bf16.msra.mxu0 %v1109
    %1452 = vmatprep.subr.bf16.mxu0 %v1119
    %1453 = vmatpush1.bf16.msra.mxu0 %v1118
    %1454 = vmatprep.subr.bf16.mxu0 %v1128
    %1455 = vmatpush1.bf16.msra.mxu0 %v1127
    %1456 = vmatprep.mubr.bf16.mxu0 %v315
    %1457 = vmatmul.mubr.bf16.gmra.mrb[0].mxu0 %v314
    %v1458 = vpop.f32.mrb[0].mxu0
    %v1459 = vadd.f32 0.0, %v1458
    %v1460 = vpop.f32.mrb[0].mxu0
    %v1461 = vadd.f32 0.0, %v1460
    %v1462 = vpop.f32.mrb[0].mxu0
    %v1463 = vadd.f32 0.0, %v1462
    %v1464 = vpop.f32.mrb[0].mxu0
    %v1465 = vadd.f32 0.0, %v1464
    %1466 = vdwg.mxu0
    %1467 = vmatprep.subr.bf16.mxu0 %v1137
    %1468 = vmatpush1.bf16.msra.mxu0 %v1136
    %1469 = vmatprep.subr.bf16.mxu0 %v1146
    %1470 = vmatpush1.bf16.msra.mxu0 %v1145
    %1471 = vmatprep.subr.bf16.mxu0 %v1155
    %1472 = vmatpush1.bf16.msra.mxu0 %v1154
    %1473 = vmatprep.subr.bf16.mxu0 %v1164
    %1474 = vmatpush1.bf16.msra.mxu0 %v1163
    %1475 = vmatprep.subr.bf16.mxu0 %v1173
    %1476 = vmatpush1.bf16.msra.mxu0 %v1172
    %1477 = vmatprep.subr.bf16.mxu0 %v1182
    %1478 = vmatpush1.bf16.msra.mxu0 %v1181
    %1479 = vmatprep.subr.bf16.mxu0 %v1191
    %1480 = vmatpush1.bf16.msra.mxu0 %v1190
    %1481 = vmatprep.subr.bf16.mxu0 %v1200
    %1482 = vmatpush1.bf16.msra.mxu0 %v1199
    %1483 = vmatprep.subr.bf16.mxu0 0
    %1484 = vmatpush1.bf16.msra.mxu0 0
    %1485 = vmatprep.subr.bf16.mxu0 0
    %1486 = vmatpush1.bf16.msra.mxu0 0
    %1487 = vmatprep.subr.bf16.mxu0 0
    %1488 = vmatpush1.bf16.msra.mxu0 0
    %1489 = vmatprep.subr.bf16.mxu0 0
    %1490 = vmatpush1.bf16.msra.mxu0 0
    %1491 = vmatprep.subr.bf16.mxu0 0
    %1492 = vmatpush1.bf16.msra.mxu0 0
    %1493 = vmatprep.subr.bf16.mxu0 0
    %1494 = vmatpush1.bf16.msra.mxu0 0
    %1495 = vmatprep.subr.bf16.mxu0 0
    %1496 = vmatpush1.bf16.msra.mxu0 0
    %1497 = vmatprep.subr.bf16.mxu0 0
    %1498 = vmatpush1.bf16.msra.mxu0 0
    %1499 = vmatprep.mubr.bf16.mxu0 0
    %1500 = vmatmul.mubr.bf16.gmra.mrb[0].mxu0 %v316
    %v1501 = vpop.f32.mrb[0].mxu0
    %v1502 = vadd.f32 %v1459, %v1501
    %v1503 = vpop.f32.mrb[0].mxu0
    %v1504 = vadd.f32 %v1461, %v1503
    %v1505 = vpop.f32.mrb[0].mxu0
    %v1506 = vadd.f32 %v1463, %v1505
    %v1507 = vpop.f32.mrb[0].mxu0
    %v1508 = vadd.f32 %v1465, %v1507
    %1509 = vdwg.mxu0
    %1510 = vmatprep.subr.bf16.mxu0 %v995
    %1511 = vmatpush1.bf16.msra.mxu0 %v994
    %1512 = vmatprep.subr.bf16.mxu0 %v1004
    %1513 = vmatpush1.bf16.msra.mxu0 %v1003
    %1514 = vmatprep.subr.bf16.mxu0 %v1013
    %1515 = vmatpush1.bf16.msra.mxu0 %v1012
    %1516 = vmatprep.subr.bf16.mxu0 %v1022
    %1517 = vmatpush1.bf16.msra.mxu0 %v1021
    %1518 = vmatprep.subr.bf16.mxu0 %v1031
    %1519 = vmatpush1.bf16.msra.mxu0 %v1030
    %1520 = vmatprep.subr.bf16.mxu0 %v1040
    %1521 = vmatpush1.bf16.msra.mxu0 %v1039
    %1522 = vmatprep.subr.bf16.mxu0 %v1049
    %1523 = vmatpush1.bf16.msra.mxu0 %v1048
    %1524 = vmatprep.subr.bf16.mxu0 %v1058
    %1525 = vmatpush1.bf16.msra.mxu0 %v1057
    %1526 = vmatprep.subr.bf16.mxu0 %v1067
    %1527 = vmatpush1.bf16.msra.mxu0 %v1066
    %1528 = vmatprep.subr.bf16.mxu0 %v1076
    %1529 = vmatpush1.bf16.msra.mxu0 %v1075
    %1530 = vmatprep.subr.bf16.mxu0 %v1085
    %1531 = vmatpush1.bf16.msra.mxu0 %v1084
    %1532 = vmatprep.subr.bf16.mxu0 %v1094
    %1533 = vmatpush1.bf16.msra.mxu0 %v1093
    %1534 = vmatprep.subr.bf16.mxu0 %v1103
    %1535 = vmatpush1.bf16.msra.mxu0 %v1102
    %1536 = vmatprep.subr.bf16.mxu0 %v1112
    %1537 = vmatpush1.bf16.msra.mxu0 %v1111
    %1538 = vmatprep.subr.bf16.mxu0 %v1121
    %1539 = vmatpush1.bf16.msra.mxu0 %v1120
    %1540 = vmatprep.subr.bf16.mxu0 %v1130
    %1541 = vmatpush1.bf16.msra.mxu0 %v1129
    %1542 = vmatprep.mubr.bf16.mxu0 %v315
    %1543 = vmatmul.mubr.bf16.gmra.mrb[0].mxu0 %v314
    %v1544 = vpop.f32.mrb[0].mxu0
    %v1545 = vadd.f32 0.0, %v1544
    %v1546 = vpop.f32.mrb[0].mxu0
    %v1547 = vadd.f32 0.0, %v1546
    %v1548 = vpop.f32.mrb[0].mxu0
    %v1549 = vadd.f32 0.0, %v1548
    %v1550 = vpop.f32.mrb[0].mxu0
    %v1551 = vadd.f32 0.0, %v1550
    %1552 = vdwg.mxu0
    %1553 = vmatprep.subr.bf16.mxu0 %v1139
    %1554 = vmatpush1.bf16.msra.mxu0 %v1138
    %1555 = vmatprep.subr.bf16.mxu0 %v1148
    %1556 = vmatpush1.bf16.msra.mxu0 %v1147
    %1557 = vmatprep.subr.bf16.mxu0 %v1157
    %1558 = vmatpush1.bf16.msra.mxu0 %v1156
    %1559 = vmatprep.subr.bf16.mxu0 %v1166
    %1560 = vmatpush1.bf16.msra.mxu0 %v1165
    %1561 = vmatprep.subr.bf16.mxu0 %v1175
    %1562 = vmatpush1.bf16.msra.mxu0 %v1174
    %1563 = vmatprep.subr.bf16.mxu0 %v1184
    %1564 = vmatpush1.bf16.msra.mxu0 %v1183
    %1565 = vmatprep.subr.bf16.mxu0 %v1193
    %1566 = vmatpush1.bf16.msra.mxu0 %v1192
    %1567 = vmatprep.subr.bf16.mxu0 %v1202
    %1568 = vmatpush1.bf16.msra.mxu0 %v1201
    %1569 = vmatprep.subr.bf16.mxu0 0
    %1570 = vmatpush1.bf16.msra.mxu0 0
    %1571 = vmatprep.subr.bf16.mxu0 0
    %1572 = vmatpush1.bf16.msra.mxu0 0
    %1573 = vmatprep.subr.bf16.mxu0 0
    %1574 = vmatpush1.bf16.msra.mxu0 0
    %1575 = vmatprep.subr.bf16.mxu0 0
    %1576 = vmatpush1.bf16.msra.mxu0 0
    %1577 = vmatprep.subr.bf16.mxu0 0
    %1578 = vmatpush1.bf16.msra.mxu0 0
    %1579 = vmatprep.subr.bf16.mxu0 0
    %1580 = vmatpush1.bf16.msra.mxu0 0
    %1581 = vmatprep.subr.bf16.mxu0 0
    %1582 = vmatpush1.bf16.msra.mxu0 0
    %1583 = vmatprep.subr.bf16.mxu0 0
    %1584 = vmatpush1.bf16.msra.mxu0 0
    %1585 = vmatprep.mubr.bf16.mxu0 0
    %1586 = vmatmul.mubr.bf16.gmra.mrb[0].mxu0 %v316
    %v1587 = vpop.f32.mrb[0].mxu0
    %v1588 = vadd.f32 %v1545, %v1587
    %v1589 = vpop.f32.mrb[0].mxu0
    %v1590 = vadd.f32 %v1547, %v1589
    %v1591 = vpop.f32.mrb[0].mxu0
    %v1592 = vadd.f32 %v1549, %v1591
    %v1593 = vpop.f32.mrb[0].mxu0
    %v1594 = vadd.f32 %v1551, %v1593
    %1595 = vdwg.mxu0
    %1596 = vmatprep.subr.bf16.mxu0 %v997
    %1597 = vmatpush1.bf16.msra.mxu0 %v996
    %1598 = vmatprep.subr.bf16.mxu0 %v1006
    %1599 = vmatpush1.bf16.msra.mxu0 %v1005
    %1600 = vmatprep.subr.bf16.mxu0 %v1015
    %1601 = vmatpush1.bf16.msra.mxu0 %v1014
    %1602 = vmatprep.subr.bf16.mxu0 %v1024
    %1603 = vmatpush1.bf16.msra.mxu0 %v1023
    %1604 = vmatprep.subr.bf16.mxu0 %v1033
    %1605 = vmatpush1.bf16.msra.mxu0 %v1032
    %1606 = vmatprep.subr.bf16.mxu0 %v1042
    %1607 = vmatpush1.bf16.msra.mxu0 %v1041
    %1608 = vmatprep.subr.bf16.mxu0 %v1051
    %1609 = vmatpush1.bf16.msra.mxu0 %v1050
    %1610 = vmatprep.subr.bf16.mxu0 %v1060
    %1611 = vmatpush1.bf16.msra.mxu0 %v1059
    %1612 = vmatprep.subr.bf16.mxu0 %v1069
    %1613 = vmatpush1.bf16.msra.mxu0 %v1068
    %1614 = vmatprep.subr.bf16.mxu0 %v1078
    %1615 = vmatpush1.bf16.msra.mxu0 %v1077
    %1616 = vmatprep.subr.bf16.mxu0 %v1087
    %1617 = vmatpush1.bf16.msra.mxu0 %v1086
    %1618 = vmatprep.subr.bf16.mxu0 %v1096
    %1619 = vmatpush1.bf16.msra.mxu0 %v1095
    %1620 = vmatprep.subr.bf16.mxu0 %v1105
    %1621 = vmatpush1.bf16.msra.mxu0 %v1104
    %1622 = vmatprep.subr.bf16.mxu0 %v1114
    %1623 = vmatpush1.bf16.msra.mxu0 %v1113
    %1624 = vmatprep.subr.bf16.mxu0 %v1123
    %1625 = vmatpush1.bf16.msra.mxu0 %v1122
    %1626 = vmatprep.subr.bf16.mxu0 %v1132
    %1627 = vmatpush1.bf16.msra.mxu0 %v1131
    %1628 = vmatprep.mubr.bf16.mxu0 %v315
    %1629 = vmatmul.mubr.bf16.gmra.mrb[0].mxu0 %v314
    %v1630 = vpop.f32.mrb[0].mxu0
    %v1631 = vadd.f32 0.0, %v1630
    %v1632 = vpop.f32.mrb[0].mxu0
    %v1633 = vadd.f32 0.0, %v1632
    %v1634 = vpop.f32.mrb[0].mxu0
    %v1635 = vadd.f32 0.0, %v1634
    %v1636 = vpop.f32.mrb[0].mxu0
    %v1637 = vadd.f32 0.0, %v1636
    %1638 = vdwg.mxu0
    %1639 = vmatprep.subr.bf16.mxu0 %v1141
    %1640 = vmatpush1.bf16.msra.mxu0 %v1140
    %1641 = vmatprep.subr.bf16.mxu0 %v1150
    %1642 = vmatpush1.bf16.msra.mxu0 %v1149
    %1643 = vmatprep.subr.bf16.mxu0 %v1159
    %1644 = vmatpush1.bf16.msra.mxu0 %v1158
    %1645 = vmatprep.subr.bf16.mxu0 %v1168
    %1646 = vmatpush1.bf16.msra.mxu0 %v1167
    %1647 = vmatprep.subr.bf16.mxu0 %v1177
    %1648 = vmatpush1.bf16.msra.mxu0 %v1176
    %1649 = vmatprep.subr.bf16.mxu0 %v1186
    %1650 = vmatpush1.bf16.msra.mxu0 %v1185
    %1651 = vmatprep.subr.bf16.mxu0 %v1195
    %1652 = vmatpush1.bf16.msra.mxu0 %v1194
    %1653 = vmatprep.subr.bf16.mxu0 %v1204
    %1654 = vmatpush1.bf16.msra.mxu0 %v1203
    %1655 = vmatprep.subr.bf16.mxu0 0
    %1656 = vmatpush1.bf16.msra.mxu0 0
    %1657 = vmatprep.subr.bf16.mxu0 0
    %1658 = vmatpush1.bf16.msra.mxu0 0
    %1659 = vmatprep.subr.bf16.mxu0 0
    %1660 = vmatpush1.bf16.msra.mxu0 0
    %1661 = vmatprep.subr.bf16.mxu0 0
    %1662 = vmatpush1.bf16.msra.mxu0 0
    %1663 = vmatprep.subr.bf16.mxu0 0
    %1664 = vmatpush1.bf16.msra.mxu0 0
    %1665 = vmatprep.subr.bf16.mxu0 0
    %1666 = vmatpush1.bf16.msra.mxu0 0
    %1667 = vmatprep.subr.bf16.mxu0 0
    %1668 = vmatpush1.bf16.msra.mxu0 0
    %1669 = vmatprep.subr.bf16.mxu0 0
    %1670 = vmatpush1.bf16.msra.mxu0 0
    %1671 = vmatprep.mubr.bf16.mxu0 0
    %1672 = vmatmul.mubr.bf16.gmra.mrb[0].mxu0 %v316
    %v1673 = vpop.f32.mrb[0].mxu0
    %v1674 = vadd.f32 %v1631, %v1673
    %v1675 = vpop.f32.mrb[0].mxu0
    %v1676 = vadd.f32 %v1633, %v1675
    %v1677 = vpop.f32.mrb[0].mxu0
    %v1678 = vadd.f32 %v1635, %v1677
    %v1679 = vpop.f32.mrb[0].mxu0
    %v1680 = vadd.f32 %v1637, %v1679
    %1681 = vdwg.mxu0
    %1682 = vmatprep.subr.bf16.mxu0 %v999
    %1683 = vmatpush1.bf16.msra.mxu0 %v998
    %1684 = vmatprep.subr.bf16.mxu0 %v1008
    %1685 = vmatpush1.bf16.msra.mxu0 %v1007
    %1686 = vmatprep.subr.bf16.mxu0 %v1017
    %1687 = vmatpush1.bf16.msra.mxu0 %v1016
    %1688 = vmatprep.subr.bf16.mxu0 %v1026
    %1689 = vmatpush1.bf16.msra.mxu0 %v1025
    %1690 = vmatprep.subr.bf16.mxu0 %v1035
    %1691 = vmatpush1.bf16.msra.mxu0 %v1034
    %1692 = vmatprep.subr.bf16.mxu0 %v1044
    %1693 = vmatpush1.bf16.msra.mxu0 %v1043
    %1694 = vmatprep.subr.bf16.mxu0 %v1053
    %1695 = vmatpush1.bf16.msra.mxu0 %v1052
    %1696 = vmatprep.subr.bf16.mxu0 %v1062
    %1697 = vmatpush1.bf16.msra.mxu0 %v1061
    %1698 = vmatprep.subr.bf16.mxu0 %v1071
    %1699 = vmatpush1.bf16.msra.mxu0 %v1070
    %1700 = vmatprep.subr.bf16.mxu0 %v1080
    %1701 = vmatpush1.bf16.msra.mxu0 %v1079
    %1702 = vmatprep.subr.bf16.mxu0 %v1089
    %1703 = vmatpush1.bf16.msra.mxu0 %v1088
    %1704 = vmatprep.subr.bf16.mxu0 %v1098
    %1705 = vmatpush1.bf16.msra.mxu0 %v1097
    %1706 = vmatprep.subr.bf16.mxu0 %v1107
    %1707 = vmatpush1.bf16.msra.mxu0 %v1106
    %1708 = vmatprep.subr.bf16.mxu0 %v1116
    %1709 = vmatpush1.bf16.msra.mxu0 %v1115
    %1710 = vmatprep.subr.bf16.mxu0 %v1125
    %1711 = vmatpush1.bf16.msra.mxu0 %v1124
    %1712 = vmatprep.subr.bf16.mxu0 %v1134
    %1713 = vmatpush1.bf16.msra.mxu0 %v1133
    %1714 = vmatprep.mubr.bf16.mxu0 %v315
    %1715 = vmatmul.mubr.bf16.gmra.mrb[0].mxu0 %v314
    %v1716 = vpop.f32.mrb[0].mxu0
    %v1717 = vadd.f32 0.0, %v1716
    %v1718 = vpop.f32.mrb[0].mxu0
    %v1719 = vadd.f32 0.0, %v1718
    %v1720 = vpop.f32.mrb[0].mxu0
    %v1721 = vadd.f32 0.0, %v1720
    %v1722 = vpop.f32.mrb[0].mxu0
    %v1723 = vadd.f32 0.0, %v1722
    %1724 = vdwg.mxu0
    %1725 = vmatprep.subr.bf16.mxu0 %v1143
    %1726 = vmatpush1.bf16.msra.mxu0 %v1142
    %1727 = vmatprep.subr.bf16.mxu0 %v1152
    %1728 = vmatpush1.bf16.msra.mxu0 %v1151
    %1729 = vmatprep.subr.bf16.mxu0 %v1161
    %1730 = vmatpush1.bf16.msra.mxu0 %v1160
    %1731 = vmatprep.subr.bf16.mxu0 %v1170
    %1732 = vmatpush1.bf16.msra.mxu0 %v1169
    %1733 = vmatprep.subr.bf16.mxu0 %v1179
    %1734 = vmatpush1.bf16.msra.mxu0 %v1178
    %1735 = vmatprep.subr.bf16.mxu0 %v1188
    %1736 = vmatpush1.bf16.msra.mxu0 %v1187
    %1737 = vmatprep.subr.bf16.mxu0 %v1197
    %1738 = vmatpush1.bf16.msra.mxu0 %v1196
    %1739 = vmatprep.subr.bf16.mxu0 %v1206
    %1740 = vmatpush1.bf16.msra.mxu0 %v1205
    %1741 = vmatprep.subr.bf16.mxu0 0
    %1742 = vmatpush1.bf16.msra.mxu0 0
    %1743 = vmatprep.subr.bf16.mxu0 0
    %1744 = vmatpush1.bf16.msra.mxu0 0
    %1745 = vmatprep.subr.bf16.mxu0 0
    %1746 = vmatpush1.bf16.msra.mxu0 0
    %1747 = vmatprep.subr.bf16.mxu0 0
    %1748 = vmatpush1.bf16.msra.mxu0 0
    %1749 = vmatprep.subr.bf16.mxu0 0
    %1750 = vmatpush1.bf16.msra.mxu0 0
    %1751 = vmatprep.subr.bf16.mxu0 0
    %1752 = vmatpush1.bf16.msra.mxu0 0
    %1753 = vmatprep.subr.bf16.mxu0 0
    %1754 = vmatpush1.bf16.msra.mxu0 0
    %1755 = vmatprep.subr.bf16.mxu0 0
    %1756 = vmatpush1.bf16.msra.mxu0 0
    %1757 = vmatprep.mubr.bf16.mxu0 0
    %1758 = vmatmul.mubr.bf16.gmra.mrb[0].mxu0 %v316
    %v1759 = vpop.f32.mrb[0].mxu0
    %v1760 = vadd.f32 %v1717, %v1759
    %v1761 = vpop.f32.mrb[0].mxu0
    %v1762 = vadd.f32 %v1719, %v1761
    %v1763 = vpop.f32.mrb[0].mxu0
    %v1764 = vadd.f32 %v1721, %v1763
    %v1765 = vpop.f32.mrb[0].mxu0
    %v1766 = vadd.f32 %v1723, %v1765
    %1767 = vdwg.mxu0
    %1768 = vmatprep.subr.bf16.mxu0 0
    %1769 = vmatpush1.bf16.msra.mxu0 %v1000
    %1770 = vmatprep.subr.bf16.mxu0 0
    %1771 = vmatpush1.bf16.msra.mxu0 %v1009
    %1772 = vmatprep.subr.bf16.mxu0 0
    %1773 = vmatpush1.bf16.msra.mxu0 %v1018
    %1774 = vmatprep.subr.bf16.mxu0 0
    %1775 = vmatpush1.bf16.msra.mxu0 %v1027
    %1776 = vmatprep.subr.bf16.mxu0 0
    %1777 = vmatpush1.bf16.msra.mxu0 %v1036
    %1778 = vmatprep.subr.bf16.mxu0 0
    %1779 = vmatpush1.bf16.msra.mxu0 %v1045
    %1780 = vmatprep.subr.bf16.mxu0 0
    %1781 = vmatpush1.bf16.msra.mxu0 %v1054
    %1782 = vmatprep.subr.bf16.mxu0 0
    %1783 = vmatpush1.bf16.msra.mxu0 %v1063
    %1784 = vmatprep.subr.bf16.mxu0 0
    %1785 = vmatpush1.bf16.msra.mxu0 %v1072
    %1786 = vmatprep.subr.bf16.mxu0 0
    %1787 = vmatpush1.bf16.msra.mxu0 %v1081
    %1788 = vmatprep.subr.bf16.mxu0 0
    %1789 = vmatpush1.bf16.msra.mxu0 %v1090
    %1790 = vmatprep.subr.bf16.mxu0 0
    %1791 = vmatpush1.bf16.msra.mxu0 %v1099
    %1792 = vmatprep.subr.bf16.mxu0 0
    %1793 = vmatpush1.bf16.msra.mxu0 %v1108
    %1794 = vmatprep.subr.bf16.mxu0 0
    %1795 = vmatpush1.bf16.msra.mxu0 %v1117
    %1796 = vmatprep.subr.bf16.mxu0 0
    %1797 = vmatpush1.bf16.msra.mxu0 %v1126
    %1798 = vmatprep.subr.bf16.mxu0 0
    %1799 = vmatpush1.bf16.msra.mxu0 %v1135
    %1800 = vmatprep.mubr.bf16.mxu0 %v315
    %1801 = vmatmul.mubr.bf16.gmra.mrb[0].mxu0 %v314
    %v1802 = vpop.f32.mrb[0].mxu0
    %v1803 = vadd.f32 0.0, %v1802
    %v1804 = vpop.f32.mrb[0].mxu0
    %v1805 = vpop.f32.mrb[0].mxu0
    %v1806 = vadd.f32 0.0, %v1805
    %v1807 = vpop.f32.mrb[0].mxu0
    %1808 = vdwg.mxu0
    %1809 = vmatprep.subr.bf16.mxu0 0
    %1810 = vmatpush1.bf16.msra.mxu0 %v1144
    %1811 = vmatprep.subr.bf16.mxu0 0
    %1812 = vmatpush1.bf16.msra.mxu0 %v1153
    %1813 = vmatprep.subr.bf16.mxu0 0
    %1814 = vmatpush1.bf16.msra.mxu0 %v1162
    %1815 = vmatprep.subr.bf16.mxu0 0
    %1816 = vmatpush1.bf16.msra.mxu0 %v1171
    %1817 = vmatprep.subr.bf16.mxu0 0
    %1818 = vmatpush1.bf16.msra.mxu0 %v1180
    %1819 = vmatprep.subr.bf16.mxu0 0
    %1820 = vmatpush1.bf16.msra.mxu0 %v1189
    %1821 = vmatprep.subr.bf16.mxu0 0
    %1822 = vmatpush1.bf16.msra.mxu0 %v1198
    %1823 = vmatprep.subr.bf16.mxu0 0
    %1824 = vmatpush1.bf16.msra.mxu0 %v1207
    %1825 = vmatprep.subr.bf16.mxu0 0
    %1826 = vmatpush1.bf16.msra.mxu0 0
    %1827 = vmatprep.subr.bf16.mxu0 0
    %1828 = vmatpush1.bf16.msra.mxu0 0
    %1829 = vmatprep.subr.bf16.mxu0 0
    %1830 = vmatpush1.bf16.msra.mxu0 0
    %1831 = vmatprep.subr.bf16.mxu0 0
    %1832 = vmatpush1.bf16.msra.mxu0 0
    %1833 = vmatprep.subr.bf16.mxu0 0
    %1834 = vmatpush1.bf16.msra.mxu0 0
    %1835 = vmatprep.subr.bf16.mxu0 0
    %1836 = vmatpush1.bf16.msra.mxu0 0
    %1837 = vmatprep.subr.bf16.mxu0 0
    %1838 = vmatpush1.bf16.msra.mxu0 0
    %1839 = vmatprep.subr.bf16.mxu0 0
    %1840 = vmatpush1.bf16.msra.mxu0 0
    %1841 = vmatprep.mubr.bf16.mxu0 0
    %1842 = vmatmul.mubr.bf16.gmra.mrb[0].mxu0 %v316
    %v1843 = vpop.f32.mrb[0].mxu0
    %v1844 = vadd.f32 %v1803, %v1843
    %v1845 = vpop.f32.mrb[0].mxu0
    %v1846 = vpop.f32.mrb[0].mxu0
    %v1847 = vadd.f32 %v1806, %v1846
    %v1848 = vpop.f32.mrb[0].mxu0
    %1849 = vdwg.mxu0
    %v1850 = vpack.c.bf16 %v1506, %v1502
    %v1851 = vpack.c.bf16 %v1508, %v1504
    %v1852 = vpack.c.bf16 %v1592, %v1588
    %v1853 = vpack.c.bf16 %v1594, %v1590
    %v1854 = vpack.c.bf16 %v1678, %v1674
    %v1855 = vpack.c.bf16 %v1680, %v1676
    %v1856 = vpack.c.bf16 %v1764, %v1760
    %v1857 = vpack.c.bf16 %v1766, %v1762
    %v1858 = vpack.c.bf16 %v1847, %v1844
    %v1862 = vunpack.c.l.b16 %v1850
    %v1863 = vunpack.c.l.b16 %v1851
    %v1864 = vunpack.c.l.b16 %v1852
    %v1865 = vunpack.c.h.b16 %v1850
    %v1866 = vunpack.c.h.b16 %v1851
    %v1867 = vunpack.c.h.b16 %v1852
    %v1868 = vpack.c.b16 %v1863, %v1862
    %v1869 = vpack.c.b16 %v1864, %v1864
    %v1870 = vpack.c.b16 %v1866, %v1865
    %v1871 = vpack.c.b16 %v1867, %v1867
    %v1875 = vunpack.c.l.b16 %v1853
    %v1876 = vunpack.c.l.b16 %v1854
    %v1877 = vunpack.c.l.b16 %v1855
    %v1878 = vunpack.c.h.b16 %v1853
    %v1879 = vunpack.c.h.b16 %v1854
    %v1880 = vunpack.c.h.b16 %v1855
    %v1881 = vpack.c.b16 %v1876, %v1875
    %v1882 = vpack.c.b16 %v1877, %v1877
    %v1883 = vpack.c.b16 %v1879, %v1878
    %v1884 = vpack.c.b16 %v1880, %v1880
    %v1888 = vunpack.c.l.b16 %v1856
    %v1889 = vunpack.c.l.b16 %v1857
    %v1890 = vunpack.c.l.b16 %v1858
    %v1891 = vunpack.c.h.b16 %v1856
    %v1892 = vunpack.c.h.b16 %v1857
    %v1893 = vunpack.c.h.b16 %v1858
    %v1894 = vpack.c.b16 %v1889, %v1888
    %v1895 = vpack.c.b16 %v1890, %v1890
    %v1896 = vpack.c.b16 %v1892, %v1891
    %v1897 = vpack.c.b16 %v1893, %v1893
    %v1898 = vlaneseq
    %v1899 = vshrl.u32 %v1898, 7
    %v1900 = vlaneseq
    %v1901 = vand.u32 %v1900, 127
    %vm1902 = vcmp.le.s32.totalorder %v1901, %v1899
    %v1903 = vsel %vm1902, 0.0, -1e+09
    %vm1904 = vcmask 523264
    %v1906 = vsel %vm1904, %v1868, 0
    %v1909 = vsel %vm1904, %v1881, 0
    %1911 = vmatprep.subr.bf16.mxu0 0
    %1912 = vmatpush1.bf16.xpose.msra.mxu0 %v1909
    %1913 = vmatprep.subr.bf16.mxu0 0
    %1914 = vmatpush1.bf16.xpose.msra.mxu0 0
    %1915 = vmatprep.subr.bf16.mxu0 0
    %1916 = vmatpush1.bf16.xpose.msra.mxu0 0
    %1917 = vmatprep.subr.bf16.mxu0 0
    %1918 = vmatpush1.bf16.xpose.msra.mxu0 0
    %1919 = vmatprep.subr.bf16.mxu0 0
    %1920 = vmatpush1.bf16.xpose.msra.mxu0 0
    %1921 = vmatprep.subr.bf16.mxu0 0
    %1922 = vmatpush1.bf16.xpose.msra.mxu0 0
    %1923 = vmatprep.subr.bf16.mxu0 0
    %1924 = vmatpush1.bf16.xpose.msra.mxu0 0
    %1925 = vmatprep.subr.bf16.mxu0 0
    %1926 = vmatpush1.bf16.xpose.msra.mxu0 0
    %1927 = vmatprep.subr.bf16.mxu0 0
    %1928 = vmatpush1.bf16.xpose.msra.mxu0 0
    %1929 = vmatprep.subr.bf16.mxu0 0
    %1930 = vmatpush1.bf16.xpose.msra.mxu0 0
    %1931 = vmatprep.subr.bf16.mxu0 0
    %1932 = vmatpush1.bf16.xpose.msra.mxu0 0
    %1933 = vmatprep.subr.bf16.mxu0 0
    %1934 = vmatpush1.bf16.xpose.msra.mxu0 0
    %1935 = vmatprep.subr.bf16.mxu0 0
    %1936 = vmatpush1.bf16.xpose.msra.mxu0 0
    %1937 = vmatprep.subr.bf16.mxu0 0
    %1938 = vmatpush1.bf16.xpose.msra.mxu0 0
    %1939 = vmatprep.subr.bf16.mxu0 0
    %1940 = vmatpush1.bf16.xpose.msra.mxu0 0
    %1941 = vmatprep.subr.bf16.mxu0 0
    %1942 = vmatpush1.bf16.xpose.msra.mxu0 0
    %1943 = vmatprep.mubr.bf16.mxu0 0
    %1944 = vmatmul.mubr.bf16.gmra.mrb[0].mxu0 %v1906
    %v1945 = vpop.f32.mrb[0].mxu0
    %v1946 = vadd.f32 %v1903, %v1945
    %v1947 = vpop.f32.mrb[0].mxu0
    %v1948 = vpop.f32.mrb[0].mxu0
    %v1949 = vpop.f32.mrb[0].mxu0
    %1950 = vdwg.mxu0
    %v1952 = vsel %vm1904, %v1870, 0
    %v1955 = vsel %vm1904, %v1883, 0
    %1957 = vmatprep.subr.bf16.mxu0 0
    %1958 = vmatpush1.bf16.xpose.msra.mxu0 %v1955
    %1959 = vmatprep.subr.bf16.mxu0 0
    %1960 = vmatpush1.bf16.xpose.msra.mxu0 0
    %1961 = vmatprep.subr.bf16.mxu0 0
    %1962 = vmatpush1.bf16.xpose.msra.mxu0 0
    %1963 = vmatprep.subr.bf16.mxu0 0
    %1964 = vmatpush1.bf16.xpose.msra.mxu0 0
    %1965 = vmatprep.subr.bf16.mxu0 0
    %1966 = vmatpush1.bf16.xpose.msra.mxu0 0
    %1967 = vmatprep.subr.bf16.mxu0 0
    %1968 = vmatpush1.bf16.xpose.msra.mxu0 0
    %1969 = vmatprep.subr.bf16.mxu0 0
    %1970 = vmatpush1.bf16.xpose.msra.mxu0 0
    %1971 = vmatprep.subr.bf16.mxu0 0
    %1972 = vmatpush1.bf16.xpose.msra.mxu0 0
    %1973 = vmatprep.subr.bf16.mxu0 0
    %1974 = vmatpush1.bf16.xpose.msra.mxu0 0
    %1975 = vmatprep.subr.bf16.mxu0 0
    %1976 = vmatpush1.bf16.xpose.msra.mxu0 0
    %1977 = vmatprep.subr.bf16.mxu0 0
    %1978 = vmatpush1.bf16.xpose.msra.mxu0 0
    %1979 = vmatprep.subr.bf16.mxu0 0
    %1980 = vmatpush1.bf16.xpose.msra.mxu0 0
    %1981 = vmatprep.subr.bf16.mxu0 0
    %1982 = vmatpush1.bf16.xpose.msra.mxu0 0
    %1983 = vmatprep.subr.bf16.mxu0 0
    %1984 = vmatpush1.bf16.xpose.msra.mxu0 0
    %1985 = vmatprep.subr.bf16.mxu0 0
    %1986 = vmatpush1.bf16.xpose.msra.mxu0 0
    %1987 = vmatprep.subr.bf16.mxu0 0
    %1988 = vmatpush1.bf16.xpose.msra.mxu0 0
    %1989 = vmatprep.mubr.bf16.mxu0 0
    %1990 = vmatmul.mubr.bf16.gmra.mrb[0].mxu0 %v1952
    %v1991 = vpop.f32.mrb[0].mxu0
    %v1992 = vadd.f32 %v1903, %v1991
    %v1993 = vpop.f32.mrb[0].mxu0
    %v1994 = vpop.f32.mrb[0].mxu0
    %v1995 = vpop.f32.mrb[0].mxu0
    %1996 = vdwg.mxu0
    %vm1997 = vcmask 64512
    %v1998 = vsel %vm1997, %v1946, -inf
    %1999 = vmax.xlane.f32.xlu0 %v1998
    %v2000 = vpop.xlane.xlu0 %1999
    %v2001 = vsel %vm1997, %v1992, -inf
    %2002 = vmax.xlane.f32.xlu0 %v2001
    %v2003 = vpop.xlane.xlu0 %2002
    %v2004 = vsub.f32 %v1946, %v2000
    %v2005 = vsub.f32 %v1992, %v2003
    %v2006 = vmul.f32 %v2004, 1.442695
    %v2007 = vpow.pop %v2006
    %v2008 = vmul.f32 %v2005, 1.442695
    %v2009 = vpow.pop %v2008
    %v2010 = vsel %vm1997, %v2007, 0.0
    %2011 = vadd.xlane.f32.xlu0 %v2010
    %v2012 = vpop.xlane.xlu0 %2011
    %v2013 = vsel %vm1997, %v2009, 0.0
    %2014 = vadd.xlane.f32.xlu0 %v2013
    %v2015 = vpop.xlane.xlu0 %2014
    %v2016 = vrcp.pop %v2012
    %v2017 = vrcp.pop %v2015
    %v2018 = vmul.f32 %v2007, %v2016
    %v2019 = vmul.f32 %v2009, %v2017
    %v2020 = vpack.c.bf16 %v2018, %v2018
    %v2021 = vpack.c.bf16 %v2019, %v2019
    %v2023 = vsel %vm1997, %v2020, 0
    %vm2025 = vcmask 1043456
    %v2027 = vsel %vm2025, %v1894, 0
    %2029 = vmatprep.subr.bf16.mxu0 0
    %2030 = vmatpush1.bf16.msra.mxu0 %v2027
    %2031 = vmatprep.subr.bf16.mxu0 0
    %2032 = vmatpush1.bf16.msra.mxu0 0
    %2033 = vmatprep.subr.bf16.mxu0 0
    %2034 = vmatpush1.bf16.msra.mxu0 0
    %2035 = vmatprep.subr.bf16.mxu0 0
    %2036 = vmatpush1.bf16.msra.mxu0 0
    %2037 = vmatprep.subr.bf16.mxu0 0
    %2038 = vmatpush1.bf16.msra.mxu0 0
    %2039 = vmatprep.subr.bf16.mxu0 0
    %2040 = vmatpush1.bf16.msra.mxu0 0
    %2041 = vmatprep.subr.bf16.mxu0 0
    %2042 = vmatpush1.bf16.msra.mxu0 0
    %2043 = vmatprep.subr.bf16.mxu0 0
    %2044 = vmatpush1.bf16.msra.mxu0 0
    %2045 = vmatprep.subr.bf16.mxu0 0
    %2046 = vmatpush1.bf16.msra.mxu0 0
    %2047 = vmatprep.subr.bf16.mxu0 0
    %2048 = vmatpush1.bf16.msra.mxu0 0
    %2049 = vmatprep.subr.bf16.mxu0 0
    %2050 = vmatpush1.bf16.msra.mxu0 0
    %2051 = vmatprep.subr.bf16.mxu0 0
    %2052 = vmatpush1.bf16.msra.mxu0 0
    %2053 = vmatprep.subr.bf16.mxu0 0
    %2054 = vmatpush1.bf16.msra.mxu0 0
    %2055 = vmatprep.subr.bf16.mxu0 0
    %2056 = vmatpush1.bf16.msra.mxu0 0
    %2057 = vmatprep.subr.bf16.mxu0 0
    %2058 = vmatpush1.bf16.msra.mxu0 0
    %2059 = vmatprep.subr.bf16.mxu0 0
    %2060 = vmatpush1.bf16.msra.mxu0 0
    %2061 = vmatprep.mubr.bf16.mxu0 0
    %2062 = vmatmul.mubr.bf16.gmra.mrb[0].mxu0 %v2023
    %v2063 = vpop.f32.mrb[0].mxu0
    %v2064 = vadd.f32 0.0, %v2063
    %v2065 = vpop.f32.mrb[0].mxu0
    %v2066 = vpop.f32.mrb[0].mxu0
    %v2067 = vpop.f32.mrb[0].mxu0
    %2068 = vdwg.mxu0
    %v2070 = vsel %vm1997, %v2021, 0
    %v2073 = vsel %vm2025, %v1896, 0
    %2075 = vmatprep.subr.bf16.mxu0 0
    %2076 = vmatpush1.bf16.msra.mxu0 %v2073
    %2077 = vmatprep.subr.bf16.mxu0 0
    %2078 = vmatpush1.bf16.msra.mxu0 0
    %2079 = vmatprep.subr.bf16.mxu0 0
    %2080 = vmatpush1.bf16.msra.mxu0 0
    %2081 = vmatprep.subr.bf16.mxu0 0
    %2082 = vmatpush1.bf16.msra.mxu0 0
    %2083 = vmatprep.subr.bf16.mxu0 0
    %2084 = vmatpush1.bf16.msra.mxu0 0
    %2085 = vmatprep.subr.bf16.mxu0 0
    %2086 = vmatpush1.bf16.msra.mxu0 0
    %2087 = vmatprep.subr.bf16.mxu0 0
    %2088 = vmatpush1.bf16.msra.mxu0 0
    %2089 = vmatprep.subr.bf16.mxu0 0
    %2090 = vmatpush1.bf16.msra.mxu0 0
    %2091 = vmatprep.subr.bf16.mxu0 0
    %2092 = vmatpush1.bf16.msra.mxu0 0
    %2093 = vmatprep.subr.bf16.mxu0 0
    %2094 = vmatpush1.bf16.msra.mxu0 0
    %2095 = vmatprep.subr.bf16.mxu0 0
    %2096 = vmatpush1.bf16.msra.mxu0 0
    %2097 = vmatprep.subr.bf16.mxu0 0
    %2098 = vmatpush1.bf16.msra.mxu0 0
    %2099 = vmatprep.subr.bf16.mxu0 0
    %2100 = vmatpush1.bf16.msra.mxu0 0
    %2101 = vmatprep.subr.bf16.mxu0 0
    %2102 = vmatpush1.bf16.msra.mxu0 0
    %2103 = vmatprep.subr.bf16.mxu0 0
    %2104 = vmatpush1.bf16.msra.mxu0 0
    %2105 = vmatprep.subr.bf16.mxu0 0
    %2106 = vmatpush1.bf16.msra.mxu0 0
    %2107 = vmatprep.mubr.bf16.mxu0 0
    %2108 = vmatmul.mubr.bf16.gmra.mrb[0].mxu0 %v2070
    %v2109 = vpop.f32.mrb[0].mxu0
    %v2110 = vadd.f32 0.0, %v2109
    %v2111 = vpop.f32.mrb[0].mxu0
    %v2112 = vpop.f32.mrb[0].mxu0
    %v2113 = vpop.f32.mrb[0].mxu0
    %2114 = vdwg.mxu0
    %v2115 = vpack.c.b16 %v1862, %v1862
    %2116 = vrot.lane.b32.xlu0 %v2115, 64
    %v2117 = vpop.permute.xlu0 %2116
    %v2118 = vpack.c.b16 %v1875, %v1875
    %2119 = vrot.lane.b32.xlu0 %v2118, 64
    %v2120 = vpop.permute.xlu0 %2119
    %v2122 = vsel %vm1904, %v2117, 0
    %v2125 = vsel %vm1904, %v2120, 0
    %2127 = vmatprep.subr.bf16.mxu0 0
    %2128 = vmatpush1.bf16.xpose.msra.mxu0 %v2125
    %2129 = vmatprep.subr.bf16.mxu0 0
    %2130 = vmatpush1.bf16.xpose.msra.mxu0 0
    %2131 = vmatprep.subr.bf16.mxu0 0
    %2132 = vmatpush1.bf16.xpose.msra.mxu0 0
    %2133 = vmatprep.subr.bf16.mxu0 0
    %2134 = vmatpush1.bf16.xpose.msra.mxu0 0
    %2135 = vmatprep.subr.bf16.mxu0 0
    %2136 = vmatpush1.bf16.xpose.msra.mxu0 0
    %2137 = vmatprep.subr.bf16.mxu0 0
    %2138 = vmatpush1.bf16.xpose.msra.mxu0 0
    %2139 = vmatprep.subr.bf16.mxu0 0
    %2140 = vmatpush1.bf16.xpose.msra.mxu0 0
    %2141 = vmatprep.subr.bf16.mxu0 0
    %2142 = vmatpush1.bf16.xpose.msra.mxu0 0
    %2143 = vmatprep.subr.bf16.mxu0 0
    %2144 = vmatpush1.bf16.xpose.msra.mxu0 0
    %2145 = vmatprep.subr.bf16.mxu0 0
    %2146 = vmatpush1.bf16.xpose.msra.mxu0 0
    %2147 = vmatprep.subr.bf16.mxu0 0
    %2148 = vmatpush1.bf16.xpose.msra.mxu0 0
    %2149 = vmatprep.subr.bf16.mxu0 0
    %2150 = vmatpush1.bf16.xpose.msra.mxu0 0
    %2151 = vmatprep.subr.bf16.mxu0 0
    %2152 = vmatpush1.bf16.xpose.msra.mxu0 0
    %2153 = vmatprep.subr.bf16.mxu0 0
    %2154 = vmatpush1.bf16.xpose.msra.mxu0 0
    %2155 = vmatprep.subr.bf16.mxu0 0
    %2156 = vmatpush1.bf16.xpose.msra.mxu0 0
    %2157 = vmatprep.subr.bf16.mxu0 0
    %2158 = vmatpush1.bf16.xpose.msra.mxu0 0
    %2159 = vmatprep.mubr.bf16.mxu0 0
    %2160 = vmatmul.mubr.bf16.gmra.mrb[0].mxu0 %v2122
    %v2161 = vpop.f32.mrb[0].mxu0
    %v2162 = vadd.f32 %v1903, %v2161
    %v2163 = vpop.f32.mrb[0].mxu0
    %v2164 = vpop.f32.mrb[0].mxu0
    %v2165 = vpop.f32.mrb[0].mxu0
    %2166 = vdwg.mxu0
    %v2167 = vpack.c.b16 %v1865, %v1865
    %2168 = vrot.lane.b32.xlu0 %v2167, 64
    %v2169 = vpop.permute.xlu0 %2168
    %v2170 = vpack.c.b16 %v1878, %v1878
    %2171 = vrot.lane.b32.xlu0 %v2170, 64
    %v2172 = vpop.permute.xlu0 %2171
    %v2174 = vsel %vm1904, %v2169, 0
    %v2177 = vsel %vm1904, %v2172, 0
    %2179 = vmatprep.subr.bf16.mxu0 0
    %2180 = vmatpush1.bf16.xpose.msra.mxu0 %v2177
    %2181 = vmatprep.subr.bf16.mxu0 0
    %2182 = vmatpush1.bf16.xpose.msra.mxu0 0
    %2183 = vmatprep.subr.bf16.mxu0 0
    %2184 = vmatpush1.bf16.xpose.msra.mxu0 0
    %2185 = vmatprep.subr.bf16.mxu0 0
    %2186 = vmatpush1.bf16.xpose.msra.mxu0 0
    %2187 = vmatprep.subr.bf16.mxu0 0
    %2188 = vmatpush1.bf16.xpose.msra.mxu0 0
    %2189 = vmatprep.subr.bf16.mxu0 0
    %2190 = vmatpush1.bf16.xpose.msra.mxu0 0
    %2191 = vmatprep.subr.bf16.mxu0 0
    %2192 = vmatpush1.bf16.xpose.msra.mxu0 0
    %2193 = vmatprep.subr.bf16.mxu0 0
    %2194 = vmatpush1.bf16.xpose.msra.mxu0 0
    %2195 = vmatprep.subr.bf16.mxu0 0
    %2196 = vmatpush1.bf16.xpose.msra.mxu0 0
    %2197 = vmatprep.subr.bf16.mxu0 0
    %2198 = vmatpush1.bf16.xpose.msra.mxu0 0
    %2199 = vmatprep.subr.bf16.mxu0 0
    %2200 = vmatpush1.bf16.xpose.msra.mxu0 0
    %2201 = vmatprep.subr.bf16.mxu0 0
    %2202 = vmatpush1.bf16.xpose.msra.mxu0 0
    %2203 = vmatprep.subr.bf16.mxu0 0
    %2204 = vmatpush1.bf16.xpose.msra.mxu0 0
    %2205 = vmatprep.subr.bf16.mxu0 0
    %2206 = vmatpush1.bf16.xpose.msra.mxu0 0
    %2207 = vmatprep.subr.bf16.mxu0 0
    %2208 = vmatpush1.bf16.xpose.msra.mxu0 0
    %2209 = vmatprep.subr.bf16.mxu0 0
    %2210 = vmatpush1.bf16.xpose.msra.mxu0 0
    %2211 = vmatprep.mubr.bf16.mxu0 0
    %2212 = vmatmul.mubr.bf16.gmra.mrb[0].mxu0 %v2174
    %v2213 = vpop.f32.mrb[0].mxu0
    %v2214 = vadd.f32 %v1903, %v2213
    %v2215 = vpop.f32.mrb[0].mxu0
    %v2216 = vpop.f32.mrb[0].mxu0
    %v2217 = vpop.f32.mrb[0].mxu0
    %2218 = vdwg.mxu0
    %v2219 = vsel %vm1997, %v2162, -inf
    %2220 = vmax.xlane.f32.xlu0 %v2219
    %v2221 = vpop.xlane.xlu0 %2220
    %v2222 = vsel %vm1997, %v2214, -inf
    %2223 = vmax.xlane.f32.xlu0 %v2222
    %v2224 = vpop.xlane.xlu0 %2223
    %v2225 = vsub.f32 %v2162, %v2221
    %v2226 = vsub.f32 %v2214, %v2224
    %v2227 = vmul.f32 %v2225, 1.442695
    %v2228 = vpow.pop %v2227
    %v2229 = vmul.f32 %v2226, 1.442695
    %v2230 = vpow.pop %v2229
    %v2231 = vsel %vm1997, %v2228, 0.0
    %2232 = vadd.xlane.f32.xlu0 %v2231
    %v2233 = vpop.xlane.xlu0 %2232
    %v2234 = vsel %vm1997, %v2230, 0.0
    %2235 = vadd.xlane.f32.xlu0 %v2234
    %v2236 = vpop.xlane.xlu0 %2235
    %v2237 = vrcp.pop %v2233
    %v2238 = vrcp.pop %v2236
    %v2239 = vmul.f32 %v2228, %v2237
    %v2240 = vmul.f32 %v2230, %v2238
    %v2241 = vpack.c.bf16 %v2239, %v2239
    %v2242 = vpack.c.bf16 %v2240, %v2240
    %v2243 = vpack.c.b16 %v1888, %v1888
    %2244 = vrot.lane.b32.xlu0 %v2243, 64
    %v2245 = vpop.permute.xlu0 %2244
    %v2247 = vsel %vm1997, %v2241, 0
    %v2250 = vsel %vm2025, %v2245, 0
    %2252 = vmatprep.subr.bf16.mxu0 0
    %2253 = vmatpush1.bf16.msra.mxu0 %v2250
    %2254 = vmatprep.subr.bf16.mxu0 0
    %2255 = vmatpush1.bf16.msra.mxu0 0
    %2256 = vmatprep.subr.bf16.mxu0 0
    %2257 = vmatpush1.bf16.msra.mxu0 0
    %2258 = vmatprep.subr.bf16.mxu0 0
    %2259 = vmatpush1.bf16.msra.mxu0 0
    %2260 = vmatprep.subr.bf16.mxu0 0
    %2261 = vmatpush1.bf16.msra.mxu0 0
    %2262 = vmatprep.subr.bf16.mxu0 0
    %2263 = vmatpush1.bf16.msra.mxu0 0
    %2264 = vmatprep.subr.bf16.mxu0 0
    %2265 = vmatpush1.bf16.msra.mxu0 0
    %2266 = vmatprep.subr.bf16.mxu0 0
    %2267 = vmatpush1.bf16.msra.mxu0 0
    %2268 = vmatprep.subr.bf16.mxu0 0
    %2269 = vmatpush1.bf16.msra.mxu0 0
    %2270 = vmatprep.subr.bf16.mxu0 0
    %2271 = vmatpush1.bf16.msra.mxu0 0
    %2272 = vmatprep.subr.bf16.mxu0 0
    %2273 = vmatpush1.bf16.msra.mxu0 0
    %2274 = vmatprep.subr.bf16.mxu0 0
    %2275 = vmatpush1.bf16.msra.mxu0 0
    %2276 = vmatprep.subr.bf16.mxu0 0
    %2277 = vmatpush1.bf16.msra.mxu0 0
    %2278 = vmatprep.subr.bf16.mxu0 0
    %2279 = vmatpush1.bf16.msra.mxu0 0
    %2280 = vmatprep.subr.bf16.mxu0 0
    %2281 = vmatpush1.bf16.msra.mxu0 0
    %2282 = vmatprep.subr.bf16.mxu0 0
    %2283 = vmatpush1.bf16.msra.mxu0 0
    %2284 = vmatprep.mubr.bf16.mxu0 0
    %2285 = vmatmul.mubr.bf16.gmra.mrb[0].mxu0 %v2247
    %v2286 = vpop.f32.mrb[0].mxu0
    %v2287 = vadd.f32 0.0, %v2286
    %v2288 = vpop.f32.mrb[0].mxu0
    %v2289 = vpop.f32.mrb[0].mxu0
    %v2290 = vpop.f32.mrb[0].mxu0
    %2291 = vdwg.mxu0
    %v2292 = vpack.c.b16 %v1891, %v1891
    %2293 = vrot.lane.b32.xlu0 %v2292, 64
    %v2294 = vpop.permute.xlu0 %2293
    %v2296 = vsel %vm1997, %v2242, 0
    %v2299 = vsel %vm2025, %v2294, 0
    %2301 = vmatprep.subr.bf16.mxu0 0
    %2302 = vmatpush1.bf16.msra.mxu0 %v2299
    %2303 = vmatprep.subr.bf16.mxu0 0
    %2304 = vmatpush1.bf16.msra.mxu0 0
    %2305 = vmatprep.subr.bf16.mxu0 0
    %2306 = vmatpush1.bf16.msra.mxu0 0
    %2307 = vmatprep.subr.bf16.mxu0 0
    %2308 = vmatpush1.bf16.msra.mxu0 0
    %2309 = vmatprep.subr.bf16.mxu0 0
    %2310 = vmatpush1.bf16.msra.mxu0 0
    %2311 = vmatprep.subr.bf16.mxu0 0
    %2312 = vmatpush1.bf16.msra.mxu0 0
    %2313 = vmatprep.subr.bf16.mxu0 0
    %2314 = vmatpush1.bf16.msra.mxu0 0
    %2315 = vmatprep.subr.bf16.mxu0 0
    %2316 = vmatpush1.bf16.msra.mxu0 0
    %2317 = vmatprep.subr.bf16.mxu0 0
    %2318 = vmatpush1.bf16.msra.mxu0 0
    %2319 = vmatprep.subr.bf16.mxu0 0
    %2320 = vmatpush1.bf16.msra.mxu0 0
    %2321 = vmatprep.subr.bf16.mxu0 0
    %2322 = vmatpush1.bf16.msra.mxu0 0
    %2323 = vmatprep.subr.bf16.mxu0 0
    %2324 = vmatpush1.bf16.msra.mxu0 0
    %2325 = vmatprep.subr.bf16.mxu0 0
    %2326 = vmatpush1.bf16.msra.mxu0 0
    %2327 = vmatprep.subr.bf16.mxu0 0
    %2328 = vmatpush1.bf16.msra.mxu0 0
    %2329 = vmatprep.subr.bf16.mxu0 0
    %2330 = vmatpush1.bf16.msra.mxu0 0
    %2331 = vmatprep.subr.bf16.mxu0 0
    %2332 = vmatpush1.bf16.msra.mxu0 0
    %2333 = vmatprep.mubr.bf16.mxu0 0
    %2334 = vmatmul.mubr.bf16.gmra.mrb[0].mxu0 %v2296
    %v2335 = vpop.f32.mrb[0].mxu0
    %v2336 = vadd.f32 0.0, %v2335
    %v2337 = vpop.f32.mrb[0].mxu0
    %v2338 = vpop.f32.mrb[0].mxu0
    %v2339 = vpop.f32.mrb[0].mxu0
    %2340 = vdwg.mxu0
    %v2341 = vrot.slane %v1868, 4
    %v2342 = vrot.slane %v1881, 4
    %v2344 = vsel %vm1904, %v2341, 0
    %v2347 = vsel %vm1904, %v2342, 0
    %2349 = vmatprep.subr.bf16.mxu0 0
    %2350 = vmatpush1.bf16.xpose.msra.mxu0 %v2347
    %2351 = vmatprep.subr.bf16.mxu0 0
    %2352 = vmatpush1.bf16.xpose.msra.mxu0 0
    %2353 = vmatprep.subr.bf16.mxu0 0
    %2354 = vmatpush1.bf16.xpose.msra.mxu0 0
    %2355 = vmatprep.subr.bf16.mxu0 0
    %2356 = vmatpush1.bf16.xpose.msra.mxu0 0
    %2357 = vmatprep.subr.bf16.mxu0 0
    %2358 = vmatpush1.bf16.xpose.msra.mxu0 0
    %2359 = vmatprep.subr.bf16.mxu0 0
    %2360 = vmatpush1.bf16.xpose.msra.mxu0 0
    %2361 = vmatprep.subr.bf16.mxu0 0
    %2362 = vmatpush1.bf16.xpose.msra.mxu0 0
    %2363 = vmatprep.subr.bf16.mxu0 0
    %2364 = vmatpush1.bf16.xpose.msra.mxu0 0
    %2365 = vmatprep.subr.bf16.mxu0 0
    %2366 = vmatpush1.bf16.xpose.msra.mxu0 0
    %2367 = vmatprep.subr.bf16.mxu0 0
    %2368 = vmatpush1.bf16.xpose.msra.mxu0 0
    %2369 = vmatprep.subr.bf16.mxu0 0
    %2370 = vmatpush1.bf16.xpose.msra.mxu0 0
    %2371 = vmatprep.subr.bf16.mxu0 0
    %2372 = vmatpush1.bf16.xpose.msra.mxu0 0
    %2373 = vmatprep.subr.bf16.mxu0 0
    %2374 = vmatpush1.bf16.xpose.msra.mxu0 0
    %2375 = vmatprep.subr.bf16.mxu0 0
    %2376 = vmatpush1.bf16.xpose.msra.mxu0 0
    %2377 = vmatprep.subr.bf16.mxu0 0
    %2378 = vmatpush1.bf16.xpose.msra.mxu0 0
    %2379 = vmatprep.subr.bf16.mxu0 0
    %2380 = vmatpush1.bf16.xpose.msra.mxu0 0
    %2381 = vmatprep.mubr.bf16.mxu0 0
    %2382 = vmatmul.mubr.bf16.gmra.mrb[0].mxu0 %v2344
    %v2383 = vpop.f32.mrb[0].mxu0
    %v2384 = vadd.f32 %v1903, %v2383
    %v2385 = vpop.f32.mrb[0].mxu0
    %v2386 = vpop.f32.mrb[0].mxu0
    %v2387 = vpop.f32.mrb[0].mxu0
    %2388 = vdwg.mxu0
    %v2389 = vrot.slane %v1870, 4
    %v2390 = vrot.slane %v1883, 4
    %v2392 = vsel %vm1904, %v2389, 0
    %v2395 = vsel %vm1904, %v2390, 0
    %2397 = vmatprep.subr.bf16.mxu0 0
    %2398 = vmatpush1.bf16.xpose.msra.mxu0 %v2395
    %2399 = vmatprep.subr.bf16.mxu0 0
    %2400 = vmatpush1.bf16.xpose.msra.mxu0 0
    %2401 = vmatprep.subr.bf16.mxu0 0
    %2402 = vmatpush1.bf16.xpose.msra.mxu0 0
    %2403 = vmatprep.subr.bf16.mxu0 0
    %2404 = vmatpush1.bf16.xpose.msra.mxu0 0
    %2405 = vmatprep.subr.bf16.mxu0 0
    %2406 = vmatpush1.bf16.xpose.msra.mxu0 0
    %2407 = vmatprep.subr.bf16.mxu0 0
    %2408 = vmatpush1.bf16.xpose.msra.mxu0 0
    %2409 = vmatprep.subr.bf16.mxu0 0
    %2410 = vmatpush1.bf16.xpose.msra.mxu0 0
    %2411 = vmatprep.subr.bf16.mxu0 0
    %2412 = vmatpush1.bf16.xpose.msra.mxu0 0
    %2413 = vmatprep.subr.bf16.mxu0 0
    %2414 = vmatpush1.bf16.xpose.msra.mxu0 0
    %2415 = vmatprep.subr.bf16.mxu0 0
    %2416 = vmatpush1.bf16.xpose.msra.mxu0 0
    %2417 = vmatprep.subr.bf16.mxu0 0
    %2418 = vmatpush1.bf16.xpose.msra.mxu0 0
    %2419 = vmatprep.subr.bf16.mxu0 0
    %2420 = vmatpush1.bf16.xpose.msra.mxu0 0
    %2421 = vmatprep.subr.bf16.mxu0 0
    %2422 = vmatpush1.bf16.xpose.msra.mxu0 0
    %2423 = vmatprep.subr.bf16.mxu0 0
    %2424 = vmatpush1.bf16.xpose.msra.mxu0 0
    %2425 = vmatprep.subr.bf16.mxu0 0
    %2426 = vmatpush1.bf16.xpose.msra.mxu0 0
    %2427 = vmatprep.subr.bf16.mxu0 0
    %2428 = vmatpush1.bf16.xpose.msra.mxu0 0
    %2429 = vmatprep.mubr.bf16.mxu0 0
    %2430 = vmatmul.mubr.bf16.gmra.mrb[0].mxu0 %v2392
    %v2431 = vpop.f32.mrb[0].mxu0
    %v2432 = vadd.f32 %v1903, %v2431
    %v2433 = vpop.f32.mrb[0].mxu0
    %v2434 = vpop.f32.mrb[0].mxu0
    %v2435 = vpop.f32.mrb[0].mxu0
    %2436 = vdwg.mxu0
    %v2437 = vsel %vm1997, %v2384, -inf
    %2438 = vmax.xlane.f32.xlu0 %v2437
    %v2439 = vpop.xlane.xlu0 %2438
    %v2440 = vsel %vm1997, %v2432, -inf
    %2441 = vmax.xlane.f32.xlu0 %v2440
    %v2442 = vpop.xlane.xlu0 %2441
    %v2443 = vsub.f32 %v2384, %v2439
    %v2444 = vsub.f32 %v2432, %v2442
    %v2445 = vmul.f32 %v2443, 1.442695
    %v2446 = vpow.pop %v2445
    %v2447 = vmul.f32 %v2444, 1.442695
    %v2448 = vpow.pop %v2447
    %v2449 = vsel %vm1997, %v2446, 0.0
    %2450 = vadd.xlane.f32.xlu0 %v2449
    %v2451 = vpop.xlane.xlu0 %2450
    %v2452 = vsel %vm1997, %v2448, 0.0
    %2453 = vadd.xlane.f32.xlu0 %v2452
    %v2454 = vpop.xlane.xlu0 %2453
    %v2455 = vrcp.pop %v2451
    %v2456 = vrcp.pop %v2454
    %v2457 = vmul.f32 %v2446, %v2455
    %v2458 = vmul.f32 %v2448, %v2456
    %v2459 = vpack.c.bf16 %v2457, %v2457
    %v2460 = vpack.c.bf16 %v2458, %v2458
    %v2461 = vrot.slane %v1894, 4
    %v2463 = vsel %vm1997, %v2459, 0
    %v2466 = vsel %vm2025, %v2461, 0
    %2468 = vmatprep.subr.bf16.mxu0 0
    %2469 = vmatpush1.bf16.msra.mxu0 %v2466
    %2470 = vmatprep.subr.bf16.mxu0 0
    %2471 = vmatpush1.bf16.msra.mxu0 0
    %2472 = vmatprep.subr.bf16.mxu0 0
    %2473 = vmatpush1.bf16.msra.mxu0 0
    %2474 = vmatprep.subr.bf16.mxu0 0
    %2475 = vmatpush1.bf16.msra.mxu0 0
    %2476 = vmatprep.subr.bf16.mxu0 0
    %2477 = vmatpush1.bf16.msra.mxu0 0
    %2478 = vmatprep.subr.bf16.mxu0 0
    %2479 = vmatpush1.bf16.msra.mxu0 0
    %2480 = vmatprep.subr.bf16.mxu0 0
    %2481 = vmatpush1.bf16.msra.mxu0 0
    %2482 = vmatprep.subr.bf16.mxu0 0
    %2483 = vmatpush1.bf16.msra.mxu0 0
    %2484 = vmatprep.subr.bf16.mxu0 0
    %2485 = vmatpush1.bf16.msra.mxu0 0
    %2486 = vmatprep.subr.bf16.mxu0 0
    %2487 = vmatpush1.bf16.msra.mxu0 0
    %2488 = vmatprep.subr.bf16.mxu0 0
    %2489 = vmatpush1.bf16.msra.mxu0 0
    %2490 = vmatprep.subr.bf16.mxu0 0
    %2491 = vmatpush1.bf16.msra.mxu0 0
    %2492 = vmatprep.subr.bf16.mxu0 0
    %2493 = vmatpush1.bf16.msra.mxu0 0
    %2494 = vmatprep.subr.bf16.mxu0 0
    %2495 = vmatpush1.bf16.msra.mxu0 0
    %2496 = vmatprep.subr.bf16.mxu0 0
    %2497 = vmatpush1.bf16.msra.mxu0 0
    %2498 = vmatprep.subr.bf16.mxu0 0
    %2499 = vmatpush1.bf16.msra.mxu0 0
    %2500 = vmatprep.mubr.bf16.mxu0 0
    %2501 = vmatmul.mubr.bf16.gmra.mrb[0].mxu0 %v2463
    %v2502 = vpop.f32.mrb[0].mxu0
    %v2503 = vadd.f32 0.0, %v2502
    %v2504 = vpop.f32.mrb[0].mxu0
    %v2505 = vpop.f32.mrb[0].mxu0
    %v2506 = vpop.f32.mrb[0].mxu0
    %2507 = vdwg.mxu0
    %v2508 = vrot.slane %v1896, 4
    %v2510 = vsel %vm1997, %v2460, 0
    %v2513 = vsel %vm2025, %v2508, 0
    %2515 = vmatprep.subr.bf16.mxu0 0
    %2516 = vmatpush1.bf16.msra.mxu0 %v2513
    %2517 = vmatprep.subr.bf16.mxu0 0
    %2518 = vmatpush1.bf16.msra.mxu0 0
    %2519 = vmatprep.subr.bf16.mxu0 0
    %2520 = vmatpush1.bf16.msra.mxu0 0
    %2521 = vmatprep.subr.bf16.mxu0 0
    %2522 = vmatpush1.bf16.msra.mxu0 0
    %2523 = vmatprep.subr.bf16.mxu0 0
    %2524 = vmatpush1.bf16.msra.mxu0 0
    %2525 = vmatprep.subr.bf16.mxu0 0
    %2526 = vmatpush1.bf16.msra.mxu0 0
    %2527 = vmatprep.subr.bf16.mxu0 0
    %2528 = vmatpush1.bf16.msra.mxu0 0
    %2529 = vmatprep.subr.bf16.mxu0 0
    %2530 = vmatpush1.bf16.msra.mxu0 0
    %2531 = vmatprep.subr.bf16.mxu0 0
    %2532 = vmatpush1.bf16.msra.mxu0 0
    %2533 = vmatprep.subr.bf16.mxu0 0
    %2534 = vmatpush1.bf16.msra.mxu0 0
    %2535 = vmatprep.subr.bf16.mxu0 0
    %2536 = vmatpush1.bf16.msra.mxu0 0
    %2537 = vmatprep.subr.bf16.mxu0 0
    %2538 = vmatpush1.bf16.msra.mxu0 0
    %2539 = vmatprep.subr.bf16.mxu0 0
    %2540 = vmatpush1.bf16.msra.mxu0 0
    %2541 = vmatprep.subr.bf16.mxu0 0
    %2542 = vmatpush1.bf16.msra.mxu0 0
    %2543 = vmatprep.subr.bf16.mxu0 0
    %2544 = vmatpush1.bf16.msra.mxu0 0
    %2545 = vmatprep.subr.bf16.mxu0 0
    %2546 = vmatpush1.bf16.msra.mxu0 0
    %2547 = vmatprep.mubr.bf16.mxu0 0
    %2548 = vmatmul.mubr.bf16.gmra.mrb[0].mxu0 %v2510
    %v2549 = vpop.f32.mrb[0].mxu0
    %v2550 = vadd.f32 0.0, %v2549
    %v2551 = vpop.f32.mrb[0].mxu0
    %v2552 = vpop.f32.mrb[0].mxu0
    %v2553 = vpop.f32.mrb[0].mxu0
    %2554 = vdwg.mxu0
    %2555 = vrot.lane.b32.xlu0 %v1868, 64
    %v2556 = vpop.permute.xlu0 %2555
    %v2557 = vrot.slane %v2556, 4
    %2558 = vrot.lane.b32.xlu0 %v1881, 64
    %v2559 = vpop.permute.xlu0 %2558
    %v2560 = vrot.slane %v2559, 4
    %v2562 = vsel %vm1904, %v2557, 0
    %v2565 = vsel %vm1904, %v2560, 0
    %2567 = vmatprep.subr.bf16.mxu0 0
    %2568 = vmatpush1.bf16.xpose.msra.mxu0 %v2565
    %2569 = vmatprep.subr.bf16.mxu0 0
    %2570 = vmatpush1.bf16.xpose.msra.mxu0 0
    %2571 = vmatprep.subr.bf16.mxu0 0
    %2572 = vmatpush1.bf16.xpose.msra.mxu0 0
    %2573 = vmatprep.subr.bf16.mxu0 0
    %2574 = vmatpush1.bf16.xpose.msra.mxu0 0
    %2575 = vmatprep.subr.bf16.mxu0 0
    %2576 = vmatpush1.bf16.xpose.msra.mxu0 0
    %2577 = vmatprep.subr.bf16.mxu0 0
    %2578 = vmatpush1.bf16.xpose.msra.mxu0 0
    %2579 = vmatprep.subr.bf16.mxu0 0
    %2580 = vmatpush1.bf16.xpose.msra.mxu0 0
    %2581 = vmatprep.subr.bf16.mxu0 0
    %2582 = vmatpush1.bf16.xpose.msra.mxu0 0
    %2583 = vmatprep.subr.bf16.mxu0 0
    %2584 = vmatpush1.bf16.xpose.msra.mxu0 0
    %2585 = vmatprep.subr.bf16.mxu0 0
    %2586 = vmatpush1.bf16.xpose.msra.mxu0 0
    %2587 = vmatprep.subr.bf16.mxu0 0
    %2588 = vmatpush1.bf16.xpose.msra.mxu0 0
    %2589 = vmatprep.subr.bf16.mxu0 0
    %2590 = vmatpush1.bf16.xpose.msra.mxu0 0
    %2591 = vmatprep.subr.bf16.mxu0 0
    %2592 = vmatpush1.bf16.xpose.msra.mxu0 0
    %2593 = vmatprep.subr.bf16.mxu0 0
    %2594 = vmatpush1.bf16.xpose.msra.mxu0 0
    %2595 = vmatprep.subr.bf16.mxu0 0
    %2596 = vmatpush1.bf16.xpose.msra.mxu0 0
    %2597 = vmatprep.subr.bf16.mxu0 0
    %2598 = vmatpush1.bf16.xpose.msra.mxu0 0
    %2599 = vmatprep.mubr.bf16.mxu0 0
    %2600 = vmatmul.mubr.bf16.gmra.mrb[0].mxu0 %v2562
    %v2601 = vpop.f32.mrb[0].mxu0
    %v2602 = vadd.f32 %v1903, %v2601
    %v2603 = vpop.f32.mrb[0].mxu0
    %v2604 = vpop.f32.mrb[0].mxu0
    %v2605 = vpop.f32.mrb[0].mxu0
    %2606 = vdwg.mxu0
    %2607 = vrot.lane.b32.xlu0 %v1870, 64
    %v2608 = vpop.permute.xlu0 %2607
    %v2609 = vrot.slane %v2608, 4
    %2610 = vrot.lane.b32.xlu0 %v1883, 64
    %v2611 = vpop.permute.xlu0 %2610
    %v2612 = vrot.slane %v2611, 4
    %v2614 = vsel %vm1904, %v2609, 0
    %v2617 = vsel %vm1904, %v2612, 0
    %2619 = vmatprep.subr.bf16.mxu0 0
    %2620 = vmatpush1.bf16.xpose.msra.mxu0 %v2617
    %2621 = vmatprep.subr.bf16.mxu0 0
    %2622 = vmatpush1.bf16.xpose.msra.mxu0 0
    %2623 = vmatprep.subr.bf16.mxu0 0
    %2624 = vmatpush1.bf16.xpose.msra.mxu0 0
    %2625 = vmatprep.subr.bf16.mxu0 0
    %2626 = vmatpush1.bf16.xpose.msra.mxu0 0
    %2627 = vmatprep.subr.bf16.mxu0 0
    %2628 = vmatpush1.bf16.xpose.msra.mxu0 0
    %2629 = vmatprep.subr.bf16.mxu0 0
    %2630 = vmatpush1.bf16.xpose.msra.mxu0 0
    %2631 = vmatprep.subr.bf16.mxu0 0
    %2632 = vmatpush1.bf16.xpose.msra.mxu0 0
    %2633 = vmatprep.subr.bf16.mxu0 0
    %2634 = vmatpush1.bf16.xpose.msra.mxu0 0
    %2635 = vmatprep.subr.bf16.mxu0 0
    %2636 = vmatpush1.bf16.xpose.msra.mxu0 0
    %2637 = vmatprep.subr.bf16.mxu0 0
    %2638 = vmatpush1.bf16.xpose.msra.mxu0 0
    %2639 = vmatprep.subr.bf16.mxu0 0
    %2640 = vmatpush1.bf16.xpose.msra.mxu0 0
    %2641 = vmatprep.subr.bf16.mxu0 0
    %2642 = vmatpush1.bf16.xpose.msra.mxu0 0
    %2643 = vmatprep.subr.bf16.mxu0 0
    %2644 = vmatpush1.bf16.xpose.msra.mxu0 0
    %2645 = vmatprep.subr.bf16.mxu0 0
    %2646 = vmatpush1.bf16.xpose.msra.mxu0 0
    %2647 = vmatprep.subr.bf16.mxu0 0
    %2648 = vmatpush1.bf16.xpose.msra.mxu0 0
    %2649 = vmatprep.subr.bf16.mxu0 0
    %2650 = vmatpush1.bf16.xpose.msra.mxu0 0
    %2651 = vmatprep.mubr.bf16.mxu0 0
    %2652 = vmatmul.mubr.bf16.gmra.mrb[0].mxu0 %v2614
    %v2653 = vpop.f32.mrb[0].mxu0
    %v2654 = vadd.f32 %v1903, %v2653
    %v2655 = vpop.f32.mrb[0].mxu0
    %v2656 = vpop.f32.mrb[0].mxu0
    %v2657 = vpop.f32.mrb[0].mxu0
    %2658 = vdwg.mxu0
    %v2659 = vsel %vm1997, %v2602, -inf
    %2660 = vmax.xlane.f32.xlu0 %v2659
    %v2661 = vpop.xlane.xlu0 %2660
    %v2662 = vsel %vm1997, %v2654, -inf
    %2663 = vmax.xlane.f32.xlu0 %v2662
    %v2664 = vpop.xlane.xlu0 %2663
    %v2665 = vsub.f32 %v2602, %v2661
    %v2666 = vsub.f32 %v2654, %v2664
    %v2667 = vmul.f32 %v2665, 1.442695
    %v2668 = vpow.pop %v2667
    %v2669 = vmul.f32 %v2666, 1.442695
    %v2670 = vpow.pop %v2669
    %v2671 = vsel %vm1997, %v2668, 0.0
    %2672 = vadd.xlane.f32.xlu0 %v2671
    %v2673 = vpop.xlane.xlu0 %2672
    %v2674 = vsel %vm1997, %v2670, 0.0
    %2675 = vadd.xlane.f32.xlu0 %v2674
    %v2676 = vpop.xlane.xlu0 %2675
    %v2677 = vrcp.pop %v2673
    %v2678 = vrcp.pop %v2676
    %v2679 = vmul.f32 %v2668, %v2677
    %v2680 = vmul.f32 %v2670, %v2678
    %v2681 = vpack.c.bf16 %v2679, %v2679
    %v2682 = vpack.c.bf16 %v2680, %v2680
    %2683 = vrot.lane.b32.xlu0 %v1894, 64
    %v2684 = vpop.permute.xlu0 %2683
    %v2685 = vrot.slane %v2684, 4
    %v2687 = vsel %vm1997, %v2681, 0
    %v2690 = vsel %vm2025, %v2685, 0
    %2692 = vmatprep.subr.bf16.mxu0 0
    %2693 = vmatpush1.bf16.msra.mxu0 %v2690
    %2694 = vmatprep.subr.bf16.mxu0 0
    %2695 = vmatpush1.bf16.msra.mxu0 0
    %2696 = vmatprep.subr.bf16.mxu0 0
    %2697 = vmatpush1.bf16.msra.mxu0 0
    %2698 = vmatprep.subr.bf16.mxu0 0
    %2699 = vmatpush1.bf16.msra.mxu0 0
    %2700 = vmatprep.subr.bf16.mxu0 0
    %2701 = vmatpush1.bf16.msra.mxu0 0
    %2702 = vmatprep.subr.bf16.mxu0 0
    %2703 = vmatpush1.bf16.msra.mxu0 0
    %2704 = vmatprep.subr.bf16.mxu0 0
    %2705 = vmatpush1.bf16.msra.mxu0 0
    %2706 = vmatprep.subr.bf16.mxu0 0
    %2707 = vmatpush1.bf16.msra.mxu0 0
    %2708 = vmatprep.subr.bf16.mxu0 0
    %2709 = vmatpush1.bf16.msra.mxu0 0
    %2710 = vmatprep.subr.bf16.mxu0 0
    %2711 = vmatpush1.bf16.msra.mxu0 0
    %2712 = vmatprep.subr.bf16.mxu0 0
    %2713 = vmatpush1.bf16.msra.mxu0 0
    %2714 = vmatprep.subr.bf16.mxu0 0
    %2715 = vmatpush1.bf16.msra.mxu0 0
    %2716 = vmatprep.subr.bf16.mxu0 0
    %2717 = vmatpush1.bf16.msra.mxu0 0
    %2718 = vmatprep.subr.bf16.mxu0 0
    %2719 = vmatpush1.bf16.msra.mxu0 0
    %2720 = vmatprep.subr.bf16.mxu0 0
    %2721 = vmatpush1.bf16.msra.mxu0 0
    %2722 = vmatprep.subr.bf16.mxu0 0
    %2723 = vmatpush1.bf16.msra.mxu0 0
    %2724 = vmatprep.mubr.bf16.mxu0 0
    %2725 = vmatmul.mubr.bf16.gmra.mrb[0].mxu0 %v2687
    %v2726 = vpop.f32.mrb[0].mxu0
    %v2727 = vadd.f32 0.0, %v2726
    %v2728 = vpop.f32.mrb[0].mxu0
    %v2729 = vpop.f32.mrb[0].mxu0
    %v2730 = vpop.f32.mrb[0].mxu0
    %2731 = vdwg.mxu0
    %2732 = vrot.lane.b32.xlu0 %v1896, 64
    %v2733 = vpop.permute.xlu0 %2732
    %v2734 = vrot.slane %v2733, 4
    %v2736 = vsel %vm1997, %v2682, 0
    %v2739 = vsel %vm2025, %v2734, 0
    %2741 = vmatprep.subr.bf16.mxu0 0
    %2742 = vmatpush1.bf16.msra.mxu0 %v2739
    %2743 = vmatprep.subr.bf16.mxu0 0
    %2744 = vmatpush1.bf16.msra.mxu0 0
    %2745 = vmatprep.subr.bf16.mxu0 0
    %2746 = vmatpush1.bf16.msra.mxu0 0
    %2747 = vmatprep.subr.bf16.mxu0 0
    %2748 = vmatpush1.bf16.msra.mxu0 0
    %2749 = vmatprep.subr.bf16.mxu0 0
    %2750 = vmatpush1.bf16.msra.mxu0 0
    %2751 = vmatprep.subr.bf16.mxu0 0
    %2752 = vmatpush1.bf16.msra.mxu0 0
    %2753 = vmatprep.subr.bf16.mxu0 0
    %2754 = vmatpush1.bf16.msra.mxu0 0
    %2755 = vmatprep.subr.bf16.mxu0 0
    %2756 = vmatpush1.bf16.msra.mxu0 0
    %2757 = vmatprep.subr.bf16.mxu0 0
    %2758 = vmatpush1.bf16.msra.mxu0 0
    %2759 = vmatprep.subr.bf16.mxu0 0
    %2760 = vmatpush1.bf16.msra.mxu0 0
    %2761 = vmatprep.subr.bf16.mxu0 0
    %2762 = vmatpush1.bf16.msra.mxu0 0
    %2763 = vmatprep.subr.bf16.mxu0 0
    %2764 = vmatpush1.bf16.msra.mxu0 0
    %2765 = vmatprep.subr.bf16.mxu0 0
    %2766 = vmatpush1.bf16.msra.mxu0 0
    %2767 = vmatprep.subr.bf16.mxu0 0
    %2768 = vmatpush1.bf16.msra.mxu0 0
    %2769 = vmatprep.subr.bf16.mxu0 0
    %2770 = vmatpush1.bf16.msra.mxu0 0
    %2771 = vmatprep.subr.bf16.mxu0 0
    %2772 = vmatpush1.bf16.msra.mxu0 0
    %2773 = vmatprep.mubr.bf16.mxu0 0
    %2774 = vmatmul.mubr.bf16.gmra.mrb[0].mxu0 %v2736
    %v2775 = vpop.f32.mrb[0].mxu0
    %v2776 = vadd.f32 0.0, %v2775
    %v2777 = vpop.f32.mrb[0].mxu0
    %v2778 = vpop.f32.mrb[0].mxu0
    %v2779 = vpop.f32.mrb[0].mxu0
    %2780 = vdwg.mxu0
    %v2782 = vsel %vm1904, %v1869, 0
    %v2785 = vsel %vm1904, %v1882, 0
    %2787 = vmatprep.subr.bf16.mxu0 0
    %2788 = vmatpush1.bf16.xpose.msra.mxu0 %v2785
    %2789 = vmatprep.subr.bf16.mxu0 0
    %2790 = vmatpush1.bf16.xpose.msra.mxu0 0
    %2791 = vmatprep.subr.bf16.mxu0 0
    %2792 = vmatpush1.bf16.xpose.msra.mxu0 0
    %2793 = vmatprep.subr.bf16.mxu0 0
    %2794 = vmatpush1.bf16.xpose.msra.mxu0 0
    %2795 = vmatprep.subr.bf16.mxu0 0
    %2796 = vmatpush1.bf16.xpose.msra.mxu0 0
    %2797 = vmatprep.subr.bf16.mxu0 0
    %2798 = vmatpush1.bf16.xpose.msra.mxu0 0
    %2799 = vmatprep.subr.bf16.mxu0 0
    %2800 = vmatpush1.bf16.xpose.msra.mxu0 0
    %2801 = vmatprep.subr.bf16.mxu0 0
    %2802 = vmatpush1.bf16.xpose.msra.mxu0 0
    %2803 = vmatprep.subr.bf16.mxu0 0
    %2804 = vmatpush1.bf16.xpose.msra.mxu0 0
    %2805 = vmatprep.subr.bf16.mxu0 0
    %2806 = vmatpush1.bf16.xpose.msra.mxu0 0
    %2807 = vmatprep.subr.bf16.mxu0 0
    %2808 = vmatpush1.bf16.xpose.msra.mxu0 0
    %2809 = vmatprep.subr.bf16.mxu0 0
    %2810 = vmatpush1.bf16.xpose.msra.mxu0 0
    %2811 = vmatprep.subr.bf16.mxu0 0
    %2812 = vmatpush1.bf16.xpose.msra.mxu0 0
    %2813 = vmatprep.subr.bf16.mxu0 0
    %2814 = vmatpush1.bf16.xpose.msra.mxu0 0
    %2815 = vmatprep.subr.bf16.mxu0 0
    %2816 = vmatpush1.bf16.xpose.msra.mxu0 0
    %2817 = vmatprep.subr.bf16.mxu0 0
    %2818 = vmatpush1.bf16.xpose.msra.mxu0 0
    %2819 = vmatprep.mubr.bf16.mxu0 0
    %2820 = vmatmul.mubr.bf16.gmra.mrb[0].mxu0 %v2782
    %v2821 = vpop.f32.mrb[0].mxu0
    %v2822 = vadd.f32 %v1903, %v2821
    %v2823 = vpop.f32.mrb[0].mxu0
    %v2824 = vpop.f32.mrb[0].mxu0
    %v2825 = vpop.f32.mrb[0].mxu0
    %2826 = vdwg.mxu0
    %v2828 = vsel %vm1904, %v1871, 0
    %v2831 = vsel %vm1904, %v1884, 0
    %2833 = vmatprep.subr.bf16.mxu0 0
    %2834 = vmatpush1.bf16.xpose.msra.mxu0 %v2831
    %2835 = vmatprep.subr.bf16.mxu0 0
    %2836 = vmatpush1.bf16.xpose.msra.mxu0 0
    %2837 = vmatprep.subr.bf16.mxu0 0
    %2838 = vmatpush1.bf16.xpose.msra.mxu0 0
    %2839 = vmatprep.subr.bf16.mxu0 0
    %2840 = vmatpush1.bf16.xpose.msra.mxu0 0
    %2841 = vmatprep.subr.bf16.mxu0 0
    %2842 = vmatpush1.bf16.xpose.msra.mxu0 0
    %2843 = vmatprep.subr.bf16.mxu0 0
    %2844 = vmatpush1.bf16.xpose.msra.mxu0 0
    %2845 = vmatprep.subr.bf16.mxu0 0
    %2846 = vmatpush1.bf16.xpose.msra.mxu0 0
    %2847 = vmatprep.subr.bf16.mxu0 0
    %2848 = vmatpush1.bf16.xpose.msra.mxu0 0
    %2849 = vmatprep.subr.bf16.mxu0 0
    %2850 = vmatpush1.bf16.xpose.msra.mxu0 0
    %2851 = vmatprep.subr.bf16.mxu0 0
    %2852 = vmatpush1.bf16.xpose.msra.mxu0 0
    %2853 = vmatprep.subr.bf16.mxu0 0
    %2854 = vmatpush1.bf16.xpose.msra.mxu0 0
    %2855 = vmatprep.subr.bf16.mxu0 0
    %2856 = vmatpush1.bf16.xpose.msra.mxu0 0
    %2857 = vmatprep.subr.bf16.mxu0 0
    %2858 = vmatpush1.bf16.xpose.msra.mxu0 0
    %2859 = vmatprep.subr.bf16.mxu0 0
    %2860 = vmatpush1.bf16.xpose.msra.mxu0 0
    %2861 = vmatprep.subr.bf16.mxu0 0
    %2862 = vmatpush1.bf16.xpose.msra.mxu0 0
    %2863 = vmatprep.subr.bf16.mxu0 0
    %2864 = vmatpush1.bf16.xpose.msra.mxu0 0
    %2865 = vmatprep.mubr.bf16.mxu0 0
    %2866 = vmatmul.mubr.bf16.gmra.mrb[0].mxu0 %v2828
    %v2867 = vpop.f32.mrb[0].mxu0
    %v2868 = vadd.f32 %v1903, %v2867
    %v2869 = vpop.f32.mrb[0].mxu0
    %v2870 = vpop.f32.mrb[0].mxu0
    %v2871 = vpop.f32.mrb[0].mxu0
    %2872 = vdwg.mxu0
    %v2873 = vsel %vm1997, %v2822, -inf
    %2874 = vmax.xlane.f32.xlu0 %v2873
    %v2875 = vpop.xlane.xlu0 %2874
    %v2876 = vsel %vm1997, %v2868, -inf
    %2877 = vmax.xlane.f32.xlu0 %v2876
    %v2878 = vpop.xlane.xlu0 %2877
    %v2879 = vsub.f32 %v2822, %v2875
    %v2880 = vsub.f32 %v2868, %v2878
    %v2881 = vmul.f32 %v2879, 1.442695
    %v2882 = vpow.pop %v2881
    %v2883 = vmul.f32 %v2880, 1.442695
    %v2884 = vpow.pop %v2883
    %v2885 = vsel %vm1997, %v2882, 0.0
    %2886 = vadd.xlane.f32.xlu0 %v2885
    %v2887 = vpop.xlane.xlu0 %2886
    %v2888 = vsel %vm1997, %v2884, 0.0
    %2889 = vadd.xlane.f32.xlu0 %v2888
    %v2890 = vpop.xlane.xlu0 %2889
    %v2891 = vrcp.pop %v2887
    %v2892 = vrcp.pop %v2890
    %v2893 = vmul.f32 %v2882, %v2891
    %v2894 = vmul.f32 %v2884, %v2892
    %v2895 = vpack.c.bf16 %v2893, %v2893
    %v2896 = vpack.c.bf16 %v2894, %v2894
    %v2898 = vsel %vm1997, %v2895, 0
    %v2901 = vsel %vm2025, %v1895, 0
    %2903 = vmatprep.subr.bf16.mxu0 0
    %2904 = vmatpush1.bf16.msra.mxu0 %v2901
    %2905 = vmatprep.subr.bf16.mxu0 0
    %2906 = vmatpush1.bf16.msra.mxu0 0
    %2907 = vmatprep.subr.bf16.mxu0 0
    %2908 = vmatpush1.bf16.msra.mxu0 0
    %2909 = vmatprep.subr.bf16.mxu0 0
    %2910 = vmatpush1.bf16.msra.mxu0 0
    %2911 = vmatprep.subr.bf16.mxu0 0
    %2912 = vmatpush1.bf16.msra.mxu0 0
    %2913 = vmatprep.subr.bf16.mxu0 0
    %2914 = vmatpush1.bf16.msra.mxu0 0
    %2915 = vmatprep.subr.bf16.mxu0 0
    %2916 = vmatpush1.bf16.msra.mxu0 0
    %2917 = vmatprep.subr.bf16.mxu0 0
    %2918 = vmatpush1.bf16.msra.mxu0 0
    %2919 = vmatprep.subr.bf16.mxu0 0
    %2920 = vmatpush1.bf16.msra.mxu0 0
    %2921 = vmatprep.subr.bf16.mxu0 0
    %2922 = vmatpush1.bf16.msra.mxu0 0
    %2923 = vmatprep.subr.bf16.mxu0 0
    %2924 = vmatpush1.bf16.msra.mxu0 0
    %2925 = vmatprep.subr.bf16.mxu0 0
    %2926 = vmatpush1.bf16.msra.mxu0 0
    %2927 = vmatprep.subr.bf16.mxu0 0
    %2928 = vmatpush1.bf16.msra.mxu0 0
    %2929 = vmatprep.subr.bf16.mxu0 0
    %2930 = vmatpush1.bf16.msra.mxu0 0
    %2931 = vmatprep.subr.bf16.mxu0 0
    %2932 = vmatpush1.bf16.msra.mxu0 0
    %2933 = vmatprep.subr.bf16.mxu0 0
    %2934 = vmatpush1.bf16.msra.mxu0 0
    %2935 = vmatprep.mubr.bf16.mxu0 0
    %2936 = vmatmul.mubr.bf16.gmra.mrb[0].mxu0 %v2898
    %v2937 = vpop.f32.mrb[0].mxu0
    %v2938 = vadd.f32 0.0, %v2937
    %v2939 = vpop.f32.mrb[0].mxu0
    %v2940 = vpop.f32.mrb[0].mxu0
    %v2941 = vpop.f32.mrb[0].mxu0
    %2942 = vdwg.mxu0
    %v2944 = vsel %vm1997, %v2896, 0
    %v2947 = vsel %vm2025, %v1897, 0
    %2949 = vmatprep.subr.bf16.mxu0 0
    %2950 = vmatpush1.bf16.msra.mxu0 %v2947
    %2951 = vmatprep.subr.bf16.mxu0 0
    %2952 = vmatpush1.bf16.msra.mxu0 0
    %2953 = vmatprep.subr.bf16.mxu0 0
    %2954 = vmatpush1.bf16.msra.mxu0 0
    %2955 = vmatprep.subr.bf16.mxu0 0
    %2956 = vmatpush1.bf16.msra.mxu0 0
    %2957 = vmatprep.subr.bf16.mxu0 0
    %2958 = vmatpush1.bf16.msra.mxu0 0
    %2959 = vmatprep.subr.bf16.mxu0 0
    %2960 = vmatpush1.bf16.msra.mxu0 0
    %2961 = vmatprep.subr.bf16.mxu0 0
    %2962 = vmatpush1.bf16.msra.mxu0 0
    %2963 = vmatprep.subr.bf16.mxu0 0
    %2964 = vmatpush1.bf16.msra.mxu0 0
    %2965 = vmatprep.subr.bf16.mxu0 0
    %2966 = vmatpush1.bf16.msra.mxu0 0
    %2967 = vmatprep.subr.bf16.mxu0 0
    %2968 = vmatpush1.bf16.msra.mxu0 0
    %2969 = vmatprep.subr.bf16.mxu0 0
    %2970 = vmatpush1.bf16.msra.mxu0 0
    %2971 = vmatprep.subr.bf16.mxu0 0
    %2972 = vmatpush1.bf16.msra.mxu0 0
    %2973 = vmatprep.subr.bf16.mxu0 0
    %2974 = vmatpush1.bf16.msra.mxu0 0
    %2975 = vmatprep.subr.bf16.mxu0 0
    %2976 = vmatpush1.bf16.msra.mxu0 0
    %2977 = vmatprep.subr.bf16.mxu0 0
    %2978 = vmatpush1.bf16.msra.mxu0 0
    %2979 = vmatprep.subr.bf16.mxu0 0
    %2980 = vmatpush1.bf16.msra.mxu0 0
    %2981 = vmatprep.mubr.bf16.mxu0 0
    %2982 = vmatmul.mubr.bf16.gmra.mrb[0].mxu0 %v2944
    %v2983 = vpop.f32.mrb[0].mxu0
    %v2984 = vadd.f32 0.0, %v2983
    %v2985 = vpop.f32.mrb[0].mxu0
    %v2986 = vpop.f32.mrb[0].mxu0
    %v2987 = vpop.f32.mrb[0].mxu0
    %2988 = vdwg.mxu0
    %2989 = vrot.lane.b32.xlu0 %v1869, 64
    %v2990 = vpop.permute.xlu0 %2989
    %2991 = vrot.lane.b32.xlu0 %v1882, 64
    %v2992 = vpop.permute.xlu0 %2991
    %v2994 = vsel %vm1904, %v2990, 0
    %v2997 = vsel %vm1904, %v2992, 0
    %2999 = vmatprep.subr.bf16.mxu0 0
    %3000 = vmatpush1.bf16.xpose.msra.mxu0 %v2997
    %3001 = vmatprep.subr.bf16.mxu0 0
    %3002 = vmatpush1.bf16.xpose.msra.mxu0 0
    %3003 = vmatprep.subr.bf16.mxu0 0
    %3004 = vmatpush1.bf16.xpose.msra.mxu0 0
    %3005 = vmatprep.subr.bf16.mxu0 0
    %3006 = vmatpush1.bf16.xpose.msra.mxu0 0
    %3007 = vmatprep.subr.bf16.mxu0 0
    %3008 = vmatpush1.bf16.xpose.msra.mxu0 0
    %3009 = vmatprep.subr.bf16.mxu0 0
    %3010 = vmatpush1.bf16.xpose.msra.mxu0 0
    %3011 = vmatprep.subr.bf16.mxu0 0
    %3012 = vmatpush1.bf16.xpose.msra.mxu0 0
    %3013 = vmatprep.subr.bf16.mxu0 0
    %3014 = vmatpush1.bf16.xpose.msra.mxu0 0
    %3015 = vmatprep.subr.bf16.mxu0 0
    %3016 = vmatpush1.bf16.xpose.msra.mxu0 0
    %3017 = vmatprep.subr.bf16.mxu0 0
    %3018 = vmatpush1.bf16.xpose.msra.mxu0 0
    %3019 = vmatprep.subr.bf16.mxu0 0
    %3020 = vmatpush1.bf16.xpose.msra.mxu0 0
    %3021 = vmatprep.subr.bf16.mxu0 0
    %3022 = vmatpush1.bf16.xpose.msra.mxu0 0
    %3023 = vmatprep.subr.bf16.mxu0 0
    %3024 = vmatpush1.bf16.xpose.msra.mxu0 0
    %3025 = vmatprep.subr.bf16.mxu0 0
    %3026 = vmatpush1.bf16.xpose.msra.mxu0 0
    %3027 = vmatprep.subr.bf16.mxu0 0
    %3028 = vmatpush1.bf16.xpose.msra.mxu0 0
    %3029 = vmatprep.subr.bf16.mxu0 0
    %3030 = vmatpush1.bf16.xpose.msra.mxu0 0
    %3031 = vmatprep.mubr.bf16.mxu0 0
    %3032 = vmatmul.mubr.bf16.gmra.mrb[0].mxu0 %v2994
    %v3033 = vpop.f32.mrb[0].mxu0
    %v3034 = vadd.f32 %v1903, %v3033
    %v3035 = vpop.f32.mrb[0].mxu0
    %v3036 = vpop.f32.mrb[0].mxu0
    %v3037 = vpop.f32.mrb[0].mxu0
    %3038 = vdwg.mxu0
    %3039 = vrot.lane.b32.xlu0 %v1871, 64
    %v3040 = vpop.permute.xlu0 %3039
    %3041 = vrot.lane.b32.xlu0 %v1884, 64
    %v3042 = vpop.permute.xlu0 %3041
    %v3044 = vsel %vm1904, %v3040, 0
    %v3047 = vsel %vm1904, %v3042, 0
    %3049 = vmatprep.subr.bf16.mxu0 0
    %3050 = vmatpush1.bf16.xpose.msra.mxu0 %v3047
    %3051 = vmatprep.subr.bf16.mxu0 0
    %3052 = vmatpush1.bf16.xpose.msra.mxu0 0
    %3053 = vmatprep.subr.bf16.mxu0 0
    %3054 = vmatpush1.bf16.xpose.msra.mxu0 0
    %3055 = vmatprep.subr.bf16.mxu0 0
    %3056 = vmatpush1.bf16.xpose.msra.mxu0 0
    %3057 = vmatprep.subr.bf16.mxu0 0
    %3058 = vmatpush1.bf16.xpose.msra.mxu0 0
    %3059 = vmatprep.subr.bf16.mxu0 0
    %3060 = vmatpush1.bf16.xpose.msra.mxu0 0
    %3061 = vmatprep.subr.bf16.mxu0 0
    %3062 = vmatpush1.bf16.xpose.msra.mxu0 0
    %3063 = vmatprep.subr.bf16.mxu0 0
    %3064 = vmatpush1.bf16.xpose.msra.mxu0 0
    %3065 = vmatprep.subr.bf16.mxu0 0
    %3066 = vmatpush1.bf16.xpose.msra.mxu0 0
    %3067 = vmatprep.subr.bf16.mxu0 0
    %3068 = vmatpush1.bf16.xpose.msra.mxu0 0
    %3069 = vmatprep.subr.bf16.mxu0 0
    %3070 = vmatpush1.bf16.xpose.msra.mxu0 0
    %3071 = vmatprep.subr.bf16.mxu0 0
    %3072 = vmatpush1.bf16.xpose.msra.mxu0 0
    %3073 = vmatprep.subr.bf16.mxu0 0
    %3074 = vmatpush1.bf16.xpose.msra.mxu0 0
    %3075 = vmatprep.subr.bf16.mxu0 0
    %3076 = vmatpush1.bf16.xpose.msra.mxu0 0
    %3077 = vmatprep.subr.bf16.mxu0 0
    %3078 = vmatpush1.bf16.xpose.msra.mxu0 0
    %3079 = vmatprep.subr.bf16.mxu0 0
    %3080 = vmatpush1.bf16.xpose.msra.mxu0 0
    %3081 = vmatprep.mubr.bf16.mxu0 0
    %3082 = vmatmul.mubr.bf16.gmra.mrb[0].mxu0 %v3044
    %v3083 = vpop.f32.mrb[0].mxu0
    %v3084 = vadd.f32 %v1903, %v3083
    %v3085 = vpop.f32.mrb[0].mxu0
    %v3086 = vpop.f32.mrb[0].mxu0
    %v3087 = vpop.f32.mrb[0].mxu0
    %3088 = vdwg.mxu0
    %v3089 = vsel %vm1997, %v3034, -inf
    %3090 = vmax.xlane.f32.xlu0 %v3089
    %v3091 = vpop.xlane.xlu0 %3090
    %v3092 = vsel %vm1997, %v3084, -inf
    %3093 = vmax.xlane.f32.xlu0 %v3092
    %v3094 = vpop.xlane.xlu0 %3093
    %v3095 = vsub.f32 %v3034, %v3091
    %v3096 = vsub.f32 %v3084, %v3094
    %v3097 = vmul.f32 %v3095, 1.442695
    %v3098 = vpow.pop %v3097
    %v3099 = vmul.f32 %v3096, 1.442695
    %v3100 = vpow.pop %v3099
    %v3101 = vsel %vm1997, %v3098, 0.0
    %3102 = vadd.xlane.f32.xlu0 %v3101
    %v3103 = vpop.xlane.xlu0 %3102
    %v3104 = vsel %vm1997, %v3100, 0.0
    %3105 = vadd.xlane.f32.xlu0 %v3104
    %v3106 = vpop.xlane.xlu0 %3105
    %v3107 = vrcp.pop %v3103
    %v3108 = vrcp.pop %v3106
    %v3109 = vmul.f32 %v3098, %v3107
    %v3110 = vmul.f32 %v3100, %v3108
    %v3111 = vpack.c.bf16 %v3109, %v3109
    %v3112 = vpack.c.bf16 %v3110, %v3110
    %3113 = vrot.lane.b32.xlu0 %v1895, 64
    %v3114 = vpop.permute.xlu0 %3113
    %v3116 = vsel %vm1997, %v3111, 0
    %v3119 = vsel %vm2025, %v3114, 0
    %3121 = vmatprep.subr.bf16.mxu0 0
    %3122 = vmatpush1.bf16.msra.mxu0 %v3119
    %3123 = vmatprep.subr.bf16.mxu0 0
    %3124 = vmatpush1.bf16.msra.mxu0 0
    %3125 = vmatprep.subr.bf16.mxu0 0
    %3126 = vmatpush1.bf16.msra.mxu0 0
    %3127 = vmatprep.subr.bf16.mxu0 0
    %3128 = vmatpush1.bf16.msra.mxu0 0
    %3129 = vmatprep.subr.bf16.mxu0 0
    %3130 = vmatpush1.bf16.msra.mxu0 0
    %3131 = vmatprep.subr.bf16.mxu0 0
    %3132 = vmatpush1.bf16.msra.mxu0 0
    %3133 = vmatprep.subr.bf16.mxu0 0
    %3134 = vmatpush1.bf16.msra.mxu0 0
    %3135 = vmatprep.subr.bf16.mxu0 0
    %3136 = vmatpush1.bf16.msra.mxu0 0
    %3137 = vmatprep.subr.bf16.mxu0 0
    %3138 = vmatpush1.bf16.msra.mxu0 0
    %3139 = vmatprep.subr.bf16.mxu0 0
    %3140 = vmatpush1.bf16.msra.mxu0 0
    %3141 = vmatprep.subr.bf16.mxu0 0
    %3142 = vmatpush1.bf16.msra.mxu0 0
    %3143 = vmatprep.subr.bf16.mxu0 0
    %3144 = vmatpush1.bf16.msra.mxu0 0
    %3145 = vmatprep.subr.bf16.mxu0 0
    %3146 = vmatpush1.bf16.msra.mxu0 0
    %3147 = vmatprep.subr.bf16.mxu0 0
    %3148 = vmatpush1.bf16.msra.mxu0 0
    %3149 = vmatprep.subr.bf16.mxu0 0
    %3150 = vmatpush1.bf16.msra.mxu0 0
    %3151 = vmatprep.subr.bf16.mxu0 0
    %3152 = vmatpush1.bf16.msra.mxu0 0
    %3153 = vmatprep.mubr.bf16.mxu0 0
    %3154 = vmatmul.mubr.bf16.gmra.mrb[0].mxu0 %v3116
    %v3155 = vpop.f32.mrb[0].mxu0
    %v3156 = vadd.f32 0.0, %v3155
    %v3157 = vpop.f32.mrb[0].mxu0
    %v3158 = vpop.f32.mrb[0].mxu0
    %v3159 = vpop.f32.mrb[0].mxu0
    %3160 = vdwg.mxu0
    %3161 = vrot.lane.b32.xlu0 %v1897, 64
    %v3162 = vpop.permute.xlu0 %3161
    %v3164 = vsel %vm1997, %v3112, 0
    %v3167 = vsel %vm2025, %v3162, 0
    %3169 = vmatprep.subr.bf16.mxu0 0
    %3170 = vmatpush1.bf16.msra.mxu0 %v3167
    %3171 = vmatprep.subr.bf16.mxu0 0
    %3172 = vmatpush1.bf16.msra.mxu0 0
    %3173 = vmatprep.subr.bf16.mxu0 0
    %3174 = vmatpush1.bf16.msra.mxu0 0
    %3175 = vmatprep.subr.bf16.mxu0 0
    %3176 = vmatpush1.bf16.msra.mxu0 0
    %3177 = vmatprep.subr.bf16.mxu0 0
    %3178 = vmatpush1.bf16.msra.mxu0 0
    %3179 = vmatprep.subr.bf16.mxu0 0
    %3180 = vmatpush1.bf16.msra.mxu0 0
    %3181 = vmatprep.subr.bf16.mxu0 0
    %3182 = vmatpush1.bf16.msra.mxu0 0
    %3183 = vmatprep.subr.bf16.mxu0 0
    %3184 = vmatpush1.bf16.msra.mxu0 0
    %3185 = vmatprep.subr.bf16.mxu0 0
    %3186 = vmatpush1.bf16.msra.mxu0 0
    %3187 = vmatprep.subr.bf16.mxu0 0
    %3188 = vmatpush1.bf16.msra.mxu0 0
    %3189 = vmatprep.subr.bf16.mxu0 0
    %3190 = vmatpush1.bf16.msra.mxu0 0
    %3191 = vmatprep.subr.bf16.mxu0 0
    %3192 = vmatpush1.bf16.msra.mxu0 0
    %3193 = vmatprep.subr.bf16.mxu0 0
    %3194 = vmatpush1.bf16.msra.mxu0 0
    %3195 = vmatprep.subr.bf16.mxu0 0
    %3196 = vmatpush1.bf16.msra.mxu0 0
    %3197 = vmatprep.subr.bf16.mxu0 0
    %3198 = vmatpush1.bf16.msra.mxu0 0
    %3199 = vmatprep.subr.bf16.mxu0 0
    %3200 = vmatpush1.bf16.msra.mxu0 0
    %3201 = vmatprep.mubr.bf16.mxu0 0
    %3202 = vmatmul.mubr.bf16.gmra.mrb[0].mxu0 %v3164
    %v3203 = vpop.f32.mrb[0].mxu0
    %v3204 = vadd.f32 0.0, %v3203
    %v3205 = vpop.f32.mrb[0].mxu0
    %v3206 = vpop.f32.mrb[0].mxu0
    %v3207 = vpop.f32.mrb[0].mxu0
    %3208 = vdwg.mxu0
    %3211 = vrot.lane.b32.xlu0 %v2287, 64
    %v3212 = vpop.permute.xlu0 %3211
    %3213 = vrot.lane.b32.xlu0 %v2336, 64
    %v3214 = vpop.permute.xlu0 %3213
    %3219 = vrot.lane.b32.xlu0 %v2727, 64
    %v3220 = vpop.permute.xlu0 %3219
    %3221 = vrot.lane.b32.xlu0 %v2776, 64
    %v3222 = vpop.permute.xlu0 %3221
    %3227 = vrot.lane.b32.xlu0 %v3156, 64
    %v3228 = vpop.permute.xlu0 %3227
    %3229 = vrot.lane.b32.xlu0 %v3204, 64
    %v3230 = vpop.permute.xlu0 %3229
    %v3233 = vsel %vm1904, %v2064, %v3212
    %v3234 = vsel %vm1904, %v2110, %v3214
    %v3235 = vsel %vm1904, %v2503, %v3220
    %v3236 = vsel %vm1904, %v2550, %v3222
    %v3237 = vsel %vm1904, %v2938, %v3228
    %v3238 = vsel %vm1904, %v2984, %v3230
    %v3239 = vpack.c.bf16 %v3234, %v3233
    %v3240 = vpack.c.bf16 %v3236, %v3235
    %v3241 = vpack.c.bf16 %v3238, %v3237
    %v3242 = vld [vmem:[#allocation7] sm:$0xff]
    %v3243 = vld [vmem:[#allocation7 + $0x8] sm:$0xf]
    %v3244 = vld [vmem:[#allocation7 + $0xc] sm:$0xff]
    %v3245 = vld [vmem:[#allocation7 + $0x14] sm:$0xf]
    %v3246 = vld [vmem:[#allocation7 + $0x18] sm:$0xff]
    %v3247 = vld [vmem:[#allocation7 + $0x20] sm:$0xf]
    %v3248 = vld [vmem:[#allocation7 + $0x24] sm:$0xff]
    %v3249 = vld [vmem:[#allocation7 + $0x2c] sm:$0xf]
    %v3250 = vld [vmem:[#allocation7 + $0x30] sm:$0xff]
    %v3251 = vld [vmem:[#allocation7 + $0x38] sm:$0xf]
    %v3252 = vld [vmem:[#allocation7 + $0x3c] sm:$0xff]
    %v3253 = vld [vmem:[#allocation7 + $0x44] sm:$0xf]
    %v3254 = vld [vmem:[#allocation7 + $0x48] sm:$0xff]
    %v3255 = vld [vmem:[#allocation7 + $0x50] sm:$0xf]
    %v3256 = vld [vmem:[#allocation7 + $0x54] sm:$0xff]
    %v3257 = vld [vmem:[#allocation7 + $0x5c] sm:$0xf]
    %v3258 = vld [vmem:[#allocation7 + $0x60] sm:$0xff]
    %v3259 = vld [vmem:[#allocation7 + $0x68] sm:$0xf]
    %v3260 = vld [vmem:[#allocation7 + $0x6c] sm:$0xff]
    %v3261 = vld [vmem:[#allocation7 + $0x74] sm:$0xf]
    %v3262 = vld [vmem:[#allocation7 + $0x78] sm:$0xff]
    %v3263 = vld [vmem:[#allocation7 + $0x80] sm:$0xf]
    %v3264 = vld [vmem:[#allocation7 + $0x84] sm:$0xff]
    %v3265 = vld [vmem:[#allocation7 + $0x8c] sm:$0xf]
    %v3266 = vld [vmem:[#allocation7 + $0x90] sm:$0xff]
    %v3267 = vld [vmem:[#allocation7 + $0x98] sm:$0xf]
    %v3268 = vld [vmem:[#allocation7 + $0x9c] sm:$0xff]
    %v3269 = vld [vmem:[#allocation7 + $0xa4] sm:$0xf]
    %v3270 = vld [vmem:[#allocation7 + $0xa8] sm:$0xff]
    %v3271 = vld [vmem:[#allocation7 + $0xb0] sm:$0xf]
    %v3272 = vld [vmem:[#allocation7 + $0xb4] sm:$0xff]
    %v3273 = vld [vmem:[#allocation7 + $0xbc] sm:$0xf]
    %v3274 = vld [vmem:[#allocation7 + $0xc0] sm:$0xff]
    %v3275 = vld [vmem:[#allocation7 + $0xc8] sm:$0xf]
    %v3276 = vld [vmem:[#allocation7 + $0xcc] sm:$0xff]
    %v3277 = vld [vmem:[#allocation7 + $0xd4] sm:$0xf]
    %v3278 = vld [vmem:[#allocation7 + $0xd8] sm:$0xff]
    %v3279 = vld [vmem:[#allocation7 + $0xe0] sm:$0xf]
    %v3280 = vld [vmem:[#allocation7 + $0xe4] sm:$0xff]
    %v3281 = vld [vmem:[#allocation7 + $0xec] sm:$0xf]
    %v3282 = vld [vmem:[#allocation7 + $0xf0] sm:$0xff]
    %v3283 = vld [vmem:[#allocation7 + $0xf8] sm:$0xf]
    %v3284 = vld [vmem:[#allocation7 + $0xfc] sm:$0xff]
    %v3285 = vld [vmem:[#allocation7 + $0x104] sm:$0xf]
    %v3286 = vld [vmem:[#allocation7 + $0x108] sm:$0xff]
    %v3287 = vld [vmem:[#allocation7 + $0x110] sm:$0xf]
    %v3288 = vld [vmem:[#allocation7 + $0x114] sm:$0xff]
    %v3289 = vld [vmem:[#allocation7 + $0x11c] sm:$0xf]
    %v3290 = vld [vmem:[#allocation7 + $0x120] sm:$0xff]
    %v3291 = vld [vmem:[#allocation7 + $0x128] sm:$0xf]
    %v3292 = vld [vmem:[#allocation7 + $0x12c] sm:$0xff]
    %v3293 = vld [vmem:[#allocation7 + $0x134] sm:$0xf]
    %v3294 = vld [vmem:[#allocation7 + $0x138] sm:$0xff]
    %v3295 = vld [vmem:[#allocation7 + $0x140] sm:$0xf]
    %v3296 = vld [vmem:[#allocation7 + $0x144] sm:$0xff]
    %v3297 = vld [vmem:[#allocation7 + $0x14c] sm:$0xf]
    %v3298 = vld [vmem:[#allocation7 + $0x150] sm:$0xff]
    %v3299 = vld [vmem:[#allocation7 + $0x158] sm:$0xf]
    %v3300 = vld [vmem:[#allocation7 + $0x15c] sm:$0xff]
    %v3301 = vld [vmem:[#allocation7 + $0x164] sm:$0xf]
    %v3302 = vld [vmem:[#allocation7 + $0x168] sm:$0xff]
    %v3303 = vld [vmem:[#allocation7 + $0x170] sm:$0xf]
    %v3304 = vld [vmem:[#allocation7 + $0x174] sm:$0xff]
    %v3305 = vld [vmem:[#allocation7 + $0x17c] sm:$0xf]
    %v3306 = vld [vmem:[#allocation7 + $0x180] sm:$0xff]
    %v3307 = vld [vmem:[#allocation7 + $0x188] sm:$0xf]
    %v3308 = vld [vmem:[#allocation7 + $0x18c] sm:$0xff]
    %v3309 = vld [vmem:[#allocation7 + $0x194] sm:$0xf]
    %v3310 = vld [vmem:[#allocation7 + $0x198] sm:$0xff]
    %v3311 = vld [vmem:[#allocation7 + $0x1a0] sm:$0xf]
    %v3312 = vld [vmem:[#allocation7 + $0x1a4] sm:$0xff]
    %v3313 = vld [vmem:[#allocation7 + $0x1ac] sm:$0xf]
    %v3314 = vld [vmem:[#allocation7 + $0x1b0] sm:$0xff]
    %v3315 = vld [vmem:[#allocation7 + $0x1b8] sm:$0xf]
    %v3316 = vld [vmem:[#allocation7 + $0x1bc] sm:$0xff]
    %v3317 = vld [vmem:[#allocation7 + $0x1c4] sm:$0xf]
    %v3318 = vld [vmem:[#allocation7 + $0x1c8] sm:$0xff]
    %v3319 = vld [vmem:[#allocation7 + $0x1d0] sm:$0xf]
    %v3320 = vld [vmem:[#allocation7 + $0x1d4] sm:$0xff]
    %v3321 = vld [vmem:[#allocation7 + $0x1dc] sm:$0xf]
    %v3322 = vld [vmem:[#allocation7 + $0x1e0] sm:$0xff]
    %v3323 = vld [vmem:[#allocation7 + $0x1e8] sm:$0xf]
    %v3324 = vld [vmem:[#allocation7 + $0x1ec] sm:$0xff]
    %v3325 = vld [vmem:[#allocation7 + $0x1f4] sm:$0xf]
    %v3326 = vld [vmem:[#allocation7 + $0x1f8] sm:$0xff]
    %v3327 = vld [vmem:[#allocation7 + $0x200] sm:$0xf]
    %v3328 = vld [vmem:[#allocation7 + $0x204] sm:$0xff]
    %v3329 = vld [vmem:[#allocation7 + $0x20c] sm:$0xf]
    %v3330 = vld [vmem:[#allocation7 + $0x210] sm:$0xff]
    %v3331 = vld [vmem:[#allocation7 + $0x218] sm:$0xf]
    %v3332 = vld [vmem:[#allocation7 + $0x21c] sm:$0xff]
    %v3333 = vld [vmem:[#allocation7 + $0x224] sm:$0xf]
    %v3334 = vld [vmem:[#allocation7 + $0x228] sm:$0xff]
    %v3335 = vld [vmem:[#allocation7 + $0x230] sm:$0xf]
    %v3336 = vld [vmem:[#allocation7 + $0x234] sm:$0xff]
    %v3337 = vld [vmem:[#allocation7 + $0x23c] sm:$0xf]
    %v3338 = vld [vmem:[%s3] sm:$0x7]
    %v3340 = vlaneseq
    %v3341 = vshrl.u32 %v3340, 7
    %v3342 = vsub.s32 0, %v3341
    %v3343 = vrot.slane %v3338, %v3342
    %v3344 = vlaneseq
    %v3345 = vshrl.u32 %v3344, 7
    %v3346 = vsub.s32 1, %v3345
    %v3347 = vrot.slane %v3338, %v3346
    %v3348 = vlaneseq
    %v3349 = vshrl.u32 %v3348, 7
    %v3350 = vsub.s32 2, %v3349
    %v3351 = vrot.slane %v3338, %v3350
    %v3451 = vunpack.c.l.b16 %v3242
    %v3452 = vunpack.c.h.b16 %v3242
    %v3453 = vunpack.c.l.b16 %v3243
    %v3454 = vunpack.c.l.b16 %v3244
    %v3455 = vunpack.c.h.b16 %v3244
    %v3456 = vunpack.c.l.b16 %v3245
    %v3457 = vunpack.c.l.b16 %v3246
    %v3458 = vunpack.c.h.b16 %v3246
    %v3459 = vunpack.c.l.b16 %v3247
    %v3460 = vunpack.c.l.b16 %v3248
    %v3461 = vunpack.c.h.b16 %v3248
    %v3462 = vunpack.c.l.b16 %v3249
    %v3463 = vunpack.c.l.b16 %v3250
    %v3464 = vunpack.c.h.b16 %v3250
    %v3465 = vunpack.c.l.b16 %v3251
    %v3466 = vunpack.c.l.b16 %v3252
    %v3467 = vunpack.c.h.b16 %v3252
    %v3468 = vunpack.c.l.b16 %v3253
    %v3469 = vunpack.c.l.b16 %v3254
    %v3470 = vunpack.c.h.b16 %v3254
    %v3471 = vunpack.c.l.b16 %v3255
    %v3472 = vunpack.c.l.b16 %v3256
    %v3473 = vunpack.c.h.b16 %v3256
    %v3474 = vunpack.c.l.b16 %v3257
    %v3475 = vunpack.c.l.b16 %v3258
    %v3476 = vunpack.c.h.b16 %v3258
    %v3477 = vunpack.c.l.b16 %v3259
    %v3478 = vunpack.c.l.b16 %v3260
    %v3479 = vunpack.c.h.b16 %v3260
    %v3480 = vunpack.c.l.b16 %v3261
    %v3481 = vunpack.c.l.b16 %v3262
    %v3482 = vunpack.c.h.b16 %v3262
    %v3483 = vunpack.c.l.b16 %v3263
    %v3484 = vunpack.c.l.b16 %v3264
    %v3485 = vunpack.c.h.b16 %v3264
    %v3486 = vunpack.c.l.b16 %v3265
    %v3487 = vunpack.c.l.b16 %v3266
    %v3488 = vunpack.c.h.b16 %v3266
    %v3489 = vunpack.c.l.b16 %v3267
    %v3490 = vunpack.c.l.b16 %v3268
    %v3491 = vunpack.c.h.b16 %v3268
    %v3492 = vunpack.c.l.b16 %v3269
    %v3493 = vunpack.c.l.b16 %v3270
    %v3494 = vunpack.c.h.b16 %v3270
    %v3495 = vunpack.c.l.b16 %v3271
    %v3496 = vunpack.c.l.b16 %v3272
    %v3497 = vunpack.c.h.b16 %v3272
    %v3498 = vunpack.c.l.b16 %v3273
    %v3499 = vunpack.c.l.b16 %v3274
    %v3500 = vunpack.c.h.b16 %v3274
    %v3501 = vunpack.c.l.b16 %v3275
    %v3502 = vunpack.c.l.b16 %v3276
    %v3503 = vunpack.c.h.b16 %v3276
    %v3504 = vunpack.c.l.b16 %v3277
    %v3505 = vunpack.c.l.b16 %v3278
    %v3506 = vunpack.c.h.b16 %v3278
    %v3507 = vunpack.c.l.b16 %v3279
    %v3508 = vunpack.c.l.b16 %v3280
    %v3509 = vunpack.c.h.b16 %v3280
    %v3510 = vunpack.c.l.b16 %v3281
    %v3511 = vunpack.c.l.b16 %v3282
    %v3512 = vunpack.c.h.b16 %v3282
    %v3513 = vunpack.c.l.b16 %v3283
    %v3514 = vunpack.c.l.b16 %v3284
    %v3515 = vunpack.c.h.b16 %v3284
    %v3516 = vunpack.c.l.b16 %v3285
    %v3517 = vunpack.c.l.b16 %v3286
    %v3518 = vunpack.c.h.b16 %v3286
    %v3519 = vunpack.c.l.b16 %v3287
    %v3520 = vunpack.c.l.b16 %v3288
    %v3521 = vunpack.c.h.b16 %v3288
    %v3522 = vunpack.c.l.b16 %v3289
    %v3523 = vunpack.c.l.b16 %v3290
    %v3524 = vunpack.c.h.b16 %v3290
    %v3525 = vunpack.c.l.b16 %v3291
    %v3526 = vunpack.c.l.b16 %v3292
    %v3527 = vunpack.c.h.b16 %v3292
    %v3528 = vunpack.c.l.b16 %v3293
    %v3529 = vunpack.c.l.b16 %v3294
    %v3530 = vunpack.c.h.b16 %v3294
    %v3531 = vunpack.c.l.b16 %v3295
    %v3532 = vunpack.c.l.b16 %v3296
    %v3533 = vunpack.c.h.b16 %v3296
    %v3534 = vunpack.c.l.b16 %v3297
    %v3535 = vunpack.c.l.b16 %v3298
    %v3536 = vunpack.c.h.b16 %v3298
    %v3537 = vunpack.c.l.b16 %v3299
    %v3538 = vunpack.c.l.b16 %v3300
    %v3539 = vunpack.c.h.b16 %v3300
    %v3540 = vunpack.c.l.b16 %v3301
    %v3541 = vunpack.c.l.b16 %v3302
    %v3542 = vunpack.c.h.b16 %v3302
    %v3543 = vunpack.c.l.b16 %v3303
    %v3544 = vunpack.c.l.b16 %v3304
    %v3545 = vunpack.c.h.b16 %v3304
    %v3546 = vunpack.c.l.b16 %v3305
    %v3547 = vunpack.c.l.b16 %v3306
    %v3548 = vunpack.c.h.b16 %v3306
    %v3549 = vunpack.c.l.b16 %v3307
    %v3550 = vunpack.c.l.b16 %v3308
    %v3551 = vunpack.c.h.b16 %v3308
    %v3552 = vunpack.c.l.b16 %v3309
    %v3553 = vunpack.c.l.b16 %v3310
    %v3554 = vunpack.c.h.b16 %v3310
    %v3555 = vunpack.c.l.b16 %v3311
    %v3556 = vunpack.c.l.b16 %v3312
    %v3557 = vunpack.c.h.b16 %v3312
    %v3558 = vunpack.c.l.b16 %v3313
    %v3559 = vunpack.c.l.b16 %v3314
    %v3560 = vunpack.c.h.b16 %v3314
    %v3561 = vunpack.c.l.b16 %v3315
    %v3562 = vunpack.c.l.b16 %v3316
    %v3563 = vunpack.c.h.b16 %v3316
    %v3564 = vunpack.c.l.b16 %v3317
    %v3565 = vunpack.c.l.b16 %v3318
    %v3566 = vunpack.c.h.b16 %v3318
    %v3567 = vunpack.c.l.b16 %v3319
    %v3568 = vunpack.c.l.b16 %v3320
    %v3569 = vunpack.c.h.b16 %v3320
    %v3570 = vunpack.c.l.b16 %v3321
    %v3571 = vunpack.c.l.b16 %v3322
    %v3572 = vunpack.c.h.b16 %v3322
    %v3573 = vunpack.c.l.b16 %v3323
    %v3574 = vunpack.c.l.b16 %v3324
    %v3575 = vunpack.c.h.b16 %v3324
    %v3576 = vunpack.c.l.b16 %v3325
    %v3577 = vunpack.c.l.b16 %v3326
    %v3578 = vunpack.c.h.b16 %v3326
    %v3579 = vunpack.c.l.b16 %v3327
    %v3580 = vunpack.c.l.b16 %v3328
    %v3581 = vunpack.c.h.b16 %v3328
    %v3582 = vunpack.c.l.b16 %v3329
    %v3583 = vunpack.c.l.b16 %v3330
    %v3584 = vunpack.c.h.b16 %v3330
    %v3585 = vunpack.c.l.b16 %v3331
    %v3586 = vunpack.c.l.b16 %v3332
    %v3587 = vunpack.c.h.b16 %v3332
    %v3588 = vunpack.c.l.b16 %v3333
    %v3589 = vunpack.c.l.b16 %v3334
    %v3590 = vunpack.c.h.b16 %v3334
    %v3591 = vunpack.c.l.b16 %v3335
    %v3592 = vunpack.c.l.b16 %v3336
    %v3593 = vunpack.c.h.b16 %v3336
    %v3594 = vunpack.c.l.b16 %v3337
    %v3595 = vpack.c.b16 %v3454, %v3451
    %v3596 = vpack.c.b16 %v3455, %v3452
    %v3597 = vpack.c.b16 %v3456, %v3453
    %v3598 = vpack.c.b16 %v3460, %v3457
    %v3599 = vpack.c.b16 %v3461, %v3458
    %v3600 = vpack.c.b16 %v3462, %v3459
    %v3601 = vpack.c.b16 %v3466, %v3463
    %v3602 = vpack.c.b16 %v3467, %v3464
    %v3603 = vpack.c.b16 %v3468, %v3465
    %v3604 = vpack.c.b16 %v3472, %v3469
    %v3605 = vpack.c.b16 %v3473, %v3470
    %v3606 = vpack.c.b16 %v3474, %v3471
    %v3607 = vpack.c.b16 %v3478, %v3475
    %v3608 = vpack.c.b16 %v3479, %v3476
    %v3609 = vpack.c.b16 %v3480, %v3477
    %v3610 = vpack.c.b16 %v3484, %v3481
    %v3611 = vpack.c.b16 %v3485, %v3482
    %v3612 = vpack.c.b16 %v3486, %v3483
    %v3613 = vpack.c.b16 %v3490, %v3487
    %v3614 = vpack.c.b16 %v3491, %v3488
    %v3615 = vpack.c.b16 %v3492, %v3489
    %v3616 = vpack.c.b16 %v3496, %v3493
    %v3617 = vpack.c.b16 %v3497, %v3494
    %v3618 = vpack.c.b16 %v3498, %v3495
    %v3619 = vpack.c.b16 %v3502, %v3499
    %v3620 = vpack.c.b16 %v3503, %v3500
    %v3621 = vpack.c.b16 %v3504, %v3501
    %v3622 = vpack.c.b16 %v3508, %v3505
    %v3623 = vpack.c.b16 %v3509, %v3506
    %v3624 = vpack.c.b16 %v3510, %v3507
    %v3625 = vpack.c.b16 %v3514, %v3511
    %v3626 = vpack.c.b16 %v3515, %v3512
    %v3627 = vpack.c.b16 %v3516, %v3513
    %v3628 = vpack.c.b16 %v3520, %v3517
    %v3629 = vpack.c.b16 %v3521, %v3518
    %v3630 = vpack.c.b16 %v3522, %v3519
    %v3631 = vpack.c.b16 %v3526, %v3523
    %v3632 = vpack.c.b16 %v3527, %v3524
    %v3633 = vpack.c.b16 %v3528, %v3525
    %v3634 = vpack.c.b16 %v3532, %v3529
    %v3635 = vpack.c.b16 %v3533, %v3530
    %v3636 = vpack.c.b16 %v3534, %v3531
    %v3637 = vpack.c.b16 %v3538, %v3535
    %v3638 = vpack.c.b16 %v3539, %v3536
    %v3639 = vpack.c.b16 %v3540, %v3537
    %v3640 = vpack.c.b16 %v3544, %v3541
    %v3641 = vpack.c.b16 %v3545, %v3542
    %v3642 = vpack.c.b16 %v3546, %v3543
    %v3643 = vpack.c.b16 %v3550, %v3547
    %v3644 = vpack.c.b16 %v3551, %v3548
    %v3645 = vpack.c.b16 %v3552, %v3549
    %v3646 = vpack.c.b16 %v3556, %v3553
    %v3647 = vpack.c.b16 %v3557, %v3554
    %v3648 = vpack.c.b16 %v3558, %v3555
    %v3649 = vpack.c.b16 %v3562, %v3559
    %v3650 = vpack.c.b16 %v3563, %v3560
    %v3651 = vpack.c.b16 %v3564, %v3561
    %v3652 = vpack.c.b16 %v3568, %v3565
    %v3653 = vpack.c.b16 %v3569, %v3566
    %v3654 = vpack.c.b16 %v3570, %v3567
    %v3655 = vpack.c.b16 %v3574, %v3571
    %v3656 = vpack.c.b16 %v3575, %v3572
    %v3657 = vpack.c.b16 %v3576, %v3573
    %v3658 = vpack.c.b16 %v3580, %v3577
    %v3659 = vpack.c.b16 %v3581, %v3578
    %v3660 = vpack.c.b16 %v3582, %v3579
    %v3661 = vpack.c.b16 %v3586, %v3583
    %v3662 = vpack.c.b16 %v3587, %v3584
    %v3663 = vpack.c.b16 %v3588, %v3585
    %v3664 = vpack.c.b16 %v3592, %v3589
    %v3665 = vpack.c.b16 %v3593, %v3590
    %v3666 = vpack.c.b16 %v3594, %v3591
    %3739 = vmatprep.subr.bf16.mxu0 %v3596
    %3740 = vmatpush1.bf16.msra.mxu0 %v3595
    %3741 = vmatprep.subr.bf16.mxu0 %v3599
    %3742 = vmatpush1.bf16.msra.mxu0 %v3598
    %3743 = vmatprep.subr.bf16.mxu0 %v3602
    %3744 = vmatpush1.bf16.msra.mxu0 %v3601
    %3745 = vmatprep.subr.bf16.mxu0 %v3605
    %3746 = vmatpush1.bf16.msra.mxu0 %v3604
    %3747 = vmatprep.subr.bf16.mxu0 %v3608
    %3748 = vmatpush1.bf16.msra.mxu0 %v3607
    %3749 = vmatprep.subr.bf16.mxu0 %v3611
    %3750 = vmatpush1.bf16.msra.mxu0 %v3610
    %3751 = vmatprep.subr.bf16.mxu0 %v3614
    %3752 = vmatpush1.bf16.msra.mxu0 %v3613
    %3753 = vmatprep.subr.bf16.mxu0 %v3617
    %3754 = vmatpush1.bf16.msra.mxu0 %v3616
    %3755 = vmatprep.subr.bf16.mxu0 %v3620
    %3756 = vmatpush1.bf16.msra.mxu0 %v3619
    %3757 = vmatprep.subr.bf16.mxu0 %v3623
    %3758 = vmatpush1.bf16.msra.mxu0 %v3622
    %3759 = vmatprep.subr.bf16.mxu0 %v3626
    %3760 = vmatpush1.bf16.msra.mxu0 %v3625
    %3761 = vmatprep.subr.bf16.mxu0 %v3629
    %3762 = vmatpush1.bf16.msra.mxu0 %v3628
    %3763 = vmatprep.subr.bf16.mxu0 %v3632
    %3764 = vmatpush1.bf16.msra.mxu0 %v3631
    %3765 = vmatprep.subr.bf16.mxu0 %v3635
    %3766 = vmatpush1.bf16.msra.mxu0 %v3634
    %3767 = vmatprep.subr.bf16.mxu0 %v3638
    %3768 = vmatpush1.bf16.msra.mxu0 %v3637
    %3769 = vmatprep.subr.bf16.mxu0 %v3641
    %3770 = vmatpush1.bf16.msra.mxu0 %v3640
    %3771 = vmatprep.mubr.bf16.mxu0 %v3240
    %3772 = vmatmul.mubr.bf16.gmra.mrb[0].mxu0 %v3239
    %v3773 = vpop.f32.mrb[0].mxu0
    %v3774 = vadd.f32 %v3343, %v3773
    %v3775 = vpop.f32.mrb[0].mxu0
    %v3776 = vadd.f32 %v3347, %v3775
    %v3777 = vpop.f32.mrb[0].mxu0
    %v3778 = vadd.f32 %v3343, %v3777
    %v3779 = vpop.f32.mrb[0].mxu0
    %v3780 = vadd.f32 %v3347, %v3779
    %3781 = vdwg.mxu0
    %3782 = vmatprep.subr.bf16.mxu0 %v3644
    %3783 = vmatpush1.bf16.msra.mxu0 %v3643
    %3784 = vmatprep.subr.bf16.mxu0 %v3647
    %3785 = vmatpush1.bf16.msra.mxu0 %v3646
    %3786 = vmatprep.subr.bf16.mxu0 %v3650
    %3787 = vmatpush1.bf16.msra.mxu0 %v3649
    %3788 = vmatprep.subr.bf16.mxu0 %v3653
    %3789 = vmatpush1.bf16.msra.mxu0 %v3652
    %3790 = vmatprep.subr.bf16.mxu0 %v3656
    %3791 = vmatpush1.bf16.msra.mxu0 %v3655
    %3792 = vmatprep.subr.bf16.mxu0 %v3659
    %3793 = vmatpush1.bf16.msra.mxu0 %v3658
    %3794 = vmatprep.subr.bf16.mxu0 %v3662
    %3795 = vmatpush1.bf16.msra.mxu0 %v3661
    %3796 = vmatprep.subr.bf16.mxu0 %v3665
    %3797 = vmatpush1.bf16.msra.mxu0 %v3664
    %3798 = vmatprep.subr.bf16.mxu0 0
    %3799 = vmatpush1.bf16.msra.mxu0 0
    %3800 = vmatprep.subr.bf16.mxu0 0
    %3801 = vmatpush1.bf16.msra.mxu0 0
    %3802 = vmatprep.subr.bf16.mxu0 0
    %3803 = vmatpush1.bf16.msra.mxu0 0
    %3804 = vmatprep.subr.bf16.mxu0 0
    %3805 = vmatpush1.bf16.msra.mxu0 0
    %3806 = vmatprep.subr.bf16.mxu0 0
    %3807 = vmatpush1.bf16.msra.mxu0 0
    %3808 = vmatprep.subr.bf16.mxu0 0
    %3809 = vmatpush1.bf16.msra.mxu0 0
    %3810 = vmatprep.subr.bf16.mxu0 0
    %3811 = vmatpush1.bf16.msra.mxu0 0
    %3812 = vmatprep.subr.bf16.mxu0 0
    %3813 = vmatpush1.bf16.msra.mxu0 0
    %3814 = vmatprep.mubr.bf16.mxu0 0
    %3815 = vmatmul.mubr.bf16.gmra.mrb[0].mxu0 %v3241
    %v3816 = vpop.f32.mrb[0].mxu0
    %v3817 = vadd.f32 %v3774, %v3816
    %v3818 = vpop.f32.mrb[0].mxu0
    %v3819 = vadd.f32 %v3776, %v3818
    %v3820 = vpop.f32.mrb[0].mxu0
    %v3821 = vadd.f32 %v3778, %v3820
    %v3822 = vpop.f32.mrb[0].mxu0
    %v3823 = vadd.f32 %v3780, %v3822
    %3824 = vdwg.mxu0
    %3825 = vmatprep.subr.bf16.mxu0 0
    %3826 = vmatpush1.bf16.msra.mxu0 %v3597
    %3827 = vmatprep.subr.bf16.mxu0 0
    %3828 = vmatpush1.bf16.msra.mxu0 %v3600
    %3829 = vmatprep.subr.bf16.mxu0 0
    %3830 = vmatpush1.bf16.msra.mxu0 %v3603
    %3831 = vmatprep.subr.bf16.mxu0 0
    %3832 = vmatpush1.bf16.msra.mxu0 %v3606
    %3833 = vmatprep.subr.bf16.mxu0 0
    %3834 = vmatpush1.bf16.msra.mxu0 %v3609
    %3835 = vmatprep.subr.bf16.mxu0 0
    %3836 = vmatpush1.bf16.msra.mxu0 %v3612
    %3837 = vmatprep.subr.bf16.mxu0 0
    %3838 = vmatpush1.bf16.msra.mxu0 %v3615
    %3839 = vmatprep.subr.bf16.mxu0 0
    %3840 = vmatpush1.bf16.msra.mxu0 %v3618
    %3841 = vmatprep.subr.bf16.mxu0 0
    %3842 = vmatpush1.bf16.msra.mxu0 %v3621
    %3843 = vmatprep.subr.bf16.mxu0 0
    %3844 = vmatpush1.bf16.msra.mxu0 %v3624
    %3845 = vmatprep.subr.bf16.mxu0 0
    %3846 = vmatpush1.bf16.msra.mxu0 %v3627
    %3847 = vmatprep.subr.bf16.mxu0 0
    %3848 = vmatpush1.bf16.msra.mxu0 %v3630
    %3849 = vmatprep.subr.bf16.mxu0 0
    %3850 = vmatpush1.bf16.msra.mxu0 %v3633
    %3851 = vmatprep.subr.bf16.mxu0 0
    %3852 = vmatpush1.bf16.msra.mxu0 %v3636
    %3853 = vmatprep.subr.bf16.mxu0 0
    %3854 = vmatpush1.bf16.msra.mxu0 %v3639
    %3855 = vmatprep.subr.bf16.mxu0 0
    %3856 = vmatpush1.bf16.msra.mxu0 %v3642
    %3857 = vmatprep.mubr.bf16.mxu0 %v3240
    %3858 = vmatmul.mubr.bf16.gmra.mrb[0].mxu0 %v3239
    %v3859 = vpop.f32.mrb[0].mxu0
    %v3860 = vadd.f32 %v3351, %v3859
    %v3861 = vpop.f32.mrb[0].mxu0
    %v3862 = vpop.f32.mrb[0].mxu0
    %v3863 = vadd.f32 %v3351, %v3862
    %v3864 = vpop.f32.mrb[0].mxu0
    %3865 = vdwg.mxu0
    %3866 = vmatprep.subr.bf16.mxu0 0
    %3867 = vmatpush1.bf16.msra.mxu0 %v3645
    %3868 = vmatprep.subr.bf16.mxu0 0
    %3869 = vmatpush1.bf16.msra.mxu0 %v3648
    %3870 = vmatprep.subr.bf16.mxu0 0
    %3871 = vmatpush1.bf16.msra.mxu0 %v3651
    %3872 = vmatprep.subr.bf16.mxu0 0
    %3873 = vmatpush1.bf16.msra.mxu0 %v3654
    %3874 = vmatprep.subr.bf16.mxu0 0
    %3875 = vmatpush1.bf16.msra.mxu0 %v3657
    %3876 = vmatprep.subr.bf16.mxu0 0
    %3877 = vmatpush1.bf16.msra.mxu0 %v3660
    %3878 = vmatprep.subr.bf16.mxu0 0
    %3879 = vmatpush1.bf16.msra.mxu0 %v3663
    %3880 = vmatprep.subr.bf16.mxu0 0
    %3881 = vmatpush1.bf16.msra.mxu0 %v3666
    %3882 = vmatprep.subr.bf16.mxu0 0
    %3883 = vmatpush1.bf16.msra.mxu0 0
    %3884 = vmatprep.subr.bf16.mxu0 0
    %3885 = vmatpush1.bf16.msra.mxu0 0
    %3886 = vmatprep.subr.bf16.mxu0 0
    %3887 = vmatpush1.bf16.msra.mxu0 0
    %3888 = vmatprep.subr.bf16.mxu0 0
    %3889 = vmatpush1.bf16.msra.mxu0 0
    %3890 = vmatprep.subr.bf16.mxu0 0
    %3891 = vmatpush1.bf16.msra.mxu0 0
    %3892 = vmatprep.subr.bf16.mxu0 0
    %3893 = vmatpush1.bf16.msra.mxu0 0
    %3894 = vmatprep.subr.bf16.mxu0 0
    %3895 = vmatpush1.bf16.msra.mxu0 0
    %3896 = vmatprep.subr.bf16.mxu0 0
    %3897 = vmatpush1.bf16.msra.mxu0 0
    %3898 = vmatprep.mubr.bf16.mxu0 0
    %3899 = vmatmul.mubr.bf16.gmra.mrb[0].mxu0 %v3241
    %v3900 = vpop.f32.mrb[0].mxu0
    %v3901 = vadd.f32 %v3860, %v3900
    %v3902 = vpop.f32.mrb[0].mxu0
    %v3903 = vpop.f32.mrb[0].mxu0
    %v3904 = vadd.f32 %v3863, %v3903
    %v3905 = vpop.f32.mrb[0].mxu0
    %3906 = vdwg.mxu0
    %v3907 = vpack.c.bf16 %v3817, %v3817
    %v3908 = vpack.c.bf16 %v3819, %v3819
    %v3909 = vpack.c.bf16 %v3901, %v3901
    %v3910 = vpack.c.bf16 %v3821, %v3821
    %v3911 = vpack.c.bf16 %v3823, %v3823
    %v3912 = vpack.c.bf16 %v3904, %v3904
    %v3919 = vunpack.c.l.b16 %v3907
    %v3920 = vunpack.c.l.b16 %v3908
    %v3921 = vunpack.c.l.b16 %v3909
    %v3922 = vunpack.c.l.b16 %v3910
    %v3923 = vunpack.c.l.b16 %v3911
    %v3924 = vunpack.c.l.b16 %v3912
    %v3925 = vpack.c.b16 %v3920, %v3919
    %v3926 = vpack.c.b16 %v3921, %v3921
    %v3927 = vpack.c.b16 %v3923, %v3922
    %v3928 = vpack.c.b16 %v3924, %v3924
    %3933 = vst [vmem:[#allocation8] sm:$0xff] %v3925
    %3934 = vst [vmem:[#allocation8 + $0x8] sm:$0xf] %v3926
    %3935 = vst [vmem:[#allocation8 + $0xc] sm:$0xff] %v3927
    %3936 = vst [vmem:[#allocation8 + $0x14] sm:$0xf] %v3928
    // Predicated region
    $region30: #{tpu_custom_call.1} parent=1 // pred_check
      _
    $region31: #{tpu_custom_call.1} parent=1 // pred_check_branch
      %3938 = sbr.rel (0) target = $region33
    $region32: #{tpu_custom_call.1} parent=1 // pred_region
      %s3940 = ssub.s32 384, 384
      %3941 = vsyncadd [#allocation4], %s3940
      %s3942 = sshll.u32 [#allocation8], 4
      %s3943 = int_to_ptr.vmem [resolvable:$true] %s3942
      %3948 = dma.vmem_to_hbm [thread:$0]  %s3943, 384, %s4, [#allocation4], 192, 192, 12
    $region33: #{tpu_custom_call.1} parent=1 // pred_fallthru
      _
    // Predicated region
    $region34: #{tpu_custom_call.1} parent=1 // pred_check
      _
    $region35: #{tpu_custom_call.1} parent=1 // pred_check_branch
      %3950 = sbr.rel (0) target = $region37
    $region36: #{tpu_custom_call.1} parent=1 // pred_region
      %3951 = dma.done [#allocation4], 384
    $region37: #{tpu_custom_call.1} parent=1 // pred_fallthru
      _
    %3952 = vsyncpa [#allocation3], 1
    %3953 = vsyncpa [#allocation6], 1
    %3954 = vsyncpa [#allocation4], 1

</llo_original>
